<compile_context>
chip_gen: v5e
topology: v5e:2x2
jax: 0.10.0
libtpu: 0.0.40
codegen_flags: <defaults>
</compile_context>

<pallas_src>
import functools

import jax
import jax.numpy as jnp
from jax.experimental import pallas as pl
from jax.experimental.pallas import tpu as pltpu

BN_EPS = 1e-5

# (name, Cin, Cout) for every conv+BN layer, in forward order.
_CONV_LAYERS = (
    ("c1", 1, 64),
    ("r1a", 64, 64), ("r1b", 64, 64),
    ("r2a", 64, 64), ("r2b", 64, 64),
    ("c2", 64, 128),
    ("c3", 128, 256),
)
_FC_LAYERS = (("f1", 256, 512), ("f2", 512, 256), ("f3", 256, None))


# ---------------------------------------------------------------------------
# Kernel 1: conv trunk + global average pool -> pooled features (B, 256)
# ---------------------------------------------------------------------------
def _feature_kernel(x_ref, *refs, block_b, L):
    (c1w, c1b,
     r1aw, r1ab, r1bw, r1bb,
     r2aw, r2ab, r2bw, r2bb,
     c2w, c2b, c3w, c3b,
     pool_ref, g_ref) = refs

    M = block_b * L
    relu = lambda t: jnp.maximum(t, 0.0)
    bf16 = jnp.bfloat16

    # Per-row position inside its own sequence (masks the cyclic roll so the
    # k=3 / pad=1 conv sees zero padding and stays batch-independent).
    pos = jax.lax.broadcasted_iota(jnp.int32, (M, 1), 0) % L
    mask_prev = pos != 0          # row has a valid l-1 neighbour in-sequence
    mask_next = pos != (L - 1)    # row has a valid l+1 neighbour in-sequence

    def conv(h, w_ref, b_ref):
        """k=3, pad=1 conv as three accumulated dots. h: (M, Cin) f32,
        w_ref: (3, Cin, Cout) bf16, b_ref: (1, Cout) f32 (BN folded)."""
        h_prev = jnp.where(mask_prev, pltpu.roll(h, 1, 0), 0.0)
        h_next = jnp.where(mask_next, pltpu.roll(h, M - 1, 0), 0.0)  # cyclic shift of -1
        y = jnp.dot(h_prev.astype(bf16), w_ref[0], preferred_element_type=jnp.float32)
        y = y + jnp.dot(h.astype(bf16), w_ref[1], preferred_element_type=jnp.float32)
        y = y + jnp.dot(h_next.astype(bf16), w_ref[2], preferred_element_type=jnp.float32)
        return y + b_ref[...]

    # --- conv1 (Cin=1): degenerate contraction -> broadcast taps on the VPU (f32) ---
    x_col = x_ref[...]                                             # (M, 1)
    x_prev = jnp.where(mask_prev, pltpu.roll(x_col, 1, 0), 0.0)
    x_next = jnp.where(mask_next, pltpu.roll(x_col, M - 1, 0), 0.0)
    w1 = c1w[...]                                                  # (3, 64)
    h = relu(x_prev * w1[0:1, :] + x_col * w1[1:2, :] + x_next * w1[2:3, :]
             + c1b[...])                                           # (M, 64)

    # --- residual blocks (residual add kept in f32) --------------------------
    r = relu(conv(h, r1aw, r1ab))
    h = relu(conv(r, r1bw, r1bb) + h)
    r = relu(conv(h, r2aw, r2ab))
    h = relu(conv(r, r2bw, r2bb) + h)

    # --- conv2 / conv3 --------------------------------------------------------
    h = relu(conv(h, c2w, c2b))                                    # (M, 128)
    h = relu(conv(h, c3w, c3b))                                    # (M, 256)

    # --- global average pool over L as a block-diagonal matmul ----------------
    g_ref[...] = jnp.dot(pool_ref[...], h.astype(bf16),
                         preferred_element_type=jnp.float32)       # (block_b, 256)


# ---------------------------------------------------------------------------
# Kernel 2: MLP head, run once on the full pooled batch
# ---------------------------------------------------------------------------
def _head_kernel(g_ref, f1w, f1b, f2w, f2b, f3w, f3b, o_ref):
    relu = lambda t: jnp.maximum(t, 0.0)
    bf16 = jnp.bfloat16
    # TODO(synk): nn.Dropout(0.3) is identity in eval mode; not modeled.
    z = relu(jnp.dot(g_ref[...].astype(bf16), f1w[...],
                     preferred_element_type=jnp.float32) + f1b[...])
    z = relu(jnp.dot(z.astype(bf16), f2w[...],
                     preferred_element_type=jnp.float32) + f2b[...])
    o_ref[...] = (jnp.dot(z.astype(bf16), f3w[...],
                          preferred_element_type=jnp.float32) + f3b[...])


# ---------------------------------------------------------------------------
# Parameter prep (outside the kernel): BN fold, bf16 cast, layout
# ---------------------------------------------------------------------------
def _prepare_conv_params(raw):
    prep = []
    for name, cin, cout in _CONV_LAYERS:
        w, b = raw[name + "_w"], raw[name + "_b"]
        g, be = raw[name + "_g"], raw[name + "_beta"]
        m, v = raw[name + "_m"], raw[name + "_v"]
        s = g / jnp.sqrt(v + BN_EPS)
        wf = w * s[None, None, :]                                   # (3, Cin, Cout)
        bf = ((b - m) * s + be).reshape(1, cout).astype(jnp.float32)
        if cin == 1:                                                # conv1: VPU path
            prep += [wf.reshape(3, cout).astype(jnp.float32), bf]
        else:                                                       # MXU path, bf16
            prep += [wf.astype(jnp.bfloat16), bf]
    return prep


def _prepare_head_params(raw, out_pad):
    f1w = raw["f1_w"].astype(jnp.bfloat16)
    f1b = raw["f1_b"].reshape(1, -1)
    f2w = raw["f2_w"].astype(jnp.bfloat16)
    f2b = raw["f2_b"].reshape(1, -1)
    f3w, f3b = raw["f3_w"], raw["f3_b"]
    od = f3w.shape[1]
    f3w = jnp.pad(f3w, ((0, 0), (0, out_pad - od))).astype(jnp.bfloat16)
    f3b = jnp.pad(f3b, (0, out_pad - od)).reshape(1, out_pad)
    return [f1w, f1b, f2w, f2b, f3w, f3b]


def _pick_block_b(B, L, max_m):
    """Largest batch tile (multiple of 8, divides B) with M=block_b*L <= max_m,
    preferring a grid of length >= 2 so both v7x TensorCores get work."""
    cands = [d for d in range(8, B + 1, 8) if B % d == 0 and d * L <= max_m]
    if not cands:
        return B                      # tiny batch: one full-array block (always legal)
    multi = [d for d in cands if B // d >= 2]
    return max(multi) if multi else max(cands)


# ---------------------------------------------------------------------------
# Wrapper
# ---------------------------------------------------------------------------
def enhanced_cnn(x, raw_params, output_dim, *, block_b=None, max_m=2048):
    B, L = x.shape
    if block_b is None:
        block_b = _pick_block_b(B, L, max_m)
    assert B % block_b == 0
    M = block_b * L
    grid = (B // block_b,)

    conv_params = _prepare_conv_params(raw_params)

    # Block-diagonal average-pool matrix: pool[i, j] = 1/L if j // L == i else 0.
    rows = jnp.arange(block_b, dtype=jnp.int32)[:, None]
    cols = jnp.arange(M, dtype=jnp.int32)[None, :]
    pool = jnp.where(cols // L == rows, 1.0 / L, 0.0).astype(jnp.bfloat16)

    feat_inputs = conv_params + [pool]

    in_specs = [pl.BlockSpec((M, 1), lambda i: (i, 0))]
    for p in feat_inputs:
        # Full-array, constant-index blocks: fetched once, stay VMEM resident.
        in_specs.append(pl.BlockSpec(p.shape, lambda i, nd=p.ndim: (0,) * nd))

    # Explicit VMEM budget from the live set (params double-buffered + activations),
    # capped well under v7x's 64 MiB physical VMEM.
    param_bytes = sum(int(p.size) * p.dtype.itemsize for p in feat_inputs)
    vmem_limit = int(min(64 * 1024 * 1024,
                         8 * 1024 * 1024 + 2 * param_bytes + 8 * 1024 * M))

    g = pl.pallas_call(
        functools.partial(_feature_kernel, block_b=block_b, L=L),
        out_shape=jax.ShapeDtypeStruct((B, 256), jnp.float32),
        grid_spec=pltpu.PrefetchScalarGridSpec(
            num_scalar_prefetch=0,
            grid=grid,
            in_specs=in_specs,
            out_specs=pl.BlockSpec((block_b, 256), lambda i: (i, 0)),
        ),
        compiler_params=pltpu.CompilerParams(
            dimension_semantics=("parallel",),
            vmem_limit_bytes=vmem_limit),
    )(x.reshape(B * L, 1), *feat_inputs)

    # MLP head once on the whole batch (lane-dense padded output, sliced below).
    out_pad = ((output_dim + 127) // 128) * 128
    head_inputs = _prepare_head_params(raw_params, out_pad)
    out = pl.pallas_call(
        _head_kernel,
        out_shape=jax.ShapeDtypeStruct((B, out_pad), jnp.float32),
    )(g, *head_inputs)
    return out[:, :output_dim]


# ---------------------------------------------------------------------------
# Deterministic raw parameters (conv weight layout (K=3, Cin, Cout); a PyTorch
# Conv1d weight (Cout, Cin, K) maps via w.transpose(2, 1, 0))
# ---------------------------------------------------------------------------
def make_params(key, output_dim):
    raw = {}
    keys = jax.random.split(key, len(_CONV_LAYERS) + len(_FC_LAYERS))
    for k, (name, cin, cout) in zip(keys, _CONV_LAYERS):
        kw, kb, kg, kbe, km, kv = jax.random.split(k, 6)
        raw[name + "_w"] = 0.1 * jax.random.normal(kw, (3, cin, cout), jnp.float32)
        raw[name + "_b"] = 0.1 * jax.random.normal(kb, (cout,), jnp.float32)
        raw[name + "_g"] = 1.0 + 0.1 * jax.random.normal(kg, (cout,), jnp.float32)
        raw[name + "_beta"] = 0.1 * jax.random.normal(kbe, (cout,), jnp.float32)
        raw[name + "_m"] = 0.1 * jax.random.normal(km, (cout,), jnp.float32)
        raw[name + "_v"] = 1.0 + 0.2 * jax.random.uniform(kv, (cout,), jnp.float32)
    for k, (name, cin, cout) in zip(keys[len(_CONV_LAYERS):], _FC_LAYERS):
        cout = output_dim if cout is None else cout
        kw, kb = jax.random.split(k)
        raw[name + "_w"] = 0.1 * jax.random.normal(kw, (cin, cout), jnp.float32)
        raw[name + "_b"] = 0.1 * jax.random.normal(kb, (cout,), jnp.float32)
    return raw


# ---------------------------------------------------------------------------
# Plain-JAX f32 reference (explicit conv + eval-mode BatchNorm — checks the fold too)
# ---------------------------------------------------------------------------
def _forward_ref(x, raw):
    relu = lambda t: jnp.maximum(t, 0.0)

    def conv(h, w, b):
        Bx, Lx, _ = h.shape
        hp = jnp.pad(h, ((0, 0), (1, 1), (0, 0)))
        y = jnp.zeros((Bx, Lx, w.shape[2]), jnp.float32) + b[None, None, :]
        for k in range(3):
            y = y + jnp.einsum("blc,cd->bld", hp[:, k:k + Lx, :], w[k],
                               preferred_element_type=jnp.float32)
        return y

    def bn(h, name):
        g, be = raw[name + "_g"], raw[name + "_beta"]
        m, v = raw[name + "_m"], raw[name + "_v"]
        return (h - m) * (g / jnp.sqrt(v + BN_EPS)) + be

    def cbr(h, name):
        return relu(bn(conv(h, raw[name + "_w"], raw[name + "_b"]), name))

    def res(h, a, b):
        r = relu(bn(conv(h, raw[a + "_w"], raw[a + "_b"]), a))
        r = bn(conv(r, raw[b + "_w"], raw[b + "_b"]), b)
        return relu(r + h)

    h = x[:, :, None]
    h = cbr(h, "c1")
    h = res(h, "r1a", "r1b")
    h = res(h, "r2a", "r2b")
    h = cbr(h, "c2")
    h = cbr(h, "c3")
    g = jnp.mean(h, axis=1)
    z = relu(jnp.dot(g, raw["f1_w"], preferred_element_type=jnp.float32) + raw["f1_b"])
    z = relu(jnp.dot(z, raw["f2_w"], preferred_element_type=jnp.float32) + raw["f2_b"])
    return jnp.dot(z, raw["f3_w"], preferred_element_type=jnp.float32) + raw["f3_b"]


if __name__ == "__main__":
    B, input_dim, output_dim = 16, 16, 10

    key = jax.random.PRNGKey(0)
    k_x, k_p = jax.random.split(key)
    x = jax.random.normal(k_x, (B, input_dim), jnp.float32)
    raw = make_params(k_p, output_dim)

    out = enhanced_cnn(x, raw, output_dim)          # block_b=8 -> grid=(2,), M=128
    out = jax.block_until_ready(out)

    ref = _forward_ref(x, raw)
    assert out.shape == (B, output_dim)
    # bf16 matmul operands with f32 accumulation -> tolerance loosened vs f32 reference.
    assert jnp.allclose(out, ref, atol=5e-2, rtol=5e-2), "mismatch vs JAX reference"

    print("KERNEL_OK")
</pallas_src>

<mosaic_0001>
module attributes {stable_mosaic.version = 11 : i64} {
  func.func @_feature_kernel(%arg0: i32, %arg1: memref<128x1xf32, #tpu.memory_space<vmem>>, %arg2: memref<3x64xf32, #tpu.memory_space<vmem>>, %arg3: memref<1x64xf32, #tpu.memory_space<vmem>>, %arg4: memref<3x64x64xbf16, #tpu.memory_space<vmem>>, %arg5: memref<1x64xf32, #tpu.memory_space<vmem>>, %arg6: memref<3x64x64xbf16, #tpu.memory_space<vmem>>, %arg7: memref<1x64xf32, #tpu.memory_space<vmem>>, %arg8: memref<3x64x64xbf16, #tpu.memory_space<vmem>>, %arg9: memref<1x64xf32, #tpu.memory_space<vmem>>, %arg10: memref<3x64x64xbf16, #tpu.memory_space<vmem>>, %arg11: memref<1x64xf32, #tpu.memory_space<vmem>>, %arg12: memref<3x64x128xbf16, #tpu.memory_space<vmem>>, %arg13: memref<1x128xf32, #tpu.memory_space<vmem>>, %arg14: memref<3x128x256xbf16, #tpu.memory_space<vmem>>, %arg15: memref<1x256xf32, #tpu.memory_space<vmem>>, %arg16: memref<8x128xbf16, #tpu.memory_space<vmem>>, %arg17: memref<8x256xf32, #tpu.memory_space<vmem>>) attributes {dimension_semantics = [#tpu.dimension_semantics<parallel>], iteration_bounds = array<i64: 2>, scalar_prefetch = 0 : i64, scratch_operands = 0 : i64, tpu.core_type = #tpu.core_type<tc>, window_params = [{transform_indices = @transform_0, window_bounds = array<i64: 128, 1>}, {pipeline_mode = #tpu.pipeline_mode<synchronous>, transform_indices = @transform_1, window_bounds = array<i64: 3, 64>}, {pipeline_mode = #tpu.pipeline_mode<synchronous>, transform_indices = @transform_2, window_bounds = array<i64: 1, 64>}, {pipeline_mode = #tpu.pipeline_mode<synchronous>, transform_indices = @transform_3, window_bounds = array<i64: 3, 64, 64>}, {pipeline_mode = #tpu.pipeline_mode<synchronous>, transform_indices = @transform_4, window_bounds = array<i64: 1, 64>}, {pipeline_mode = #tpu.pipeline_mode<synchronous>, transform_indices = @transform_5, window_bounds = array<i64: 3, 64, 64>}, {pipeline_mode = #tpu.pipeline_mode<synchronous>, transform_indices = @transform_6, window_bounds = array<i64: 1, 64>}, {pipeline_mode = #tpu.pipeline_mode<synchronous>, transform_indices = @transform_7, window_bounds = array<i64: 3, 64, 64>}, {pipeline_mode = #tpu.pipeline_mode<synchronous>, transform_indices = @transform_8, window_bounds = array<i64: 1, 64>}, {pipeline_mode = #tpu.pipeline_mode<synchronous>, transform_indices = @transform_9, window_bounds = array<i64: 3, 64, 64>}, {pipeline_mode = #tpu.pipeline_mode<synchronous>, transform_indices = @transform_10, window_bounds = array<i64: 1, 64>}, {pipeline_mode = #tpu.pipeline_mode<synchronous>, transform_indices = @transform_11, window_bounds = array<i64: 3, 64, 128>}, {pipeline_mode = #tpu.pipeline_mode<synchronous>, transform_indices = @transform_12, window_bounds = array<i64: 1, 128>}, {pipeline_mode = #tpu.pipeline_mode<synchronous>, transform_indices = @transform_13, window_bounds = array<i64: 3, 128, 256>}, {pipeline_mode = #tpu.pipeline_mode<synchronous>, transform_indices = @transform_14, window_bounds = array<i64: 1, 256>}, {pipeline_mode = #tpu.pipeline_mode<synchronous>, transform_indices = @transform_15, window_bounds = array<i64: 8, 128>}, {transform_indices = @transform_16, window_bounds = array<i64: 8, 256>}]} {
    %0 = tpu.iota {dimensions = array<i32: 0>} : vector<128x1xi32>
    %c16_i32 = arith.constant 16 : i32
    %c0_i32 = arith.constant 0 : i32
    %1 = arith.cmpi eq, %c16_i32, %c0_i32 : i32
    %c1_i32 = arith.constant 1 : i32
    %2 = arith.select %1, %c1_i32, %c16_i32 : i32
    %3 = vector.broadcast %2 : i32 to vector<128x1xi32>
    %4 = arith.remsi %0, %3 : vector<128x1xi32>
    %c0_i32_0 = arith.constant 0 : i32
    %5 = vector.broadcast %c0_i32_0 : i32 to vector<128x1xi32>
    %6 = arith.cmpi ne, %4, %5 : vector<128x1xi32>
    %c0_i32_1 = arith.constant 0 : i32
    %7 = vector.broadcast %c0_i32_1 : i32 to vector<128x1xi32>
    %8 = arith.cmpi slt, %4, %7 : vector<128x1xi32>
    %c0_i32_2 = arith.constant 0 : i32
    %9 = arith.cmpi slt, %2, %c0_i32_2 : i32
    %10 = vector.broadcast %9 : i1 to vector<128x1xi1>
    %11 = vector.broadcast %10 : vector<128x1xi1> to vector<128x1xi1>
    %12 = arith.xori %8, %11 : vector<128x1xi1>
    %13 = arith.andi %12, %6 : vector<128x1xi1>
    %14 = vector.broadcast %2 : i32 to vector<128x1xi32>
    %15 = arith.addi %4, %14 : vector<128x1xi32>
    %16 = arith.select %13, %15, %4 : vector<128x1xi1>, vector<128x1xi32>
    %c0_i32_3 = arith.constant 0 : i32
    %17 = vector.broadcast %c0_i32_3 : i32 to vector<128x1xi32>
    %18 = arith.cmpi ne, %16, %17 : vector<128x1xi32>
    %c15_i32 = arith.constant 15 : i32
    %19 = vector.broadcast %c15_i32 : i32 to vector<128x1xi32>
    %20 = arith.cmpi ne, %16, %19 : vector<128x1xi32>
    %c0 = arith.constant 0 : index
    %c0_4 = arith.constant 0 : index
    %21 = vector.load %arg1[%c0, %c0_4] : memref<128x1xf32, #tpu.memory_space<vmem>>, vector<128x1xf32>
    %c1_i32_5 = arith.constant 1 : i32
    %22 = tpu.dynamic_rotate %21 by %c1_i32_5 dim 0 : vector<128x1xf32>, i32 -> vector<128x1xf32>
    %cst = arith.constant 0.000000e+00 : f32
    %23 = vector.broadcast %cst : f32 to vector<128x1xf32>
    %24 = arith.select %18, %22, %23 : vector<128x1xi1>, vector<128x1xf32>
    %c127_i32 = arith.constant 127 : i32
    %25 = tpu.dynamic_rotate %21 by %c127_i32 dim 0 : vector<128x1xf32>, i32 -> vector<128x1xf32>
    %cst_6 = arith.constant 0.000000e+00 : f32
    %26 = vector.broadcast %cst_6 : f32 to vector<128x1xf32>
    %27 = arith.select %20, %25, %26 : vector<128x1xi1>, vector<128x1xf32>
    %c0_7 = arith.constant 0 : index
    %c0_8 = arith.constant 0 : index
    %28 = vector.load %arg2[%c0_7, %c0_8] : memref<3x64xf32, #tpu.memory_space<vmem>>, vector<3x64xf32>
    %29 = vector.extract_strided_slice %28 {offsets = [0, 0], sizes = [1, 64], strides = [1, 1]} : vector<3x64xf32> to vector<1x64xf32>
    %30 = vector.broadcast %24 : vector<128x1xf32> to vector<128x64xf32>
    %31 = vector.broadcast %29 : vector<1x64xf32> to vector<128x64xf32>
    %32 = arith.mulf %30, %31 : vector<128x64xf32>
    %33 = vector.extract_strided_slice %28 {offsets = [1, 0], sizes = [1, 64], strides = [1, 1]} : vector<3x64xf32> to vector<1x64xf32>
    %34 = vector.broadcast %21 : vector<128x1xf32> to vector<128x64xf32>
    %35 = vector.broadcast %33 : vector<1x64xf32> to vector<128x64xf32>
    %36 = arith.mulf %34, %35 : vector<128x64xf32>
    %37 = arith.addf %32, %36 : vector<128x64xf32>
    %38 = vector.extract_strided_slice %28 {offsets = [2, 0], sizes = [1, 64], strides = [1, 1]} : vector<3x64xf32> to vector<1x64xf32>
    %39 = vector.broadcast %27 : vector<128x1xf32> to vector<128x64xf32>
    %40 = vector.broadcast %38 : vector<1x64xf32> to vector<128x64xf32>
    %41 = arith.mulf %39, %40 : vector<128x64xf32>
    %42 = arith.addf %37, %41 : vector<128x64xf32>
    %c0_9 = arith.constant 0 : index
    %c0_10 = arith.constant 0 : index
    %43 = vector.load %arg3[%c0_9, %c0_10] : memref<1x64xf32, #tpu.memory_space<vmem>>, vector<1x64xf32>
    %44 = vector.broadcast %43 : vector<1x64xf32> to vector<128x64xf32>
    %45 = arith.addf %42, %44 : vector<128x64xf32>
    %cst_11 = arith.constant 0.000000e+00 : f32
    %46 = vector.broadcast %cst_11 : f32 to vector<128x64xf32>
    %47 = arith.maximumf %45, %46 : vector<128x64xf32>
    %c1_i32_12 = arith.constant 1 : i32
    %48 = tpu.dynamic_rotate %47 by %c1_i32_12 dim 0 : vector<128x64xf32>, i32 -> vector<128x64xf32>
    %cst_13 = arith.constant 0.000000e+00 : f32
    %49 = vector.shape_cast %18 : vector<128x1xi1> to vector<128x1xi1>
    %50 = vector.broadcast %49 : vector<128x1xi1> to vector<128x64xi1>
    %51 = vector.broadcast %cst_13 : f32 to vector<128x64xf32>
    %52 = arith.select %50, %48, %51 : vector<128x64xi1>, vector<128x64xf32>
    %c127_i32_14 = arith.constant 127 : i32
    %53 = tpu.dynamic_rotate %47 by %c127_i32_14 dim 0 : vector<128x64xf32>, i32 -> vector<128x64xf32>
    %cst_15 = arith.constant 0.000000e+00 : f32
    %54 = vector.shape_cast %20 : vector<128x1xi1> to vector<128x1xi1>
    %55 = vector.broadcast %54 : vector<128x1xi1> to vector<128x64xi1>
    %56 = vector.broadcast %cst_15 : f32 to vector<128x64xf32>
    %57 = arith.select %55, %53, %56 : vector<128x64xi1>, vector<128x64xf32>
    %58 = arith.truncf %52 : vector<128x64xf32> to vector<128x64xbf16>
    %c0_16 = arith.constant 0 : index
    %c0_17 = arith.constant 0 : index
    %c0_18 = arith.constant 0 : index
    %59 = vector.load %arg4[%c0_16, %c0_17, %c0_18] : memref<3x64x64xbf16, #tpu.memory_space<vmem>>, vector<1x64x64xbf16>
    %60 = vector.shape_cast %59 : vector<1x64x64xbf16> to vector<64x64xbf16>
    %cst_19 = arith.constant dense<0.000000e+00> : vector<128x64xf32>
    %61 = tpu.matmul %58, %60, %cst_19 {dimension_numbers = #tpu.dot_dimension_numbers<[1], [0], [0], [1], [0, 0, 1, 1], [], []>} : vector<128x64xbf16>, vector<64x64xbf16>, vector<128x64xf32> -> vector<128x64xf32>
    %62 = arith.truncf %47 : vector<128x64xf32> to vector<128x64xbf16>
    %c1 = arith.constant 1 : index
    %c0_20 = arith.constant 0 : index
    %c0_21 = arith.constant 0 : index
    %63 = vector.load %arg4[%c1, %c0_20, %c0_21] : memref<3x64x64xbf16, #tpu.memory_space<vmem>>, vector<1x64x64xbf16>
    %64 = vector.shape_cast %63 : vector<1x64x64xbf16> to vector<64x64xbf16>
    %cst_22 = arith.constant dense<0.000000e+00> : vector<128x64xf32>
    %65 = tpu.matmul %62, %64, %cst_22 {dimension_numbers = #tpu.dot_dimension_numbers<[1], [0], [0], [1], [0, 0, 1, 1], [], []>} : vector<128x64xbf16>, vector<64x64xbf16>, vector<128x64xf32> -> vector<128x64xf32>
    %66 = arith.addf %61, %65 : vector<128x64xf32>
    %67 = arith.truncf %57 : vector<128x64xf32> to vector<128x64xbf16>
    %c2 = arith.constant 2 : index
    %c0_23 = arith.constant 0 : index
    %c0_24 = arith.constant 0 : index
    %68 = vector.load %arg4[%c2, %c0_23, %c0_24] : memref<3x64x64xbf16, #tpu.memory_space<vmem>>, vector<1x64x64xbf16>
    %69 = vector.shape_cast %68 : vector<1x64x64xbf16> to vector<64x64xbf16>
    %cst_25 = arith.constant dense<0.000000e+00> : vector<128x64xf32>
    %70 = tpu.matmul %67, %69, %cst_25 {dimension_numbers = #tpu.dot_dimension_numbers<[1], [0], [0], [1], [0, 0, 1, 1], [], []>} : vector<128x64xbf16>, vector<64x64xbf16>, vector<128x64xf32> -> vector<128x64xf32>
    %71 = arith.addf %66, %70 : vector<128x64xf32>
    %c0_26 = arith.constant 0 : index
    %c0_27 = arith.constant 0 : index
    %72 = vector.load %arg5[%c0_26, %c0_27] : memref<1x64xf32, #tpu.memory_space<vmem>>, vector<1x64xf32>
    %73 = vector.broadcast %72 : vector<1x64xf32> to vector<128x64xf32>
    %74 = arith.addf %71, %73 : vector<128x64xf32>
    %cst_28 = arith.constant 0.000000e+00 : f32
    %75 = vector.broadcast %cst_28 : f32 to vector<128x64xf32>
    %76 = arith.maximumf %74, %75 : vector<128x64xf32>
    %c1_i32_29 = arith.constant 1 : i32
    %77 = tpu.dynamic_rotate %76 by %c1_i32_29 dim 0 : vector<128x64xf32>, i32 -> vector<128x64xf32>
    %cst_30 = arith.constant 0.000000e+00 : f32
    %78 = vector.shape_cast %18 : vector<128x1xi1> to vector<128x1xi1>
    %79 = vector.broadcast %78 : vector<128x1xi1> to vector<128x64xi1>
    %80 = vector.broadcast %cst_30 : f32 to vector<128x64xf32>
    %81 = arith.select %79, %77, %80 : vector<128x64xi1>, vector<128x64xf32>
    %c127_i32_31 = arith.constant 127 : i32
    %82 = tpu.dynamic_rotate %76 by %c127_i32_31 dim 0 : vector<128x64xf32>, i32 -> vector<128x64xf32>
    %cst_32 = arith.constant 0.000000e+00 : f32
    %83 = vector.shape_cast %20 : vector<128x1xi1> to vector<128x1xi1>
    %84 = vector.broadcast %83 : vector<128x1xi1> to vector<128x64xi1>
    %85 = vector.broadcast %cst_32 : f32 to vector<128x64xf32>
    %86 = arith.select %84, %82, %85 : vector<128x64xi1>, vector<128x64xf32>
    %87 = arith.truncf %81 : vector<128x64xf32> to vector<128x64xbf16>
    %c0_33 = arith.constant 0 : index
    %c0_34 = arith.constant 0 : index
    %c0_35 = arith.constant 0 : index
    %88 = vector.load %arg6[%c0_33, %c0_34, %c0_35] : memref<3x64x64xbf16, #tpu.memory_space<vmem>>, vector<1x64x64xbf16>
    %89 = vector.shape_cast %88 : vector<1x64x64xbf16> to vector<64x64xbf16>
    %cst_36 = arith.constant dense<0.000000e+00> : vector<128x64xf32>
    %90 = tpu.matmul %87, %89, %cst_36 {dimension_numbers = #tpu.dot_dimension_numbers<[1], [0], [0], [1], [0, 0, 1, 1], [], []>} : vector<128x64xbf16>, vector<64x64xbf16>, vector<128x64xf32> -> vector<128x64xf32>
    %91 = arith.truncf %76 : vector<128x64xf32> to vector<128x64xbf16>
    %c1_37 = arith.constant 1 : index
    %c0_38 = arith.constant 0 : index
    %c0_39 = arith.constant 0 : index
    %92 = vector.load %arg6[%c1_37, %c0_38, %c0_39] : memref<3x64x64xbf16, #tpu.memory_space<vmem>>, vector<1x64x64xbf16>
    %93 = vector.shape_cast %92 : vector<1x64x64xbf16> to vector<64x64xbf16>
    %cst_40 = arith.constant dense<0.000000e+00> : vector<128x64xf32>
    %94 = tpu.matmul %91, %93, %cst_40 {dimension_numbers = #tpu.dot_dimension_numbers<[1], [0], [0], [1], [0, 0, 1, 1], [], []>} : vector<128x64xbf16>, vector<64x64xbf16>, vector<128x64xf32> -> vector<128x64xf32>
    %95 = arith.addf %90, %94 : vector<128x64xf32>
    %96 = arith.truncf %86 : vector<128x64xf32> to vector<128x64xbf16>
    %c2_41 = arith.constant 2 : index
    %c0_42 = arith.constant 0 : index
    %c0_43 = arith.constant 0 : index
    %97 = vector.load %arg6[%c2_41, %c0_42, %c0_43] : memref<3x64x64xbf16, #tpu.memory_space<vmem>>, vector<1x64x64xbf16>
    %98 = vector.shape_cast %97 : vector<1x64x64xbf16> to vector<64x64xbf16>
    %cst_44 = arith.constant dense<0.000000e+00> : vector<128x64xf32>
    %99 = tpu.matmul %96, %98, %cst_44 {dimension_numbers = #tpu.dot_dimension_numbers<[1], [0], [0], [1], [0, 0, 1, 1], [], []>} : vector<128x64xbf16>, vector<64x64xbf16>, vector<128x64xf32> -> vector<128x64xf32>
    %100 = arith.addf %95, %99 : vector<128x64xf32>
    %c0_45 = arith.constant 0 : index
    %c0_46 = arith.constant 0 : index
    %101 = vector.load %arg7[%c0_45, %c0_46] : memref<1x64xf32, #tpu.memory_space<vmem>>, vector<1x64xf32>
    %102 = vector.broadcast %101 : vector<1x64xf32> to vector<128x64xf32>
    %103 = arith.addf %100, %102 : vector<128x64xf32>
    %104 = arith.addf %103, %47 : vector<128x64xf32>
    %cst_47 = arith.constant 0.000000e+00 : f32
    %105 = vector.broadcast %cst_47 : f32 to vector<128x64xf32>
    %106 = arith.maximumf %104, %105 : vector<128x64xf32>
    %c1_i32_48 = arith.constant 1 : i32
    %107 = tpu.dynamic_rotate %106 by %c1_i32_48 dim 0 : vector<128x64xf32>, i32 -> vector<128x64xf32>
    %cst_49 = arith.constant 0.000000e+00 : f32
    %108 = vector.shape_cast %18 : vector<128x1xi1> to vector<128x1xi1>
    %109 = vector.broadcast %108 : vector<128x1xi1> to vector<128x64xi1>
    %110 = vector.broadcast %cst_49 : f32 to vector<128x64xf32>
    %111 = arith.select %109, %107, %110 : vector<128x64xi1>, vector<128x64xf32>
    %c127_i32_50 = arith.constant 127 : i32
    %112 = tpu.dynamic_rotate %106 by %c127_i32_50 dim 0 : vector<128x64xf32>, i32 -> vector<128x64xf32>
    %cst_51 = arith.constant 0.000000e+00 : f32
    %113 = vector.shape_cast %20 : vector<128x1xi1> to vector<128x1xi1>
    %114 = vector.broadcast %113 : vector<128x1xi1> to vector<128x64xi1>
    %115 = vector.broadcast %cst_51 : f32 to vector<128x64xf32>
    %116 = arith.select %114, %112, %115 : vector<128x64xi1>, vector<128x64xf32>
    %117 = arith.truncf %111 : vector<128x64xf32> to vector<128x64xbf16>
    %c0_52 = arith.constant 0 : index
    %c0_53 = arith.constant 0 : index
    %c0_54 = arith.constant 0 : index
    %118 = vector.load %arg8[%c0_52, %c0_53, %c0_54] : memref<3x64x64xbf16, #tpu.memory_space<vmem>>, vector<1x64x64xbf16>
    %119 = vector.shape_cast %118 : vector<1x64x64xbf16> to vector<64x64xbf16>
    %cst_55 = arith.constant dense<0.000000e+00> : vector<128x64xf32>
    %120 = tpu.matmul %117, %119, %cst_55 {dimension_numbers = #tpu.dot_dimension_numbers<[1], [0], [0], [1], [0, 0, 1, 1], [], []>} : vector<128x64xbf16>, vector<64x64xbf16>, vector<128x64xf32> -> vector<128x64xf32>
    %121 = arith.truncf %106 : vector<128x64xf32> to vector<128x64xbf16>
    %c1_56 = arith.constant 1 : index
    %c0_57 = arith.constant 0 : index
    %c0_58 = arith.constant 0 : index
    %122 = vector.load %arg8[%c1_56, %c0_57, %c0_58] : memref<3x64x64xbf16, #tpu.memory_space<vmem>>, vector<1x64x64xbf16>
    %123 = vector.shape_cast %122 : vector<1x64x64xbf16> to vector<64x64xbf16>
    %cst_59 = arith.constant dense<0.000000e+00> : vector<128x64xf32>
    %124 = tpu.matmul %121, %123, %cst_59 {dimension_numbers = #tpu.dot_dimension_numbers<[1], [0], [0], [1], [0, 0, 1, 1], [], []>} : vector<128x64xbf16>, vector<64x64xbf16>, vector<128x64xf32> -> vector<128x64xf32>
    %125 = arith.addf %120, %124 : vector<128x64xf32>
    %126 = arith.truncf %116 : vector<128x64xf32> to vector<128x64xbf16>
    %c2_60 = arith.constant 2 : index
    %c0_61 = arith.constant 0 : index
    %c0_62 = arith.constant 0 : index
    %127 = vector.load %arg8[%c2_60, %c0_61, %c0_62] : memref<3x64x64xbf16, #tpu.memory_space<vmem>>, vector<1x64x64xbf16>
    %128 = vector.shape_cast %127 : vector<1x64x64xbf16> to vector<64x64xbf16>
    %cst_63 = arith.constant dense<0.000000e+00> : vector<128x64xf32>
    %129 = tpu.matmul %126, %128, %cst_63 {dimension_numbers = #tpu.dot_dimension_numbers<[1], [0], [0], [1], [0, 0, 1, 1], [], []>} : vector<128x64xbf16>, vector<64x64xbf16>, vector<128x64xf32> -> vector<128x64xf32>
    %130 = arith.addf %125, %129 : vector<128x64xf32>
    %c0_64 = arith.constant 0 : index
    %c0_65 = arith.constant 0 : index
    %131 = vector.load %arg9[%c0_64, %c0_65] : memref<1x64xf32, #tpu.memory_space<vmem>>, vector<1x64xf32>
    %132 = vector.broadcast %131 : vector<1x64xf32> to vector<128x64xf32>
    %133 = arith.addf %130, %132 : vector<128x64xf32>
    %cst_66 = arith.constant 0.000000e+00 : f32
    %134 = vector.broadcast %cst_66 : f32 to vector<128x64xf32>
    %135 = arith.maximumf %133, %134 : vector<128x64xf32>
    %c1_i32_67 = arith.constant 1 : i32
    %136 = tpu.dynamic_rotate %135 by %c1_i32_67 dim 0 : vector<128x64xf32>, i32 -> vector<128x64xf32>
    %cst_68 = arith.constant 0.000000e+00 : f32
    %137 = vector.shape_cast %18 : vector<128x1xi1> to vector<128x1xi1>
    %138 = vector.broadcast %137 : vector<128x1xi1> to vector<128x64xi1>
    %139 = vector.broadcast %cst_68 : f32 to vector<128x64xf32>
    %140 = arith.select %138, %136, %139 : vector<128x64xi1>, vector<128x64xf32>
    %c127_i32_69 = arith.constant 127 : i32
    %141 = tpu.dynamic_rotate %135 by %c127_i32_69 dim 0 : vector<128x64xf32>, i32 -> vector<128x64xf32>
    %cst_70 = arith.constant 0.000000e+00 : f32
    %142 = vector.shape_cast %20 : vector<128x1xi1> to vector<128x1xi1>
    %143 = vector.broadcast %142 : vector<128x1xi1> to vector<128x64xi1>
    %144 = vector.broadcast %cst_70 : f32 to vector<128x64xf32>
    %145 = arith.select %143, %141, %144 : vector<128x64xi1>, vector<128x64xf32>
    %146 = arith.truncf %140 : vector<128x64xf32> to vector<128x64xbf16>
    %c0_71 = arith.constant 0 : index
    %c0_72 = arith.constant 0 : index
    %c0_73 = arith.constant 0 : index
    %147 = vector.load %arg10[%c0_71, %c0_72, %c0_73] : memref<3x64x64xbf16, #tpu.memory_space<vmem>>, vector<1x64x64xbf16>
    %148 = vector.shape_cast %147 : vector<1x64x64xbf16> to vector<64x64xbf16>
    %cst_74 = arith.constant dense<0.000000e+00> : vector<128x64xf32>
    %149 = tpu.matmul %146, %148, %cst_74 {dimension_numbers = #tpu.dot_dimension_numbers<[1], [0], [0], [1], [0, 0, 1, 1], [], []>} : vector<128x64xbf16>, vector<64x64xbf16>, vector<128x64xf32> -> vector<128x64xf32>
    %150 = arith.truncf %135 : vector<128x64xf32> to vector<128x64xbf16>
    %c1_75 = arith.constant 1 : index
    %c0_76 = arith.constant 0 : index
    %c0_77 = arith.constant 0 : index
    %151 = vector.load %arg10[%c1_75, %c0_76, %c0_77] : memref<3x64x64xbf16, #tpu.memory_space<vmem>>, vector<1x64x64xbf16>
    %152 = vector.shape_cast %151 : vector<1x64x64xbf16> to vector<64x64xbf16>
    %cst_78 = arith.constant dense<0.000000e+00> : vector<128x64xf32>
    %153 = tpu.matmul %150, %152, %cst_78 {dimension_numbers = #tpu.dot_dimension_numbers<[1], [0], [0], [1], [0, 0, 1, 1], [], []>} : vector<128x64xbf16>, vector<64x64xbf16>, vector<128x64xf32> -> vector<128x64xf32>
    %154 = arith.addf %149, %153 : vector<128x64xf32>
    %155 = arith.truncf %145 : vector<128x64xf32> to vector<128x64xbf16>
    %c2_79 = arith.constant 2 : index
    %c0_80 = arith.constant 0 : index
    %c0_81 = arith.constant 0 : index
    %156 = vector.load %arg10[%c2_79, %c0_80, %c0_81] : memref<3x64x64xbf16, #tpu.memory_space<vmem>>, vector<1x64x64xbf16>
    %157 = vector.shape_cast %156 : vector<1x64x64xbf16> to vector<64x64xbf16>
    %cst_82 = arith.constant dense<0.000000e+00> : vector<128x64xf32>
    %158 = tpu.matmul %155, %157, %cst_82 {dimension_numbers = #tpu.dot_dimension_numbers<[1], [0], [0], [1], [0, 0, 1, 1], [], []>} : vector<128x64xbf16>, vector<64x64xbf16>, vector<128x64xf32> -> vector<128x64xf32>
    %159 = arith.addf %154, %158 : vector<128x64xf32>
    %c0_83 = arith.constant 0 : index
    %c0_84 = arith.constant 0 : index
    %160 = vector.load %arg11[%c0_83, %c0_84] : memref<1x64xf32, #tpu.memory_space<vmem>>, vector<1x64xf32>
    %161 = vector.broadcast %160 : vector<1x64xf32> to vector<128x64xf32>
    %162 = arith.addf %159, %161 : vector<128x64xf32>
    %163 = arith.addf %162, %106 : vector<128x64xf32>
    %cst_85 = arith.constant 0.000000e+00 : f32
    %164 = vector.broadcast %cst_85 : f32 to vector<128x64xf32>
    %165 = arith.maximumf %163, %164 : vector<128x64xf32>
    %c1_i32_86 = arith.constant 1 : i32
    %166 = tpu.dynamic_rotate %165 by %c1_i32_86 dim 0 : vector<128x64xf32>, i32 -> vector<128x64xf32>
    %cst_87 = arith.constant 0.000000e+00 : f32
    %167 = vector.shape_cast %18 : vector<128x1xi1> to vector<128x1xi1>
    %168 = vector.broadcast %167 : vector<128x1xi1> to vector<128x64xi1>
    %169 = vector.broadcast %cst_87 : f32 to vector<128x64xf32>
    %170 = arith.select %168, %166, %169 : vector<128x64xi1>, vector<128x64xf32>
    %c127_i32_88 = arith.constant 127 : i32
    %171 = tpu.dynamic_rotate %165 by %c127_i32_88 dim 0 : vector<128x64xf32>, i32 -> vector<128x64xf32>
    %cst_89 = arith.constant 0.000000e+00 : f32
    %172 = vector.shape_cast %20 : vector<128x1xi1> to vector<128x1xi1>
    %173 = vector.broadcast %172 : vector<128x1xi1> to vector<128x64xi1>
    %174 = vector.broadcast %cst_89 : f32 to vector<128x64xf32>
    %175 = arith.select %173, %171, %174 : vector<128x64xi1>, vector<128x64xf32>
    %176 = arith.truncf %170 : vector<128x64xf32> to vector<128x64xbf16>
    %c0_90 = arith.constant 0 : index
    %c0_91 = arith.constant 0 : index
    %c0_92 = arith.constant 0 : index
    %177 = vector.load %arg12[%c0_90, %c0_91, %c0_92] : memref<3x64x128xbf16, #tpu.memory_space<vmem>>, vector<1x64x128xbf16>
    %178 = vector.shape_cast %177 : vector<1x64x128xbf16> to vector<64x128xbf16>
    %cst_93 = arith.constant dense<0.000000e+00> : vector<128x128xf32>
    %179 = tpu.matmul %176, %178, %cst_93 {dimension_numbers = #tpu.dot_dimension_numbers<[1], [0], [0], [1], [0, 0, 1, 1], [], []>} : vector<128x64xbf16>, vector<64x128xbf16>, vector<128x128xf32> -> vector<128x128xf32>
    %180 = arith.truncf %165 : vector<128x64xf32> to vector<128x64xbf16>
    %c1_94 = arith.constant 1 : index
    %c0_95 = arith.constant 0 : index
    %c0_96 = arith.constant 0 : index
    %181 = vector.load %arg12[%c1_94, %c0_95, %c0_96] : memref<3x64x128xbf16, #tpu.memory_space<vmem>>, vector<1x64x128xbf16>
    %182 = vector.shape_cast %181 : vector<1x64x128xbf16> to vector<64x128xbf16>
    %cst_97 = arith.constant dense<0.000000e+00> : vector<128x128xf32>
    %183 = tpu.matmul %180, %182, %cst_97 {dimension_numbers = #tpu.dot_dimension_numbers<[1], [0], [0], [1], [0, 0, 1, 1], [], []>} : vector<128x64xbf16>, vector<64x128xbf16>, vector<128x128xf32> -> vector<128x128xf32>
    %184 = arith.addf %179, %183 : vector<128x128xf32>
    %185 = arith.truncf %175 : vector<128x64xf32> to vector<128x64xbf16>
    %c2_98 = arith.constant 2 : index
    %c0_99 = arith.constant 0 : index
    %c0_100 = arith.constant 0 : index
    %186 = vector.load %arg12[%c2_98, %c0_99, %c0_100] : memref<3x64x128xbf16, #tpu.memory_space<vmem>>, vector<1x64x128xbf16>
    %187 = vector.shape_cast %186 : vector<1x64x128xbf16> to vector<64x128xbf16>
    %cst_101 = arith.constant dense<0.000000e+00> : vector<128x128xf32>
    %188 = tpu.matmul %185, %187, %cst_101 {dimension_numbers = #tpu.dot_dimension_numbers<[1], [0], [0], [1], [0, 0, 1, 1], [], []>} : vector<128x64xbf16>, vector<64x128xbf16>, vector<128x128xf32> -> vector<128x128xf32>
    %189 = arith.addf %184, %188 : vector<128x128xf32>
    %c0_102 = arith.constant 0 : index
    %c0_103 = arith.constant 0 : index
    %190 = vector.load %arg13[%c0_102, %c0_103] : memref<1x128xf32, #tpu.memory_space<vmem>>, vector<1x128xf32>
    %191 = vector.broadcast %190 : vector<1x128xf32> to vector<128x128xf32>
    %192 = arith.addf %189, %191 : vector<128x128xf32>
    %cst_104 = arith.constant 0.000000e+00 : f32
    %193 = vector.broadcast %cst_104 : f32 to vector<128x128xf32>
    %194 = arith.maximumf %192, %193 : vector<128x128xf32>
    %c1_i32_105 = arith.constant 1 : i32
    %195 = tpu.dynamic_rotate %194 by %c1_i32_105 dim 0 : vector<128x128xf32>, i32 -> vector<128x128xf32>
    %cst_106 = arith.constant 0.000000e+00 : f32
    %196 = vector.shape_cast %18 : vector<128x1xi1> to vector<128x1xi1>
    %197 = vector.broadcast %196 : vector<128x1xi1> to vector<128x128xi1>
    %198 = vector.broadcast %cst_106 : f32 to vector<128x128xf32>
    %199 = arith.select %197, %195, %198 : vector<128x128xi1>, vector<128x128xf32>
    %c127_i32_107 = arith.constant 127 : i32
    %200 = tpu.dynamic_rotate %194 by %c127_i32_107 dim 0 : vector<128x128xf32>, i32 -> vector<128x128xf32>
    %cst_108 = arith.constant 0.000000e+00 : f32
    %201 = vector.shape_cast %20 : vector<128x1xi1> to vector<128x1xi1>
    %202 = vector.broadcast %201 : vector<128x1xi1> to vector<128x128xi1>
    %203 = vector.broadcast %cst_108 : f32 to vector<128x128xf32>
    %204 = arith.select %202, %200, %203 : vector<128x128xi1>, vector<128x128xf32>
    %205 = arith.truncf %199 : vector<128x128xf32> to vector<128x128xbf16>
    %c0_109 = arith.constant 0 : index
    %c0_110 = arith.constant 0 : index
    %c0_111 = arith.constant 0 : index
    %206 = vector.load %arg14[%c0_109, %c0_110, %c0_111] : memref<3x128x256xbf16, #tpu.memory_space<vmem>>, vector<1x128x256xbf16>
    %207 = vector.shape_cast %206 : vector<1x128x256xbf16> to vector<128x256xbf16>
    %cst_112 = arith.constant dense<0.000000e+00> : vector<128x256xf32>
    %208 = tpu.matmul %205, %207, %cst_112 {dimension_numbers = #tpu.dot_dimension_numbers<[1], [0], [0], [1], [0, 0, 1, 1], [], []>} : vector<128x128xbf16>, vector<128x256xbf16>, vector<128x256xf32> -> vector<128x256xf32>
    %209 = arith.truncf %194 : vector<128x128xf32> to vector<128x128xbf16>
    %c1_113 = arith.constant 1 : index
    %c0_114 = arith.constant 0 : index
    %c0_115 = arith.constant 0 : index
    %210 = vector.load %arg14[%c1_113, %c0_114, %c0_115] : memref<3x128x256xbf16, #tpu.memory_space<vmem>>, vector<1x128x256xbf16>
    %211 = vector.shape_cast %210 : vector<1x128x256xbf16> to vector<128x256xbf16>
    %cst_116 = arith.constant dense<0.000000e+00> : vector<128x256xf32>
    %212 = tpu.matmul %209, %211, %cst_116 {dimension_numbers = #tpu.dot_dimension_numbers<[1], [0], [0], [1], [0, 0, 1, 1], [], []>} : vector<128x128xbf16>, vector<128x256xbf16>, vector<128x256xf32> -> vector<128x256xf32>
    %213 = arith.addf %208, %212 : vector<128x256xf32>
    %214 = arith.truncf %204 : vector<128x128xf32> to vector<128x128xbf16>
    %c2_117 = arith.constant 2 : index
    %c0_118 = arith.constant 0 : index
    %c0_119 = arith.constant 0 : index
    %215 = vector.load %arg14[%c2_117, %c0_118, %c0_119] : memref<3x128x256xbf16, #tpu.memory_space<vmem>>, vector<1x128x256xbf16>
    %216 = vector.shape_cast %215 : vector<1x128x256xbf16> to vector<128x256xbf16>
    %cst_120 = arith.constant dense<0.000000e+00> : vector<128x256xf32>
    %217 = tpu.matmul %214, %216, %cst_120 {dimension_numbers = #tpu.dot_dimension_numbers<[1], [0], [0], [1], [0, 0, 1, 1], [], []>} : vector<128x128xbf16>, vector<128x256xbf16>, vector<128x256xf32> -> vector<128x256xf32>
    %218 = arith.addf %213, %217 : vector<128x256xf32>
    %c0_121 = arith.constant 0 : index
    %c0_122 = arith.constant 0 : index
    %219 = vector.load %arg15[%c0_121, %c0_122] : memref<1x256xf32, #tpu.memory_space<vmem>>, vector<1x256xf32>
    %220 = vector.broadcast %219 : vector<1x256xf32> to vector<128x256xf32>
    %221 = arith.addf %218, %220 : vector<128x256xf32>
    %cst_123 = arith.constant 0.000000e+00 : f32
    %222 = vector.broadcast %cst_123 : f32 to vector<128x256xf32>
    %223 = arith.maximumf %221, %222 : vector<128x256xf32>
    %c0_124 = arith.constant 0 : index
    %c0_125 = arith.constant 0 : index
    %224 = vector.load %arg16[%c0_124, %c0_125] : memref<8x128xbf16, #tpu.memory_space<vmem>>, vector<8x128xbf16>
    %225 = arith.truncf %223 : vector<128x256xf32> to vector<128x256xbf16>
    %cst_126 = arith.constant dense<0.000000e+00> : vector<8x256xf32>
    %226 = tpu.matmul %224, %225, %cst_126 {dimension_numbers = #tpu.dot_dimension_numbers<[1], [0], [0], [1], [0, 0, 1, 1], [], []>} : vector<8x128xbf16>, vector<128x256xbf16>, vector<8x256xf32> -> vector<8x256xf32>
    %c0_127 = arith.constant 0 : index
    %c0_128 = arith.constant 0 : index
    %227 = vector.load %arg17[%c0_127, %c0_128] : memref<8x256xf32, #tpu.memory_space<vmem>>, vector<8x256xf32>
    tpu.vector_store %arg17[%c0_127, %c0_128], %226 {strides = array<i32>} : memref<8x256xf32, #tpu.memory_space<vmem>>, vector<8x256xf32>,
    return
  }
  func.func @transform_0(%arg0: i32) -> (i32, i32) {
    %c0_i32 = arith.constant 0 : i32
    %c0_i32_0 = arith.constant 0 : i32
    return %arg0, %c0_i32 : i32, i32
  }
  func.func @transform_1(%arg0: i32) -> (i32, i32) {
    %c0_i32 = arith.constant 0 : i32
    %c0_i32_0 = arith.constant 0 : i32
    %c0_i32_1 = arith.constant 0 : i32
    return %c0_i32, %c0_i32_0 : i32, i32
  }
  func.func @transform_2(%arg0: i32) -> (i32, i32) {
    %c0_i32 = arith.constant 0 : i32
    %c0_i32_0 = arith.constant 0 : i32
    %c0_i32_1 = arith.constant 0 : i32
    return %c0_i32, %c0_i32_0 : i32, i32
  }
  func.func @transform_3(%arg0: i32) -> (i32, i32, i32) {
    %c0_i32 = arith.constant 0 : i32
    %c0_i32_0 = arith.constant 0 : i32
    %c0_i32_1 = arith.constant 0 : i32
    %c0_i32_2 = arith.constant 0 : i32
    return %c0_i32, %c0_i32_0, %c0_i32_1 : i32, i32, i32
  }
  func.func @transform_4(%arg0: i32) -> (i32, i32) {
    %c0_i32 = arith.constant 0 : i32
    %c0_i32_0 = arith.constant 0 : i32
    %c0_i32_1 = arith.constant 0 : i32
    return %c0_i32, %c0_i32_0 : i32, i32
  }
  func.func @transform_5(%arg0: i32) -> (i32, i32, i32) {
    %c0_i32 = arith.constant 0 : i32
    %c0_i32_0 = arith.constant 0 : i32
    %c0_i32_1 = arith.constant 0 : i32
    %c0_i32_2 = arith.constant 0 : i32
    return %c0_i32, %c0_i32_0, %c0_i32_1 : i32, i32, i32
  }
  func.func @transform_6(%arg0: i32) -> (i32, i32) {
    %c0_i32 = arith.constant 0 : i32
    %c0_i32_0 = arith.constant 0 : i32
    %c0_i32_1 = arith.constant 0 : i32
    return %c0_i32, %c0_i32_0 : i32, i32
  }
  func.func @transform_7(%arg0: i32) -> (i32, i32, i32) {
    %c0_i32 = arith.constant 0 : i32
    %c0_i32_0 = arith.constant 0 : i32
    %c0_i32_1 = arith.constant 0 : i32
    %c0_i32_2 = arith.constant 0 : i32
    return %c0_i32, %c0_i32_0, %c0_i32_1 : i32, i32, i32
  }
  func.func @transform_8(%arg0: i32) -> (i32, i32) {
    %c0_i32 = arith.constant 0 : i32
    %c0_i32_0 = arith.constant 0 : i32
    %c0_i32_1 = arith.constant 0 : i32
    return %c0_i32, %c0_i32_0 : i32, i32
  }
  func.func @transform_9(%arg0: i32) -> (i32, i32, i32) {
    %c0_i32 = arith.constant 0 : i32
    %c0_i32_0 = arith.constant 0 : i32
    %c0_i32_1 = arith.constant 0 : i32
    %c0_i32_2 = arith.constant 0 : i32
    return %c0_i32, %c0_i32_0, %c0_i32_1 : i32, i32, i32
  }
  func.func @transform_10(%arg0: i32) -> (i32, i32) {
    %c0_i32 = arith.constant 0 : i32
    %c0_i32_0 = arith.constant 0 : i32
    %c0_i32_1 = arith.constant 0 : i32
    return %c0_i32, %c0_i32_0 : i32, i32
  }
  func.func @transform_11(%arg0: i32) -> (i32, i32, i32) {
    %c0_i32 = arith.constant 0 : i32
    %c0_i32_0 = arith.constant 0 : i32
    %c0_i32_1 = arith.constant 0 : i32
    %c0_i32_2 = arith.constant 0 : i32
    return %c0_i32, %c0_i32_0, %c0_i32_1 : i32, i32, i32
  }
  func.func @transform_12(%arg0: i32) -> (i32, i32) {
    %c0_i32 = arith.constant 0 : i32
    %c0_i32_0 = arith.constant 0 : i32
    %c0_i32_1 = arith.constant 0 : i32
    return %c0_i32, %c0_i32_0 : i32, i32
  }
  func.func @transform_13(%arg0: i32) -> (i32, i32, i32) {
    %c0_i32 = arith.constant 0 : i32
    %c0_i32_0 = arith.constant 0 : i32
    %c0_i32_1 = arith.constant 0 : i32
    %c0_i32_2 = arith.constant 0 : i32
    return %c0_i32, %c0_i32_0, %c0_i32_1 : i32, i32, i32
  }
  func.func @transform_14(%arg0: i32) -> (i32, i32) {
    %c0_i32 = arith.constant 0 : i32
    %c0_i32_0 = arith.constant 0 : i32
    %c0_i32_1 = arith.constant 0 : i32
    return %c0_i32, %c0_i32_0 : i32, i32
  }
  func.func @transform_15(%arg0: i32) -> (i32, i32) {
    %c0_i32 = arith.constant 0 : i32
    %c0_i32_0 = arith.constant 0 : i32
    %c0_i32_1 = arith.constant 0 : i32
    return %c0_i32, %c0_i32_0 : i32, i32
  }
  func.func @transform_16(%arg0: i32) -> (i32, i32) {
    %c0_i32 = arith.constant 0 : i32
    %c0_i32_0 = arith.constant 0 : i32
    return %arg0, %c0_i32 : i32, i32
  }
}

</mosaic_0001>

<llo_original>
// kernel: tpu_custom_call.1
$region0: #{tpu_custom_call.1}
  #allocation0 [shape = 'u32[]', space=smem, size = 0x4, offset = 0x4, fixed_abs, tag = 'smem constant byte address 0x4 - core index']
  #allocation1 [shape = 'u32[72,128]{1,0:T(1,128)}', space=vmem, size = 0x9000, scoped, tag = 'internal scratch']
  %s0 = inlined_call_operand.vmem [shape: f32[256,1], index: 0, kind: input, shape index: {}]
  %s1 = inlined_call_operand.vmem [shape: f32[3,64], index: 1, kind: input, shape index: {}]
  %s2 = inlined_call_operand.vmem [shape: f32[1,64], index: 2, kind: input, shape index: {}]
  %s3 = inlined_call_operand.vmem [shape: bf16[3,64,64], index: 3, kind: input, shape index: {}]
  %s4 = inlined_call_operand.vmem [shape: f32[1,64], index: 4, kind: input, shape index: {}]
  %s5 = inlined_call_operand.vmem [shape: bf16[3,64,64], index: 5, kind: input, shape index: {}]
  %s6 = inlined_call_operand.vmem [shape: f32[1,64], index: 6, kind: input, shape index: {}]
  %s7 = inlined_call_operand.hbm [shape: bf16[3,64,64], index: 7, kind: input, shape index: {}]
  %s8 = inlined_call_operand.vmem [shape: f32[1,64], index: 8, kind: input, shape index: {}]
  %s9 = inlined_call_operand.hbm [shape: bf16[3,64,64], index: 9, kind: input, shape index: {}]
  %s10 = inlined_call_operand.vmem [shape: f32[1,64], index: 10, kind: input, shape index: {}]
  %s11 = inlined_call_operand.hbm [shape: bf16[3,64,128], index: 11, kind: input, shape index: {}]
  %s12 = inlined_call_operand.vmem [shape: f32[1,128], index: 12, kind: input, shape index: {}]
  %s13 = inlined_call_operand.hbm [shape: bf16[3,128,256], index: 13, kind: input, shape index: {}]
  %s14 = inlined_call_operand.vmem [shape: f32[1,256], index: 14, kind: input, shape index: {}]
  %s15 = inlined_call_operand.vmem [shape: bf16[8,128], index: 15, kind: input, shape index: {}]
  %s16 = inlined_call_operand.hbm [shape: f32[16,256], index: 16, kind: output, shape index: {}]
  %s17 = sld [smem:[#allocation0]]
  $region113: #{tpu_custom_call.1} parent=0
    _
  %s19 = ssub.s32 1, %s17
  %s20 = scalar_select 0, %s19, %s17
  $region1: #{tpu_custom_call.1} parent=0
    #allocation2 [shape = 'u8[49152]{0}', space=vmem, size = 0xc000, scoped, tag = 'input window, operand 7, single buffered']
    #allocation3 [shape = 's32[2]{0}', space=sflag, size = 0x8, scoped, tag = 'scoped memory for tpu_custom_call.1']
    #allocation4 [shape = 's32[2]{0}', space=sflag, size = 0x8, scoped, tag = 'scoped memory for tpu_custom_call.1']
    #allocation5 [shape = 'u8[49152]{0}', space=vmem, size = 0xc000, scoped, tag = 'input window, operand 9, single buffered']
    #allocation6 [shape = 's32[1]{0}', space=sflag, size = 0x4, scoped, tag = 'scoped memory for tpu_custom_call.1']
    #allocation7 [shape = 'u8[49152]{0}', space=vmem, size = 0xc000, scoped, tag = 'input window, operand 11, single buffered']
    #allocation8 [shape = 'u8[196608]{0}', space=vmem, size = 0x30000, scoped, tag = 'input window, operand 13, single buffered']
    #allocation9 [shape = 's32[1]{0}', space=sflag, size = 0x4, scoped, tag = 'scoped memory for tpu_custom_call.1']
    #allocation10 [shape = 'u8[16384]{0}', space=vmem, size = 0x4000, scoped, tag = 'output window, operand 0']
    %21 = vsyncpa [#allocation3], 0
    %22 = vsyncpa [#allocation6], 0
    %23 = vsyncpa [#allocation9], 0
    %24 = vsyncpa [#allocation4], 0
    %s25 = scalar_lea.sflag [#allocation4], 1
    %26 = vsyncpa %s25, 0
    loop: start=0, step=1, limit=4
    $region2: #{tpu_custom_call.1} parent=1 // loop_pre_header
      _
    $region3: #{tpu_custom_call.1} parent=1 // loop_header
      %s28 = sphi 0, %s32
      %p29 = scmp.ge.s32.totalorder %s28, 4
      %s38 = sphi 0, %s40
      %s41 = sphi 0, %s38
      %s42 = sphi 0, %s41
      %s58 = sphi 0, %s42
      %s62 = sphi 0, %s62
      %s64 = sphi 0, %s62
      %s65 = sphi 0, %s64
      %s79 = sphi 0, %s65
      %s83 = sphi 0, %s83
      %s85 = sphi 0, %s83
      %s86 = sphi 0, %s85
      %s100 = sphi 0, %s86
      %s104 = sphi 0, %s104
      %s106 = sphi 0, %s104
      %s107 = sphi 0, %s106
      %s121 = sphi 0, %s107
      %s125 = sphi 0, %s125
      %s127 = sphi 0, %s125
      %s128 = sphi 0, %s127
      %s142 = sphi 0, %s128
      %s146 = sphi 0, %s146
      %s148 = sphi 0, %s146
      %s149 = sphi 0, %s148
      %s163 = sphi 0, %s149
      %s167 = sphi 0, %s167
      %s169 = sphi 0, %s167
      %s170 = sphi 0, %s169
      %s184 = sphi 0, %s170
      %s188 = sphi 0, %s188
      %s190 = sphi 0, %s188
      %s191 = sphi 0, %s190
      %s205 = sphi 0, %s191
      %s209 = sphi 0, %s209
      %s211 = sphi 0, %s209
      %s212 = sphi 0, %s211
      %s226 = sphi 0, %s212
      %s230 = sphi 0, %s230
      %s232 = sphi 0, %s230
      %s233 = sphi 0, %s232
      %s247 = sphi 0, %s233
      %s251 = sphi 0, %s251
      %s253 = sphi 0, %s251
      %s254 = sphi 0, %s253
      %s268 = sphi 0, %s254
      %s272 = sphi 0, %s272
      %s274 = sphi 0, %s272
      %s275 = sphi 0, %s274
      %s289 = sphi 0, %s275
      %s293 = sphi 0, %s293
      %s295 = sphi 0, %s293
      %s296 = sphi 0, %s295
      %s310 = sphi 0, %s296
      %s314 = sphi 0, %s314
      %s316 = sphi 0, %s314
      %s317 = sphi 0, %s316
      %s331 = sphi 0, %s317
      %s335 = sphi 0, %s335
      %s337 = sphi 0, %s335
      %s338 = sphi 0, %s337
      %s352 = sphi 0, %s338
      %s356 = sphi 0, %s356
      %s358 = sphi 0, %s356
      %s359 = sphi 0, %s358
      %s373 = sphi 0, %s359
      %s379 = sphi 0, %s381
      %s382 = sphi 0, %s379
      %s383 = sphi 0, %s382
      %s399 = sphi 0, %s383
    $region4: #{tpu_custom_call.1} parent=1 // loop_header_branch
      %31 = sbr.rel (%p29) target = $region8
    $region5: #{tpu_custom_call.1} parent=1 // loop_body
      %s33 = ssub.s32 %s28, 1
      %s34 = ssub.s32 %s28, 2
      %s35 = sadd.s32 %s28, 1
      %s36 = ssub.s32 %s28, %s35
      %p37 = scmp.eq.s32.totalorder %s36, 0
      %s39 = sadd.s32 %s38, 1
      %s40 = scalar_select %p37, %s38, %s39
      %p43 = pneg %p37
      %p44 = scmp.eq.s32.totalorder %s28, 1
      %p45 = por %p43, %p44
      %p46 = scmp.ne.s32.totalorder %s38, %s41
      %p47 = scmp.eq.s32.totalorder %s28, 0
      %p48 = por %p46, %p47
      %p49 = scmp.ne.s32.totalorder %s38, %s41
      %p50 = scmp.eq.s32.totalorder %s33, 1
      %p51 = por %p49, %p50
      %p52 = scmp.ne.s32.totalorder %s41, %s42
      %p53 = scmp.eq.s32.totalorder %s33, 0
      %p54 = por %p52, %p53
      %p55 = scmp.ne.s32.totalorder %s41, %s42
      %p56 = scmp.eq.s32.totalorder %s34, 1
      %p57 = por %p55, %p56
      %p59 = scmp.ne.s32.totalorder %s42, %s58
      %p60 = scmp.eq.s32.totalorder %s34, 0
      %p61 = por %p59, %p60
      %s63 = sadd.s32 %s62, 1
      %p66 = scmp.eq.s32.totalorder %s28, 1
      %p67 = scmp.ne.s32.totalorder %s62, %s64
      %p68 = scmp.eq.s32.totalorder %s28, 0
      %p69 = por %p67, %p68
      %p70 = scmp.ne.s32.totalorder %s62, %s64
      %p71 = scmp.eq.s32.totalorder %s33, 1
      %p72 = por %p70, %p71
      %p73 = scmp.ne.s32.totalorder %s64, %s65
      %p74 = scmp.eq.s32.totalorder %s33, 0
      %p75 = por %p73, %p74
      %p76 = scmp.ne.s32.totalorder %s64, %s65
      %p77 = scmp.eq.s32.totalorder %s34, 1
      %p78 = por %p76, %p77
      %p80 = scmp.ne.s32.totalorder %s65, %s79
      %p81 = scmp.eq.s32.totalorder %s34, 0
      %p82 = por %p80, %p81
      %s84 = sadd.s32 %s83, 1
      %p87 = scmp.eq.s32.totalorder %s28, 1
      %p88 = scmp.ne.s32.totalorder %s83, %s85
      %p89 = scmp.eq.s32.totalorder %s28, 0
      %p90 = por %p88, %p89
      %p91 = scmp.ne.s32.totalorder %s83, %s85
      %p92 = scmp.eq.s32.totalorder %s33, 1
      %p93 = por %p91, %p92
      %p94 = scmp.ne.s32.totalorder %s85, %s86
      %p95 = scmp.eq.s32.totalorder %s33, 0
      %p96 = por %p94, %p95
      %p97 = scmp.ne.s32.totalorder %s85, %s86
      %p98 = scmp.eq.s32.totalorder %s34, 1
      %p99 = por %p97, %p98
      %p101 = scmp.ne.s32.totalorder %s86, %s100
      %p102 = scmp.eq.s32.totalorder %s34, 0
      %p103 = por %p101, %p102
      %s105 = sadd.s32 %s104, 1
      %p108 = scmp.eq.s32.totalorder %s28, 1
      %p109 = scmp.ne.s32.totalorder %s104, %s106
      %p110 = scmp.eq.s32.totalorder %s28, 0
      %p111 = por %p109, %p110
      %p112 = scmp.ne.s32.totalorder %s104, %s106
      %p113 = scmp.eq.s32.totalorder %s33, 1
      %p114 = por %p112, %p113
      %p115 = scmp.ne.s32.totalorder %s106, %s107
      %p116 = scmp.eq.s32.totalorder %s33, 0
      %p117 = por %p115, %p116
      %p118 = scmp.ne.s32.totalorder %s106, %s107
      %p119 = scmp.eq.s32.totalorder %s34, 1
      %p120 = por %p118, %p119
      %p122 = scmp.ne.s32.totalorder %s107, %s121
      %p123 = scmp.eq.s32.totalorder %s34, 0
      %p124 = por %p122, %p123
      %s126 = sadd.s32 %s125, 1
      %p129 = scmp.eq.s32.totalorder %s28, 1
      %p130 = scmp.ne.s32.totalorder %s125, %s127
      %p131 = scmp.eq.s32.totalorder %s28, 0
      %p132 = por %p130, %p131
      %p133 = scmp.ne.s32.totalorder %s125, %s127
      %p134 = scmp.eq.s32.totalorder %s33, 1
      %p135 = por %p133, %p134
      %p136 = scmp.ne.s32.totalorder %s127, %s128
      %p137 = scmp.eq.s32.totalorder %s33, 0
      %p138 = por %p136, %p137
      %p139 = scmp.ne.s32.totalorder %s127, %s128
      %p140 = scmp.eq.s32.totalorder %s34, 1
      %p141 = por %p139, %p140
      %p143 = scmp.ne.s32.totalorder %s128, %s142
      %p144 = scmp.eq.s32.totalorder %s34, 0
      %p145 = por %p143, %p144
      %s147 = sadd.s32 %s146, 1
      %p150 = scmp.eq.s32.totalorder %s28, 1
      %p151 = scmp.ne.s32.totalorder %s146, %s148
      %p152 = scmp.eq.s32.totalorder %s28, 0
      %p153 = por %p151, %p152
      %p154 = scmp.ne.s32.totalorder %s146, %s148
      %p155 = scmp.eq.s32.totalorder %s33, 1
      %p156 = por %p154, %p155
      %p157 = scmp.ne.s32.totalorder %s148, %s149
      %p158 = scmp.eq.s32.totalorder %s33, 0
      %p159 = por %p157, %p158
      %p160 = scmp.ne.s32.totalorder %s148, %s149
      %p161 = scmp.eq.s32.totalorder %s34, 1
      %p162 = por %p160, %p161
      %p164 = scmp.ne.s32.totalorder %s149, %s163
      %p165 = scmp.eq.s32.totalorder %s34, 0
      %p166 = por %p164, %p165
      %s168 = sadd.s32 %s167, 1
      %p171 = scmp.eq.s32.totalorder %s28, 1
      %p172 = scmp.ne.s32.totalorder %s167, %s169
      %p173 = scmp.eq.s32.totalorder %s28, 0
      %p174 = por %p172, %p173
      %p175 = scmp.ne.s32.totalorder %s167, %s169
      %p176 = scmp.eq.s32.totalorder %s33, 1
      %p177 = por %p175, %p176
      %p178 = scmp.ne.s32.totalorder %s169, %s170
      %p179 = scmp.eq.s32.totalorder %s33, 0
      %p180 = por %p178, %p179
      %p181 = scmp.ne.s32.totalorder %s169, %s170
      %p182 = scmp.eq.s32.totalorder %s34, 1
      %p183 = por %p181, %p182
      %p185 = scmp.ne.s32.totalorder %s170, %s184
      %p186 = scmp.eq.s32.totalorder %s34, 0
      %p187 = por %p185, %p186
      %s189 = sadd.s32 %s188, 1
      %p192 = scmp.eq.s32.totalorder %s28, 1
      %p193 = scmp.ne.s32.totalorder %s188, %s190
      %p194 = scmp.eq.s32.totalorder %s28, 0
      %p195 = por %p193, %p194
      %p196 = scmp.ne.s32.totalorder %s188, %s190
      %p197 = scmp.eq.s32.totalorder %s33, 1
      %p198 = por %p196, %p197
      %p199 = scmp.ne.s32.totalorder %s190, %s191
      %p200 = scmp.eq.s32.totalorder %s33, 0
      %p201 = por %p199, %p200
      %p202 = scmp.ne.s32.totalorder %s190, %s191
      %p203 = scmp.eq.s32.totalorder %s34, 1
      %p204 = por %p202, %p203
      %p206 = scmp.ne.s32.totalorder %s191, %s205
      %p207 = scmp.eq.s32.totalorder %s34, 0
      %p208 = por %p206, %p207
      %s210 = sadd.s32 %s209, 1
      %p213 = scmp.eq.s32.totalorder %s28, 1
      %p214 = scmp.ne.s32.totalorder %s209, %s211
      %p215 = scmp.eq.s32.totalorder %s28, 0
      %p216 = por %p214, %p215
      %p217 = scmp.ne.s32.totalorder %s209, %s211
      %p218 = scmp.eq.s32.totalorder %s33, 1
      %p219 = por %p217, %p218
      %p220 = scmp.ne.s32.totalorder %s211, %s212
      %p221 = scmp.eq.s32.totalorder %s33, 0
      %p222 = por %p220, %p221
      %p223 = scmp.ne.s32.totalorder %s211, %s212
      %p224 = scmp.eq.s32.totalorder %s34, 1
      %p225 = por %p223, %p224
      %p227 = scmp.ne.s32.totalorder %s212, %s226
      %p228 = scmp.eq.s32.totalorder %s34, 0
      %p229 = por %p227, %p228
      %s231 = sadd.s32 %s230, 1
      %p234 = scmp.eq.s32.totalorder %s28, 1
      %p235 = scmp.ne.s32.totalorder %s230, %s232
      %p236 = scmp.eq.s32.totalorder %s28, 0
      %p237 = por %p235, %p236
      %p238 = scmp.ne.s32.totalorder %s230, %s232
      %p239 = scmp.eq.s32.totalorder %s33, 1
      %p240 = por %p238, %p239
      %p241 = scmp.ne.s32.totalorder %s232, %s233
      %p242 = scmp.eq.s32.totalorder %s33, 0
      %p243 = por %p241, %p242
      %p244 = scmp.ne.s32.totalorder %s232, %s233
      %p245 = scmp.eq.s32.totalorder %s34, 1
      %p246 = por %p244, %p245
      %p248 = scmp.ne.s32.totalorder %s233, %s247
      %p249 = scmp.eq.s32.totalorder %s34, 0
      %p250 = por %p248, %p249
      %s252 = sadd.s32 %s251, 1
      %p255 = scmp.eq.s32.totalorder %s28, 1
      %p256 = scmp.ne.s32.totalorder %s251, %s253
      %p257 = scmp.eq.s32.totalorder %s28, 0
      %p258 = por %p256, %p257
      %p259 = scmp.ne.s32.totalorder %s251, %s253
      %p260 = scmp.eq.s32.totalorder %s33, 1
      %p261 = por %p259, %p260
      %p262 = scmp.ne.s32.totalorder %s253, %s254
      %p263 = scmp.eq.s32.totalorder %s33, 0
      %p264 = por %p262, %p263
      %p265 = scmp.ne.s32.totalorder %s253, %s254
      %p266 = scmp.eq.s32.totalorder %s34, 1
      %p267 = por %p265, %p266
      %p269 = scmp.ne.s32.totalorder %s254, %s268
      %p270 = scmp.eq.s32.totalorder %s34, 0
      %p271 = por %p269, %p270
      %s273 = sadd.s32 %s272, 1
      %p276 = scmp.eq.s32.totalorder %s28, 1
      %p277 = scmp.ne.s32.totalorder %s272, %s274
      %p278 = scmp.eq.s32.totalorder %s28, 0
      %p279 = por %p277, %p278
      %p280 = scmp.ne.s32.totalorder %s272, %s274
      %p281 = scmp.eq.s32.totalorder %s33, 1
      %p282 = por %p280, %p281
      %p283 = scmp.ne.s32.totalorder %s274, %s275
      %p284 = scmp.eq.s32.totalorder %s33, 0
      %p285 = por %p283, %p284
      %p286 = scmp.ne.s32.totalorder %s274, %s275
      %p287 = scmp.eq.s32.totalorder %s34, 1
      %p288 = por %p286, %p287
      %p290 = scmp.ne.s32.totalorder %s275, %s289
      %p291 = scmp.eq.s32.totalorder %s34, 0
      %p292 = por %p290, %p291
      %s294 = sadd.s32 %s293, 1
      %p297 = scmp.eq.s32.totalorder %s28, 1
      %p298 = scmp.ne.s32.totalorder %s293, %s295
      %p299 = scmp.eq.s32.totalorder %s28, 0
      %p300 = por %p298, %p299
      %p301 = scmp.ne.s32.totalorder %s293, %s295
      %p302 = scmp.eq.s32.totalorder %s33, 1
      %p303 = por %p301, %p302
      %p304 = scmp.ne.s32.totalorder %s295, %s296
      %p305 = scmp.eq.s32.totalorder %s33, 0
      %p306 = por %p304, %p305
      %p307 = scmp.ne.s32.totalorder %s295, %s296
      %p308 = scmp.eq.s32.totalorder %s34, 1
      %p309 = por %p307, %p308
      %p311 = scmp.ne.s32.totalorder %s296, %s310
      %p312 = scmp.eq.s32.totalorder %s34, 0
      %p313 = por %p311, %p312
      %s315 = sadd.s32 %s314, 1
      %p318 = scmp.eq.s32.totalorder %s28, 1
      %p319 = scmp.ne.s32.totalorder %s314, %s316
      %p320 = scmp.eq.s32.totalorder %s28, 0
      %p321 = por %p319, %p320
      %p322 = scmp.ne.s32.totalorder %s314, %s316
      %p323 = scmp.eq.s32.totalorder %s33, 1
      %p324 = por %p322, %p323
      %p325 = scmp.ne.s32.totalorder %s316, %s317
      %p326 = scmp.eq.s32.totalorder %s33, 0
      %p327 = por %p325, %p326
      %p328 = scmp.ne.s32.totalorder %s316, %s317
      %p329 = scmp.eq.s32.totalorder %s34, 1
      %p330 = por %p328, %p329
      %p332 = scmp.ne.s32.totalorder %s317, %s331
      %p333 = scmp.eq.s32.totalorder %s34, 0
      %p334 = por %p332, %p333
      %s336 = sadd.s32 %s335, 1
      %p339 = scmp.eq.s32.totalorder %s28, 1
      %p340 = scmp.ne.s32.totalorder %s335, %s337
      %p341 = scmp.eq.s32.totalorder %s28, 0
      %p342 = por %p340, %p341
      %p343 = scmp.ne.s32.totalorder %s335, %s337
      %p344 = scmp.eq.s32.totalorder %s33, 1
      %p345 = por %p343, %p344
      %p346 = scmp.ne.s32.totalorder %s337, %s338
      %p347 = scmp.eq.s32.totalorder %s33, 0
      %p348 = por %p346, %p347
      %p349 = scmp.ne.s32.totalorder %s337, %s338
      %p350 = scmp.eq.s32.totalorder %s34, 1
      %p351 = por %p349, %p350
      %p353 = scmp.ne.s32.totalorder %s338, %s352
      %p354 = scmp.eq.s32.totalorder %s34, 0
      %p355 = por %p353, %p354
      %s357 = sadd.s32 %s356, 1
      %p360 = scmp.eq.s32.totalorder %s28, 1
      %p361 = scmp.ne.s32.totalorder %s356, %s358
      %p362 = scmp.eq.s32.totalorder %s28, 0
      %p363 = por %p361, %p362
      %p364 = scmp.ne.s32.totalorder %s356, %s358
      %p365 = scmp.eq.s32.totalorder %s33, 1
      %p366 = por %p364, %p365
      %p367 = scmp.ne.s32.totalorder %s358, %s359
      %p368 = scmp.eq.s32.totalorder %s33, 0
      %p369 = por %p367, %p368
      %p370 = scmp.ne.s32.totalorder %s358, %s359
      %p371 = scmp.eq.s32.totalorder %s34, 1
      %p372 = por %p370, %p371
      %p374 = scmp.ne.s32.totalorder %s359, %s373
      %p375 = scmp.eq.s32.totalorder %s34, 0
      %p376 = por %p374, %p375
      %s377 = ssub.s32 %s28, %s35
      %p378 = scmp.eq.s32.totalorder %s377, 0
      %s380 = sadd.s32 %s379, 1
      %s381 = scalar_select %p378, %s379, %s380
      %p384 = pneg %p378
      %p385 = scmp.eq.s32.totalorder %s28, 1
      %p386 = por %p384, %p385
      %p387 = scmp.ne.s32.totalorder %s379, %s382
      %p388 = scmp.eq.s32.totalorder %s28, 0
      %p389 = por %p387, %p388
      %p390 = scmp.ne.s32.totalorder %s379, %s382
      %p391 = scmp.eq.s32.totalorder %s33, 1
      %p392 = por %p390, %p391
      %p393 = scmp.ne.s32.totalorder %s382, %s383
      %p394 = scmp.eq.s32.totalorder %s33, 0
      %p395 = por %p393, %p394
      %p396 = scmp.ne.s32.totalorder %s382, %s383
      %p397 = scmp.eq.s32.totalorder %s34, 1
      %p398 = por %p396, %p397
      %p400 = scmp.ne.s32.totalorder %s383, %s399
      %p401 = scmp.eq.s32.totalorder %s34, 0
      %p402 = por %p400, %p401
      %p403 = scmp.le.s32.totalorder 1, %s28
      %p404 = scmp.lt.s32.totalorder %s28, 3
      %p405 = pnand %p403, %p404
      %p406 = pneg %p405
      // Predicated region
      $region9: #{tpu_custom_call.1} parent=5 // pred_check
        _
      $region10: #{tpu_custom_call.1} parent=5 // pred_check_branch
        %408 = sbr.rel (%p405) target = $region12
      $region11: #{tpu_custom_call.1} parent=5 // pred_region
        %s409 = ssub.s32 %s28, 1
        // Predicated region
        $region13: #{tpu_custom_call.1} parent=11 // pred_check
          %p410 = pneg %p75
        $region14: #{tpu_custom_call.1} parent=11 // pred_check_branch
          %412 = sbr.rel (%p410) target = $region16
        $region15: #{tpu_custom_call.1} parent=11 // pred_region
          _
        $region16: #{tpu_custom_call.1} parent=11 // pred_fallthru
          _
        // Predicated region
        $region17: #{tpu_custom_call.1} parent=11 // pred_check
          %p413 = pneg %p96
        $region18: #{tpu_custom_call.1} parent=11 // pred_check_branch
          %415 = sbr.rel (%p413) target = $region20
        $region19: #{tpu_custom_call.1} parent=11 // pred_region
          _
        $region20: #{tpu_custom_call.1} parent=11 // pred_fallthru
          _
        // Predicated region
        $region21: #{tpu_custom_call.1} parent=11 // pred_check
          %p416 = pneg %p117
        $region22: #{tpu_custom_call.1} parent=11 // pred_check_branch
          %418 = sbr.rel (%p416) target = $region24
        $region23: #{tpu_custom_call.1} parent=11 // pred_region
          _
        $region24: #{tpu_custom_call.1} parent=11 // pred_fallthru
          _
        // Predicated region
        $region25: #{tpu_custom_call.1} parent=11 // pred_check
          %p419 = pneg %p138
        $region26: #{tpu_custom_call.1} parent=11 // pred_check_branch
          %421 = sbr.rel (%p419) target = $region28
        $region27: #{tpu_custom_call.1} parent=11 // pred_region
          _
        $region28: #{tpu_custom_call.1} parent=11 // pred_fallthru
          _
        // Predicated region
        $region29: #{tpu_custom_call.1} parent=11 // pred_check
          %p422 = pneg %p159
        $region30: #{tpu_custom_call.1} parent=11 // pred_check_branch
          %424 = sbr.rel (%p422) target = $region32
        $region31: #{tpu_custom_call.1} parent=11 // pred_region
          _
        $region32: #{tpu_custom_call.1} parent=11 // pred_fallthru
          _
        // Predicated region
        $region33: #{tpu_custom_call.1} parent=11 // pred_check
          %p425 = pneg %p180
        $region34: #{tpu_custom_call.1} parent=11 // pred_check_branch
          %427 = sbr.rel (%p425) target = $region36
        $region35: #{tpu_custom_call.1} parent=11 // pred_region
          _
        $region36: #{tpu_custom_call.1} parent=11 // pred_fallthru
          _
        // Predicated region
        $region37: #{tpu_custom_call.1} parent=11 // pred_check
          %p428 = pneg %p201
        $region38: #{tpu_custom_call.1} parent=11 // pred_check_branch
          %430 = sbr.rel (%p428) target = $region40
        $region39: #{tpu_custom_call.1} parent=11 // pred_region
          %432 = vsyncadd [#allocation3], 0
          %s433 = sshll.u32 %s7, 4
          %s434 = int_to_ptr.hbm [resolvable:$true] %s433
          %s435 = sshll.u32 [#allocation2], 4
          %s436 = int_to_ptr.vmem [resolvable:$true] %s435
          %441 = dma.hbm_to_vmem [thread:$0]  %s434, 1536, %s436, [#allocation3], 64, 64, 4
        $region40: #{tpu_custom_call.1} parent=11 // pred_fallthru
          _
        // Predicated region
        $region41: #{tpu_custom_call.1} parent=11 // pred_check
          %p442 = pneg %p222
        $region42: #{tpu_custom_call.1} parent=11 // pred_check_branch
          %444 = sbr.rel (%p442) target = $region44
        $region43: #{tpu_custom_call.1} parent=11 // pred_region
          _
        $region44: #{tpu_custom_call.1} parent=11 // pred_fallthru
          _
        // Predicated region
        $region45: #{tpu_custom_call.1} parent=11 // pred_check
          %p445 = pneg %p243
        $region46: #{tpu_custom_call.1} parent=11 // pred_check_branch
          %447 = sbr.rel (%p445) target = $region48
        $region47: #{tpu_custom_call.1} parent=11 // pred_region
          %449 = vsyncadd [#allocation6], 0
          %s450 = sshll.u32 %s9, 4
          %s451 = int_to_ptr.hbm [resolvable:$true] %s450
          %s452 = sshll.u32 [#allocation5], 4
          %s453 = int_to_ptr.vmem [resolvable:$true] %s452
          %458 = dma.hbm_to_vmem [thread:$0]  %s451, 1536, %s453, [#allocation6], 64, 64, 4
        $region48: #{tpu_custom_call.1} parent=11 // pred_fallthru
          _
        // Predicated region
        $region49: #{tpu_custom_call.1} parent=11 // pred_check
          %p459 = pneg %p264
        $region50: #{tpu_custom_call.1} parent=11 // pred_check_branch
          %461 = sbr.rel (%p459) target = $region52
        $region51: #{tpu_custom_call.1} parent=11 // pred_region
          _
        $region52: #{tpu_custom_call.1} parent=11 // pred_fallthru
          _
        // Predicated region
        $region53: #{tpu_custom_call.1} parent=11 // pred_check
          %p462 = pneg %p285
        $region54: #{tpu_custom_call.1} parent=11 // pred_check_branch
          %464 = sbr.rel (%p462) target = $region56
        $region55: #{tpu_custom_call.1} parent=11 // pred_region
          %466 = vsyncadd [#allocation6], 0
          %s467 = sshll.u32 %s11, 4
          %s468 = int_to_ptr.hbm [resolvable:$true] %s467
          %s469 = sshll.u32 [#allocation7], 4
          %s470 = int_to_ptr.vmem [resolvable:$true] %s469
          %475 = dma.hbm_to_vmem [thread:$0]  %s468, 1536, %s470, [#allocation6], 64, 64, 4
        $region56: #{tpu_custom_call.1} parent=11 // pred_fallthru
          _
        // Predicated region
        $region57: #{tpu_custom_call.1} parent=11 // pred_check
          %p476 = pneg %p306
        $region58: #{tpu_custom_call.1} parent=11 // pred_check_branch
          %478 = sbr.rel (%p476) target = $region60
        $region59: #{tpu_custom_call.1} parent=11 // pred_region
          _
        $region60: #{tpu_custom_call.1} parent=11 // pred_fallthru
          _
        // Predicated region
        $region61: #{tpu_custom_call.1} parent=11 // pred_check
          %p479 = pneg %p327
        $region62: #{tpu_custom_call.1} parent=11 // pred_check_branch
          %481 = sbr.rel (%p479) target = $region64
        $region63: #{tpu_custom_call.1} parent=11 // pred_region
          %483 = vsyncadd [#allocation9], 0
          %s484 = sshll.u32 %s13, 4
          %s485 = int_to_ptr.hbm [resolvable:$true] %s484
          %s486 = sshll.u32 [#allocation8], 4
          %s487 = int_to_ptr.vmem [resolvable:$true] %s486
          %492 = dma.hbm_to_vmem [thread:$0]  %s485, 6144, %s487, [#allocation9], 128, 128, 8
        $region64: #{tpu_custom_call.1} parent=11 // pred_fallthru
          _
        // Predicated region
        $region65: #{tpu_custom_call.1} parent=11 // pred_check
          %p493 = pneg %p348
        $region66: #{tpu_custom_call.1} parent=11 // pred_check_branch
          %495 = sbr.rel (%p493) target = $region68
        $region67: #{tpu_custom_call.1} parent=11 // pred_region
          _
        $region68: #{tpu_custom_call.1} parent=11 // pred_fallthru
          _
        // Predicated region
        $region69: #{tpu_custom_call.1} parent=11 // pred_check
          %p496 = pneg %p369
        $region70: #{tpu_custom_call.1} parent=11 // pred_check_branch
          %498 = sbr.rel (%p496) target = $region72
        $region71: #{tpu_custom_call.1} parent=11 // pred_region
          _
        $region72: #{tpu_custom_call.1} parent=11 // pred_fallthru
          _
      $region12: #{tpu_custom_call.1} parent=5 // pred_fallthru
        _
      %p499 = scmp.lt.s32.totalorder %s28, 2
      // Predicated region
      $region73: #{tpu_custom_call.1} parent=5 // pred_check
        %p500 = pneg %p499
      $region74: #{tpu_custom_call.1} parent=5 // pred_check_branch
        %502 = sbr.rel (%p500) target = $region76
      $region75: #{tpu_custom_call.1} parent=5 // pred_region
        // Predicated region
        $region77: #{tpu_custom_call.1} parent=75 // pred_check
          %p503 = pneg %p48
        $region78: #{tpu_custom_call.1} parent=75 // pred_check_branch
          %505 = sbr.rel (%p503) target = $region80
        $region79: #{tpu_custom_call.1} parent=75 // pred_region
          %s506 = smul.u32 16, %s28
          %p507 = scmp.lt.s32.totalorder %s506, 31
          %s508 = scalar_select %p507, %s506, 31
          %s509 = smul.addr %s508, 8
          %s510 = scalar_lea.vmem %s0, %s509
          %s511 = smul.u32 16, %s28
        $region80: #{tpu_custom_call.1} parent=75 // pred_fallthru
          _
      $region76: #{tpu_custom_call.1} parent=5 // pred_fallthru
        _
      %p512 = scmp.le.s32.totalorder 1, %s28
      %p513 = scmp.lt.s32.totalorder %s28, 3
      %p514 = pnand %p512, %p513
      %p515 = pneg %p514
      // Predicated region
      $region81: #{tpu_custom_call.1} parent=5 // pred_check
        _
      $region82: #{tpu_custom_call.1} parent=5 // pred_check_branch
        %517 = sbr.rel (%p514) target = $region84
      $region83: #{tpu_custom_call.1} parent=5 // pred_region
        %s518 = ssub.s32 %s28, 1
        // Predicated region
        $region85: #{tpu_custom_call.1} parent=83 // pred_check
          %p519 = pneg %p201
        $region86: #{tpu_custom_call.1} parent=83 // pred_check_branch
          %521 = sbr.rel (%p519) target = $region88
        $region87: #{tpu_custom_call.1} parent=83 // pred_region
          %523 = dma.done [#allocation3], 1536
        $region88: #{tpu_custom_call.1} parent=83 // pred_fallthru
          _
        // Predicated region
        $region89: #{tpu_custom_call.1} parent=83 // pred_check
          %p524 = pneg %p243
        $region90: #{tpu_custom_call.1} parent=83 // pred_check_branch
          %526 = sbr.rel (%p524) target = $region92
        $region91: #{tpu_custom_call.1} parent=83 // pred_region
          %528 = dma.done [#allocation6], 1536
        $region92: #{tpu_custom_call.1} parent=83 // pred_fallthru
          _
        // Predicated region
        $region93: #{tpu_custom_call.1} parent=83 // pred_check
          %p529 = pneg %p285
        $region94: #{tpu_custom_call.1} parent=83 // pred_check_branch
          %531 = sbr.rel (%p529) target = $region96
        $region95: #{tpu_custom_call.1} parent=83 // pred_region
          %533 = dma.done [#allocation6], 1536
        $region96: #{tpu_custom_call.1} parent=83 // pred_fallthru
          _
        // Predicated region
        $region97: #{tpu_custom_call.1} parent=83 // pred_check
          %p534 = pneg %p327
        $region98: #{tpu_custom_call.1} parent=83 // pred_check_branch
          %536 = sbr.rel (%p534) target = $region100
        $region99: #{tpu_custom_call.1} parent=83 // pred_region
          %538 = dma.done [#allocation9], 6144
        $region100: #{tpu_custom_call.1} parent=83 // pred_fallthru
          _
        %s539 = smul.u32 16, %s33
        %p540 = scmp.lt.s32.totalorder %s539, 31
        %s541 = scalar_select %p540, %s539, 31
        %s542 = smul.addr %s541, 8
        %s543 = scalar_lea.vmem %s0, %s542
        %p544 = pneg %p54
        %p545 = pneg %p51
        %p546 = pneg %p75
        %p547 = pneg %p72
        %p548 = pneg %p96
        %p549 = pneg %p93
        %p550 = pneg %p117
        %p551 = pneg %p114
        %p552 = pneg %p138
        %p553 = pneg %p135
        %p554 = pneg %p159
        %p555 = pneg %p156
        %p556 = pneg %p180
        %p557 = pneg %p177
        %p558 = pneg %p201
        %p559 = pneg %p198
        %p560 = pneg %p222
        %p561 = pneg %p219
        %p562 = pneg %p243
        %p563 = pneg %p240
        %p564 = pneg %p264
        %p565 = pneg %p261
        %p566 = pneg %p285
        %p567 = pneg %p282
        %p568 = pneg %p306
        %p569 = pneg %p303
        %p570 = pneg %p327
        %p571 = pneg %p324
        %p572 = pneg %p348
        %p573 = pneg %p345
        %p574 = pneg %p369
        %p575 = pneg %p366
        %p576 = pneg %p395
        %p577 = pneg %p392
        %s578 = sand.u32 %s382, 1
        %s579 = scalar_lea.sflag [#allocation4], %s578
        %s580 = sand.u32 %s382, 1
        %s581 = smul.addr %s580, 16
        %s582 = scalar_lea.vmem [#allocation10], %s581
        %s583 = smul.u32 16, %s33
        %p584 = scmp.lt.s32.totalorder %s583, 31
        %s585 = scalar_select %p584, %s583, 31
        %s586 = smul.addr %s585, 8
        %s587 = scalar_lea.vmem %s0, %s586
        %s588 = smul.u32 16, %s33
        %v590 = vlaneseq
        %v591 = vshrl.u32 %v590, 7
        %v592 = vadd.s32 %v591, 8
        %v593 = vadd.s32 %v591, 16
        %v594 = vadd.s32 %v591, 24
        %v595 = vadd.s32 %v591, 32
        %v596 = vadd.s32 %v591, 40
        %v597 = vadd.s32 %v591, 48
        %v598 = vadd.s32 %v591, 56
        %v599 = vadd.s32 %v591, 64
        %v600 = vadd.s32 %v591, 72
        %v601 = vadd.s32 %v591, 80
        %v602 = vadd.s32 %v591, 88
        %v603 = vadd.s32 %v591, 96
        %v604 = vadd.s32 %v591, 104
        %v605 = vadd.s32 %v591, 112
        %v606 = vadd.s32 %v591, 120
        %vm607 = vcmp.lt.s32.totalorder %v591, 0
        %v608 = vsub.s32 0, %v591
        %v609 = vsel %vm607, %v608, %v591
        %v610 = vshrl.u32 %v609, 4
        %v611 = vand.u32 %v609, 15
        %v612 = vsub.s32 0, %v611
        %v613 = vsel %vm607, %v612, %v611
        %vm614 = vcmp.lt.s32.totalorder %v592, 0
        %v615 = vsub.s32 0, %v592
        %v616 = vsel %vm614, %v615, %v592
        %v617 = vshrl.u32 %v616, 4
        %v618 = vand.u32 %v616, 15
        %v619 = vsub.s32 0, %v618
        %v620 = vsel %vm614, %v619, %v618
        %vm621 = vcmp.lt.s32.totalorder %v593, 0
        %v622 = vsub.s32 0, %v593
        %v623 = vsel %vm621, %v622, %v593
        %v624 = vshrl.u32 %v623, 4
        %v625 = vand.u32 %v623, 15
        %v626 = vsub.s32 0, %v625
        %v627 = vsel %vm621, %v626, %v625
        %vm628 = vcmp.lt.s32.totalorder %v594, 0
        %v629 = vsub.s32 0, %v594
        %v630 = vsel %vm628, %v629, %v594
        %v631 = vshrl.u32 %v630, 4
        %v632 = vand.u32 %v630, 15
        %v633 = vsub.s32 0, %v632
        %v634 = vsel %vm628, %v633, %v632
        %vm635 = vcmp.lt.s32.totalorder %v595, 0
        %v636 = vsub.s32 0, %v595
        %v637 = vsel %vm635, %v636, %v595
        %v638 = vshrl.u32 %v637, 4
        %v639 = vand.u32 %v637, 15
        %v640 = vsub.s32 0, %v639
        %v641 = vsel %vm635, %v640, %v639
        %vm642 = vcmp.lt.s32.totalorder %v596, 0
        %v643 = vsub.s32 0, %v596
        %v644 = vsel %vm642, %v643, %v596
        %v645 = vshrl.u32 %v644, 4
        %v646 = vand.u32 %v644, 15
        %v647 = vsub.s32 0, %v646
        %v648 = vsel %vm642, %v647, %v646
        %vm649 = vcmp.lt.s32.totalorder %v597, 0
        %v650 = vsub.s32 0, %v597
        %v651 = vsel %vm649, %v650, %v597
        %v652 = vshrl.u32 %v651, 4
        %v653 = vand.u32 %v651, 15
        %v654 = vsub.s32 0, %v653
        %v655 = vsel %vm649, %v654, %v653
        %vm656 = vcmp.lt.s32.totalorder %v598, 0
        %v657 = vsub.s32 0, %v598
        %v658 = vsel %vm656, %v657, %v598
        %v659 = vshrl.u32 %v658, 4
        %v660 = vand.u32 %v658, 15
        %v661 = vsub.s32 0, %v660
        %v662 = vsel %vm656, %v661, %v660
        %vm663 = vcmp.lt.s32.totalorder %v599, 0
        %v664 = vsub.s32 0, %v599
        %v665 = vsel %vm663, %v664, %v599
        %v666 = vshrl.u32 %v665, 4
        %v667 = vand.u32 %v665, 15
        %v668 = vsub.s32 0, %v667
        %v669 = vsel %vm663, %v668, %v667
        %vm670 = vcmp.lt.s32.totalorder %v600, 0
        %v671 = vsub.s32 0, %v600
        %v672 = vsel %vm670, %v671, %v600
        %v673 = vshrl.u32 %v672, 4
        %v674 = vand.u32 %v672, 15
        %v675 = vsub.s32 0, %v674
        %v676 = vsel %vm670, %v675, %v674
        %vm677 = vcmp.lt.s32.totalorder %v601, 0
        %v678 = vsub.s32 0, %v601
        %v679 = vsel %vm677, %v678, %v601
        %v680 = vshrl.u32 %v679, 4
        %v681 = vand.u32 %v679, 15
        %v682 = vsub.s32 0, %v681
        %v683 = vsel %vm677, %v682, %v681
        %vm684 = vcmp.lt.s32.totalorder %v602, 0
        %v685 = vsub.s32 0, %v602
        %v686 = vsel %vm684, %v685, %v602
        %v687 = vshrl.u32 %v686, 4
        %v688 = vand.u32 %v686, 15
        %v689 = vsub.s32 0, %v688
        %v690 = vsel %vm684, %v689, %v688
        %vm691 = vcmp.lt.s32.totalorder %v603, 0
        %v692 = vsub.s32 0, %v603
        %v693 = vsel %vm691, %v692, %v603
        %v694 = vshrl.u32 %v693, 4
        %v695 = vand.u32 %v693, 15
        %v696 = vsub.s32 0, %v695
        %v697 = vsel %vm691, %v696, %v695
        %vm698 = vcmp.lt.s32.totalorder %v604, 0
        %v699 = vsub.s32 0, %v604
        %v700 = vsel %vm698, %v699, %v604
        %v701 = vshrl.u32 %v700, 4
        %v702 = vand.u32 %v700, 15
        %v703 = vsub.s32 0, %v702
        %v704 = vsel %vm698, %v703, %v702
        %vm705 = vcmp.lt.s32.totalorder %v605, 0
        %v706 = vsub.s32 0, %v605
        %v707 = vsel %vm705, %v706, %v605
        %v708 = vshrl.u32 %v707, 4
        %v709 = vand.u32 %v707, 15
        %v710 = vsub.s32 0, %v709
        %v711 = vsel %vm705, %v710, %v709
        %vm712 = vcmp.lt.s32.totalorder %v606, 0
        %v713 = vsub.s32 0, %v606
        %v714 = vsel %vm712, %v713, %v606
        %v715 = vshrl.u32 %v714, 4
        %v716 = vand.u32 %v714, 15
        %v717 = vsub.s32 0, %v716
        %v718 = vsel %vm712, %v717, %v716
        %vm719 = vcmp.ne.s32.totalorder %v613, 0
        %vm720 = vcmp.ne.s32.totalorder %v620, 0
        %vm721 = vcmp.ne.s32.totalorder %v627, 0
        %vm722 = vcmp.ne.s32.totalorder %v634, 0
        %vm723 = vcmp.ne.s32.totalorder %v641, 0
        %vm724 = vcmp.ne.s32.totalorder %v648, 0
        %vm725 = vcmp.ne.s32.totalorder %v655, 0
        %vm726 = vcmp.ne.s32.totalorder %v662, 0
        %vm727 = vcmp.ne.s32.totalorder %v669, 0
        %vm728 = vcmp.ne.s32.totalorder %v676, 0
        %vm729 = vcmp.ne.s32.totalorder %v683, 0
        %vm730 = vcmp.ne.s32.totalorder %v690, 0
        %vm731 = vcmp.ne.s32.totalorder %v697, 0
        %vm732 = vcmp.ne.s32.totalorder %v704, 0
        %vm733 = vcmp.ne.s32.totalorder %v711, 0
        %vm734 = vcmp.ne.s32.totalorder %v718, 0
        %vm735 = vcmp.lt.s32.totalorder %v613, 0
        %vm736 = vcmp.lt.s32.totalorder %v620, 0
        %vm737 = vcmp.lt.s32.totalorder %v627, 0
        %vm738 = vcmp.lt.s32.totalorder %v634, 0
        %vm739 = vcmp.lt.s32.totalorder %v641, 0
        %vm740 = vcmp.lt.s32.totalorder %v648, 0
        %vm741 = vcmp.lt.s32.totalorder %v655, 0
        %vm742 = vcmp.lt.s32.totalorder %v662, 0
        %vm743 = vcmp.lt.s32.totalorder %v669, 0
        %vm744 = vcmp.lt.s32.totalorder %v676, 0
        %vm745 = vcmp.lt.s32.totalorder %v683, 0
        %vm746 = vcmp.lt.s32.totalorder %v690, 0
        %vm747 = vcmp.lt.s32.totalorder %v697, 0
        %vm748 = vcmp.lt.s32.totalorder %v704, 0
        %vm749 = vcmp.lt.s32.totalorder %v711, 0
        %vm750 = vcmp.lt.s32.totalorder %v718, 0
        %vm751 = vmand %vm735, %vm719
        %vm752 = vmand %vm736, %vm720
        %vm753 = vmand %vm737, %vm721
        %vm754 = vmand %vm738, %vm722
        %vm755 = vmand %vm739, %vm723
        %vm756 = vmand %vm740, %vm724
        %vm757 = vmand %vm741, %vm725
        %vm758 = vmand %vm742, %vm726
        %vm759 = vmand %vm743, %vm727
        %vm760 = vmand %vm744, %vm728
        %vm761 = vmand %vm745, %vm729
        %vm762 = vmand %vm746, %vm730
        %vm763 = vmand %vm747, %vm731
        %vm764 = vmand %vm748, %vm732
        %vm765 = vmand %vm749, %vm733
        %vm766 = vmand %vm750, %vm734
        %v767 = vadd.s32 %v613, 16
        %v768 = vadd.s32 %v620, 16
        %v769 = vadd.s32 %v627, 16
        %v770 = vadd.s32 %v634, 16
        %v771 = vadd.s32 %v641, 16
        %v772 = vadd.s32 %v648, 16
        %v773 = vadd.s32 %v655, 16
        %v774 = vadd.s32 %v662, 16
        %v775 = vadd.s32 %v669, 16
        %v776 = vadd.s32 %v676, 16
        %v777 = vadd.s32 %v683, 16
        %v778 = vadd.s32 %v690, 16
        %v779 = vadd.s32 %v697, 16
        %v780 = vadd.s32 %v704, 16
        %v781 = vadd.s32 %v711, 16
        %v782 = vadd.s32 %v718, 16
        %v783 = vsel %vm751, %v767, %v613
        %v784 = vsel %vm752, %v768, %v620
        %v785 = vsel %vm753, %v769, %v627
        %v786 = vsel %vm754, %v770, %v634
        %v787 = vsel %vm755, %v771, %v641
        %v788 = vsel %vm756, %v772, %v648
        %v789 = vsel %vm757, %v773, %v655
        %v790 = vsel %vm758, %v774, %v662
        %v791 = vsel %vm759, %v775, %v669
        %v792 = vsel %vm760, %v776, %v676
        %v793 = vsel %vm761, %v777, %v683
        %v794 = vsel %vm762, %v778, %v690
        %v795 = vsel %vm763, %v779, %v697
        %v796 = vsel %vm764, %v780, %v704
        %v797 = vsel %vm765, %v781, %v711
        %v798 = vsel %vm766, %v782, %v718
        %vm799 = vcmp.ne.s32.totalorder %v783, 0
        %vm800 = vcmp.ne.s32.totalorder %v784, 0
        %vm801 = vcmp.ne.s32.totalorder %v785, 0
        %vm802 = vcmp.ne.s32.totalorder %v786, 0
        %vm803 = vcmp.ne.s32.totalorder %v787, 0
        %vm804 = vcmp.ne.s32.totalorder %v788, 0
        %vm805 = vcmp.ne.s32.totalorder %v789, 0
        %vm806 = vcmp.ne.s32.totalorder %v790, 0
        %vm807 = vcmp.ne.s32.totalorder %v791, 0
        %vm808 = vcmp.ne.s32.totalorder %v792, 0
        %vm809 = vcmp.ne.s32.totalorder %v793, 0
        %vm810 = vcmp.ne.s32.totalorder %v794, 0
        %vm811 = vcmp.ne.s32.totalorder %v795, 0
        %vm812 = vcmp.ne.s32.totalorder %v796, 0
        %vm813 = vcmp.ne.s32.totalorder %v797, 0
        %vm814 = vcmp.ne.s32.totalorder %v798, 0
        %vm815 = vcmp.ne.s32.totalorder %v783, 15
        %vm816 = vcmp.ne.s32.totalorder %v784, 15
        %vm817 = vcmp.ne.s32.totalorder %v785, 15
        %vm818 = vcmp.ne.s32.totalorder %v786, 15
        %vm819 = vcmp.ne.s32.totalorder %v787, 15
        %vm820 = vcmp.ne.s32.totalorder %v788, 15
        %vm821 = vcmp.ne.s32.totalorder %v789, 15
        %vm822 = vcmp.ne.s32.totalorder %v790, 15
        %vm823 = vcmp.ne.s32.totalorder %v791, 15
        %vm824 = vcmp.ne.s32.totalorder %v792, 15
        %vm825 = vcmp.ne.s32.totalorder %v793, 15
        %vm826 = vcmp.ne.s32.totalorder %v794, 15
        %vm827 = vcmp.ne.s32.totalorder %v795, 15
        %vm828 = vcmp.ne.s32.totalorder %v796, 15
        %vm829 = vcmp.ne.s32.totalorder %v797, 15
        %vm830 = vcmp.ne.s32.totalorder %v798, 15
        %v831 = vld [vmem:[%s587] sm:$0xff]
        %v832 = vld [vmem:[%s587 + $0x8] sm:$0xff]
        %v833 = vld [vmem:[%s587 + $0x10] sm:$0xff]
        %v834 = vld [vmem:[%s587 + $0x18] sm:$0xff]
        %v835 = vld [vmem:[%s587 + $0x20] sm:$0xff]
        %v836 = vld [vmem:[%s587 + $0x28] sm:$0xff]
        %v837 = vld [vmem:[%s587 + $0x30] sm:$0xff]
        %v838 = vld [vmem:[%s587 + $0x38] sm:$0xff]
        %v839 = vld [vmem:[%s587 + $0x40] sm:$0xff]
        %v840 = vld [vmem:[%s587 + $0x48] sm:$0xff]
        %v841 = vld [vmem:[%s587 + $0x50] sm:$0xff]
        %v842 = vld [vmem:[%s587 + $0x58] sm:$0xff]
        %v843 = vld [vmem:[%s587 + $0x60] sm:$0xff]
        %v844 = vld [vmem:[%s587 + $0x68] sm:$0xff]
        %v845 = vld [vmem:[%s587 + $0x70] sm:$0xff]
        %v846 = vld [vmem:[%s587 + $0x78] sm:$0xff]
        %v847 = vrot.slane %v831, 7
        %v848 = vrot.slane %v832, 7
        %v849 = vrot.slane %v833, 7
        %v850 = vrot.slane %v834, 7
        %v851 = vrot.slane %v835, 7
        %v852 = vrot.slane %v836, 7
        %v853 = vrot.slane %v837, 7
        %v854 = vrot.slane %v838, 7
        %v855 = vrot.slane %v839, 7
        %v856 = vrot.slane %v840, 7
        %v857 = vrot.slane %v841, 7
        %v858 = vrot.slane %v842, 7
        %v859 = vrot.slane %v843, 7
        %v860 = vrot.slane %v844, 7
        %v861 = vrot.slane %v845, 7
        %v862 = vrot.slane %v846, 7
        %vm863 = vcmp.lt.s32.totalorder %v591, 1
        %v864 = vsel %vm863, %v861, %v862
        %v865 = vsel %vm863, %v860, %v861
        %v866 = vsel %vm863, %v859, %v860
        %v867 = vsel %vm863, %v858, %v859
        %v868 = vsel %vm863, %v857, %v858
        %v869 = vsel %vm863, %v856, %v857
        %v870 = vsel %vm863, %v855, %v856
        %v871 = vsel %vm863, %v854, %v855
        %v872 = vsel %vm863, %v853, %v854
        %v873 = vsel %vm863, %v852, %v853
        %v874 = vsel %vm863, %v851, %v852
        %v875 = vsel %vm863, %v850, %v851
        %v876 = vsel %vm863, %v849, %v850
        %v877 = vsel %vm863, %v848, %v849
        %v878 = vsel %vm863, %v847, %v848
        %v879 = vsel %vm863, %v862, %v847
        %v880 = vsel %vm799, %v879, 0.0
        %v881 = vsel %vm800, %v878, 0.0
        %v882 = vsel %vm801, %v877, 0.0
        %v883 = vsel %vm802, %v876, 0.0
        %v884 = vsel %vm803, %v875, 0.0
        %v885 = vsel %vm804, %v874, 0.0
        %v886 = vsel %vm805, %v873, 0.0
        %v887 = vsel %vm806, %v872, 0.0
        %v888 = vsel %vm807, %v871, 0.0
        %v889 = vsel %vm808, %v870, 0.0
        %v890 = vsel %vm809, %v869, 0.0
        %v891 = vsel %vm810, %v868, 0.0
        %v892 = vsel %vm811, %v867, 0.0
        %v893 = vsel %vm812, %v866, 0.0
        %v894 = vsel %vm813, %v865, 0.0
        %v895 = vsel %vm814, %v864, 0.0
        %v896 = vrot.slane %v831, 1
        %v897 = vrot.slane %v832, 1
        %v898 = vrot.slane %v833, 1
        %v899 = vrot.slane %v834, 1
        %v900 = vrot.slane %v835, 1
        %v901 = vrot.slane %v836, 1
        %v902 = vrot.slane %v837, 1
        %v903 = vrot.slane %v838, 1
        %v904 = vrot.slane %v839, 1
        %v905 = vrot.slane %v840, 1
        %v906 = vrot.slane %v841, 1
        %v907 = vrot.slane %v842, 1
        %v908 = vrot.slane %v843, 1
        %v909 = vrot.slane %v844, 1
        %v910 = vrot.slane %v845, 1
        %v911 = vrot.slane %v846, 1
        %vm912 = vcmp.lt.s32.totalorder %v591, 7
        %v913 = vsel %vm912, %v910, %v911
        %v914 = vsel %vm912, %v909, %v910
        %v915 = vsel %vm912, %v908, %v909
        %v916 = vsel %vm912, %v907, %v908
        %v917 = vsel %vm912, %v906, %v907
        %v918 = vsel %vm912, %v905, %v906
        %v919 = vsel %vm912, %v904, %v905
        %v920 = vsel %vm912, %v903, %v904
        %v921 = vsel %vm912, %v902, %v903
        %v922 = vsel %vm912, %v901, %v902
        %v923 = vsel %vm912, %v900, %v901
        %v924 = vsel %vm912, %v899, %v900
        %v925 = vsel %vm912, %v898, %v899
        %v926 = vsel %vm912, %v897, %v898
        %v927 = vsel %vm912, %v896, %v897
        %v928 = vsel %vm912, %v911, %v896
        %v929 = vsel %vm815, %v927, 0.0
        %v930 = vsel %vm816, %v926, 0.0
        %v931 = vsel %vm817, %v925, 0.0
        %v932 = vsel %vm818, %v924, 0.0
        %v933 = vsel %vm819, %v923, 0.0
        %v934 = vsel %vm820, %v922, 0.0
        %v935 = vsel %vm821, %v921, 0.0
        %v936 = vsel %vm822, %v920, 0.0
        %v937 = vsel %vm823, %v919, 0.0
        %v938 = vsel %vm824, %v918, 0.0
        %v939 = vsel %vm825, %v917, 0.0
        %v940 = vsel %vm826, %v916, 0.0
        %v941 = vsel %vm827, %v915, 0.0
        %v942 = vsel %vm828, %v914, 0.0
        %v943 = vsel %vm829, %v913, 0.0
        %v944 = vsel %vm830, %v928, 0.0
        %v945 = vld [vmem:[%s1] sm:$0x7]
        %947 = vset.pattern.permute.xlu0 0
        %948 = vperm.xlu0 %947, %v880
        %v949 = vpop.permute.xlu0 %948
        %952 = vset.pattern.permute.xlu0 0
        %953 = vperm.xlu0 %952, %v881
        %v954 = vpop.permute.xlu0 %953
        %957 = vset.pattern.permute.xlu0 0
        %958 = vperm.xlu0 %957, %v882
        %v959 = vpop.permute.xlu0 %958
        %962 = vset.pattern.permute.xlu0 0
        %963 = vperm.xlu0 %962, %v883
        %v964 = vpop.permute.xlu0 %963
        %967 = vset.pattern.permute.xlu0 0
        %968 = vperm.xlu0 %967, %v884
        %v969 = vpop.permute.xlu0 %968
        %972 = vset.pattern.permute.xlu0 0
        %973 = vperm.xlu0 %972, %v885
        %v974 = vpop.permute.xlu0 %973
        %977 = vset.pattern.permute.xlu0 0
        %978 = vperm.xlu0 %977, %v886
        %v979 = vpop.permute.xlu0 %978
        %982 = vset.pattern.permute.xlu0 0
        %983 = vperm.xlu0 %982, %v887
        %v984 = vpop.permute.xlu0 %983
        %987 = vset.pattern.permute.xlu0 0
        %988 = vperm.xlu0 %987, %v888
        %v989 = vpop.permute.xlu0 %988
        %992 = vset.pattern.permute.xlu0 0
        %993 = vperm.xlu0 %992, %v889
        %v994 = vpop.permute.xlu0 %993
        %997 = vset.pattern.permute.xlu0 0
        %998 = vperm.xlu0 %997, %v890
        %v999 = vpop.permute.xlu0 %998
        %1002 = vset.pattern.permute.xlu0 0
        %1003 = vperm.xlu0 %1002, %v891
        %v1004 = vpop.permute.xlu0 %1003
        %1007 = vset.pattern.permute.xlu0 0
        %1008 = vperm.xlu0 %1007, %v892
        %v1009 = vpop.permute.xlu0 %1008
        %1012 = vset.pattern.permute.xlu0 0
        %1013 = vperm.xlu0 %1012, %v893
        %v1014 = vpop.permute.xlu0 %1013
        %1017 = vset.pattern.permute.xlu0 0
        %1018 = vperm.xlu0 %1017, %v894
        %v1019 = vpop.permute.xlu0 %1018
        %1022 = vset.pattern.permute.xlu0 0
        %1023 = vperm.xlu0 %1022, %v895
        %v1024 = vpop.permute.xlu0 %1023
        %v1026 = vperm.slane %v945, 0
        %v1027 = vmul.f32 %v949, %v1026
        %v1028 = vmul.f32 %v954, %v1026
        %v1029 = vmul.f32 %v959, %v1026
        %v1030 = vmul.f32 %v964, %v1026
        %v1031 = vmul.f32 %v969, %v1026
        %v1032 = vmul.f32 %v974, %v1026
        %v1033 = vmul.f32 %v979, %v1026
        %v1034 = vmul.f32 %v984, %v1026
        %v1035 = vmul.f32 %v989, %v1026
        %v1036 = vmul.f32 %v994, %v1026
        %v1037 = vmul.f32 %v999, %v1026
        %v1038 = vmul.f32 %v1004, %v1026
        %v1039 = vmul.f32 %v1009, %v1026
        %v1040 = vmul.f32 %v1014, %v1026
        %v1041 = vmul.f32 %v1019, %v1026
        %v1042 = vmul.f32 %v1024, %v1026
        %1044 = vset.pattern.permute.xlu0 0
        %1045 = vperm.xlu0 %1044, %v831
        %v1046 = vpop.permute.xlu0 %1045
        %1049 = vset.pattern.permute.xlu0 0
        %1050 = vperm.xlu0 %1049, %v832
        %v1051 = vpop.permute.xlu0 %1050
        %1054 = vset.pattern.permute.xlu0 0
        %1055 = vperm.xlu0 %1054, %v833
        %v1056 = vpop.permute.xlu0 %1055
        %1059 = vset.pattern.permute.xlu0 0
        %1060 = vperm.xlu0 %1059, %v834
        %v1061 = vpop.permute.xlu0 %1060
        %1064 = vset.pattern.permute.xlu0 0
        %1065 = vperm.xlu0 %1064, %v835
        %v1066 = vpop.permute.xlu0 %1065
        %1069 = vset.pattern.permute.xlu0 0
        %1070 = vperm.xlu0 %1069, %v836
        %v1071 = vpop.permute.xlu0 %1070
        %1074 = vset.pattern.permute.xlu0 0
        %1075 = vperm.xlu0 %1074, %v837
        %v1076 = vpop.permute.xlu0 %1075
        %1079 = vset.pattern.permute.xlu0 0
        %1080 = vperm.xlu0 %1079, %v838
        %v1081 = vpop.permute.xlu0 %1080
        %1084 = vset.pattern.permute.xlu0 0
        %1085 = vperm.xlu0 %1084, %v839
        %v1086 = vpop.permute.xlu0 %1085
        %1089 = vset.pattern.permute.xlu0 0
        %1090 = vperm.xlu0 %1089, %v840
        %v1091 = vpop.permute.xlu0 %1090
        %1094 = vset.pattern.permute.xlu0 0
        %1095 = vperm.xlu0 %1094, %v841
        %v1096 = vpop.permute.xlu0 %1095
        %1099 = vset.pattern.permute.xlu0 0
        %1100 = vperm.xlu0 %1099, %v842
        %v1101 = vpop.permute.xlu0 %1100
        %1104 = vset.pattern.permute.xlu0 0
        %1105 = vperm.xlu0 %1104, %v843
        %v1106 = vpop.permute.xlu0 %1105
        %1109 = vset.pattern.permute.xlu0 0
        %1110 = vperm.xlu0 %1109, %v844
        %v1111 = vpop.permute.xlu0 %1110
        %1114 = vset.pattern.permute.xlu0 0
        %1115 = vperm.xlu0 %1114, %v845
        %v1116 = vpop.permute.xlu0 %1115
        %1119 = vset.pattern.permute.xlu0 0
        %1120 = vperm.xlu0 %1119, %v846
        %v1121 = vpop.permute.xlu0 %1120
        %v1123 = vperm.slane %v945, 1
        %v1124 = vmul.f32 %v1046, %v1123
        %v1125 = vmul.f32 %v1051, %v1123
        %v1126 = vmul.f32 %v1056, %v1123
        %v1127 = vmul.f32 %v1061, %v1123
        %v1128 = vmul.f32 %v1066, %v1123
        %v1129 = vmul.f32 %v1071, %v1123
        %v1130 = vmul.f32 %v1076, %v1123
        %v1131 = vmul.f32 %v1081, %v1123
        %v1132 = vmul.f32 %v1086, %v1123
        %v1133 = vmul.f32 %v1091, %v1123
        %v1134 = vmul.f32 %v1096, %v1123
        %v1135 = vmul.f32 %v1101, %v1123
        %v1136 = vmul.f32 %v1106, %v1123
        %v1137 = vmul.f32 %v1111, %v1123
        %v1138 = vmul.f32 %v1116, %v1123
        %v1139 = vmul.f32 %v1121, %v1123
        %v1140 = vadd.f32 %v1027, %v1124
        %v1141 = vadd.f32 %v1028, %v1125
        %v1142 = vadd.f32 %v1029, %v1126
        %v1143 = vadd.f32 %v1030, %v1127
        %v1144 = vadd.f32 %v1031, %v1128
        %v1145 = vadd.f32 %v1032, %v1129
        %v1146 = vadd.f32 %v1033, %v1130
        %v1147 = vadd.f32 %v1034, %v1131
        %v1148 = vadd.f32 %v1035, %v1132
        %v1149 = vadd.f32 %v1036, %v1133
        %v1150 = vadd.f32 %v1037, %v1134
        %v1151 = vadd.f32 %v1038, %v1135
        %v1152 = vadd.f32 %v1039, %v1136
        %v1153 = vadd.f32 %v1040, %v1137
        %v1154 = vadd.f32 %v1041, %v1138
        %v1155 = vadd.f32 %v1042, %v1139
        %1157 = vset.pattern.permute.xlu0 0
        %1158 = vperm.xlu0 %1157, %v929
        %v1159 = vpop.permute.xlu0 %1158
        %1162 = vset.pattern.permute.xlu0 0
        %1163 = vperm.xlu0 %1162, %v930
        %v1164 = vpop.permute.xlu0 %1163
        %1167 = vset.pattern.permute.xlu0 0
        %1168 = vperm.xlu0 %1167, %v931
        %v1169 = vpop.permute.xlu0 %1168
        %1172 = vset.pattern.permute.xlu0 0
        %1173 = vperm.xlu0 %1172, %v932
        %v1174 = vpop.permute.xlu0 %1173
        %1177 = vset.pattern.permute.xlu0 0
        %1178 = vperm.xlu0 %1177, %v933
        %v1179 = vpop.permute.xlu0 %1178
        %1182 = vset.pattern.permute.xlu0 0
        %1183 = vperm.xlu0 %1182, %v934
        %v1184 = vpop.permute.xlu0 %1183
        %1187 = vset.pattern.permute.xlu0 0
        %1188 = vperm.xlu0 %1187, %v935
        %v1189 = vpop.permute.xlu0 %1188
        %1192 = vset.pattern.permute.xlu0 0
        %1193 = vperm.xlu0 %1192, %v936
        %v1194 = vpop.permute.xlu0 %1193
        %1197 = vset.pattern.permute.xlu0 0
        %1198 = vperm.xlu0 %1197, %v937
        %v1199 = vpop.permute.xlu0 %1198
        %1202 = vset.pattern.permute.xlu0 0
        %1203 = vperm.xlu0 %1202, %v938
        %v1204 = vpop.permute.xlu0 %1203
        %1207 = vset.pattern.permute.xlu0 0
        %1208 = vperm.xlu0 %1207, %v939
        %v1209 = vpop.permute.xlu0 %1208
        %1212 = vset.pattern.permute.xlu0 0
        %1213 = vperm.xlu0 %1212, %v940
        %v1214 = vpop.permute.xlu0 %1213
        %1217 = vset.pattern.permute.xlu0 0
        %1218 = vperm.xlu0 %1217, %v941
        %v1219 = vpop.permute.xlu0 %1218
        %1222 = vset.pattern.permute.xlu0 0
        %1223 = vperm.xlu0 %1222, %v942
        %v1224 = vpop.permute.xlu0 %1223
        %1227 = vset.pattern.permute.xlu0 0
        %1228 = vperm.xlu0 %1227, %v943
        %v1229 = vpop.permute.xlu0 %1228
        %1232 = vset.pattern.permute.xlu0 0
        %1233 = vperm.xlu0 %1232, %v944
        %v1234 = vpop.permute.xlu0 %1233
        %v1236 = vperm.slane %v945, 2
        %v1237 = vmul.f32 %v1159, %v1236
        %v1238 = vmul.f32 %v1164, %v1236
        %v1239 = vmul.f32 %v1169, %v1236
        %v1240 = vmul.f32 %v1174, %v1236
        %v1241 = vmul.f32 %v1179, %v1236
        %v1242 = vmul.f32 %v1184, %v1236
        %v1243 = vmul.f32 %v1189, %v1236
        %v1244 = vmul.f32 %v1194, %v1236
        %v1245 = vmul.f32 %v1199, %v1236
        %v1246 = vmul.f32 %v1204, %v1236
        %v1247 = vmul.f32 %v1209, %v1236
        %v1248 = vmul.f32 %v1214, %v1236
        %v1249 = vmul.f32 %v1219, %v1236
        %v1250 = vmul.f32 %v1224, %v1236
        %v1251 = vmul.f32 %v1229, %v1236
        %v1252 = vmul.f32 %v1234, %v1236
        %v1253 = vadd.f32 %v1140, %v1237
        %v1254 = vadd.f32 %v1141, %v1238
        %v1255 = vadd.f32 %v1142, %v1239
        %v1256 = vadd.f32 %v1143, %v1240
        %v1257 = vadd.f32 %v1144, %v1241
        %v1258 = vadd.f32 %v1145, %v1242
        %v1259 = vadd.f32 %v1146, %v1243
        %v1260 = vadd.f32 %v1147, %v1244
        %v1261 = vadd.f32 %v1148, %v1245
        %v1262 = vadd.f32 %v1149, %v1246
        %v1263 = vadd.f32 %v1150, %v1247
        %v1264 = vadd.f32 %v1151, %v1248
        %v1265 = vadd.f32 %v1152, %v1249
        %v1266 = vadd.f32 %v1153, %v1250
        %v1267 = vadd.f32 %v1154, %v1251
        %v1268 = vadd.f32 %v1155, %v1252
        %v1269 = vld [vmem:[%s2] sm:$0x1]
        %v1271 = vperm.slane %v1269, 0
        %v1273 = vadd.f32 %v1253, %v1271
        %v1274 = vadd.f32 %v1254, %v1271
        %v1275 = vadd.f32 %v1255, %v1271
        %v1276 = vadd.f32 %v1256, %v1271
        %v1277 = vadd.f32 %v1257, %v1271
        %v1278 = vadd.f32 %v1258, %v1271
        %v1279 = vadd.f32 %v1259, %v1271
        %v1280 = vadd.f32 %v1260, %v1271
        %v1281 = vadd.f32 %v1261, %v1271
        %v1282 = vadd.f32 %v1262, %v1271
        %v1283 = vadd.f32 %v1263, %v1271
        %v1284 = vadd.f32 %v1264, %v1271
        %v1285 = vadd.f32 %v1265, %v1271
        %v1286 = vadd.f32 %v1266, %v1271
        %v1287 = vadd.f32 %v1267, %v1271
        %v1288 = vadd.f32 %v1268, %v1271
        %v1289 = vmax.f32 %v1273, 0.0
        %v1290 = vmax.f32 %v1274, 0.0
        %v1291 = vmax.f32 %v1275, 0.0
        %v1292 = vmax.f32 %v1276, 0.0
        %v1293 = vmax.f32 %v1277, 0.0
        %v1294 = vmax.f32 %v1278, 0.0
        %v1295 = vmax.f32 %v1279, 0.0
        %v1296 = vmax.f32 %v1280, 0.0
        %v1297 = vmax.f32 %v1281, 0.0
        %v1298 = vmax.f32 %v1282, 0.0
        %v1299 = vmax.f32 %v1283, 0.0
        %v1300 = vmax.f32 %v1284, 0.0
        %v1301 = vmax.f32 %v1285, 0.0
        %v1302 = vmax.f32 %v1286, 0.0
        %v1303 = vmax.f32 %v1287, 0.0
        %v1304 = vmax.f32 %v1288, 0.0
        %v1305 = vrot.slane %v1289, 7
        %v1306 = vrot.slane %v1290, 7
        %v1307 = vrot.slane %v1291, 7
        %v1308 = vrot.slane %v1292, 7
        %v1309 = vrot.slane %v1293, 7
        %v1310 = vrot.slane %v1294, 7
        %v1311 = vrot.slane %v1295, 7
        %v1312 = vrot.slane %v1296, 7
        %v1313 = vrot.slane %v1297, 7
        %v1314 = vrot.slane %v1298, 7
        %v1315 = vrot.slane %v1299, 7
        %v1316 = vrot.slane %v1300, 7
        %v1317 = vrot.slane %v1301, 7
        %v1318 = vrot.slane %v1302, 7
        %v1319 = vrot.slane %v1303, 7
        %v1320 = vrot.slane %v1304, 7
        %v1321 = vsel %vm863, %v1319, %v1320
        %v1322 = vsel %vm863, %v1318, %v1319
        %v1323 = vsel %vm863, %v1317, %v1318
        %v1324 = vsel %vm863, %v1316, %v1317
        %v1325 = vsel %vm863, %v1315, %v1316
        %v1326 = vsel %vm863, %v1314, %v1315
        %v1327 = vsel %vm863, %v1313, %v1314
        %v1328 = vsel %vm863, %v1312, %v1313
        %v1329 = vsel %vm863, %v1311, %v1312
        %v1330 = vsel %vm863, %v1310, %v1311
        %v1331 = vsel %vm863, %v1309, %v1310
        %v1332 = vsel %vm863, %v1308, %v1309
        %v1333 = vsel %vm863, %v1307, %v1308
        %v1334 = vsel %vm863, %v1306, %v1307
        %v1335 = vsel %vm863, %v1305, %v1306
        %v1336 = vsel %vm863, %v1320, %v1305
        %v1337 = vsel %vm799, 1, 0
        %v1338 = vsel %vm800, 1, 0
        %v1339 = vsel %vm801, 1, 0
        %v1340 = vsel %vm802, 1, 0
        %v1341 = vsel %vm803, 1, 0
        %v1342 = vsel %vm804, 1, 0
        %v1343 = vsel %vm805, 1, 0
        %v1344 = vsel %vm806, 1, 0
        %v1345 = vsel %vm807, 1, 0
        %v1346 = vsel %vm808, 1, 0
        %v1347 = vsel %vm809, 1, 0
        %v1348 = vsel %vm810, 1, 0
        %v1349 = vsel %vm811, 1, 0
        %v1350 = vsel %vm812, 1, 0
        %v1351 = vsel %vm813, 1, 0
        %v1352 = vsel %vm814, 1, 0
        %vm1353 = vcmp.eq.s32.totalorder %v1337, 1
        %vm1354 = vcmp.eq.s32.totalorder %v1338, 1
        %vm1355 = vcmp.eq.s32.totalorder %v1339, 1
        %vm1356 = vcmp.eq.s32.totalorder %v1340, 1
        %vm1357 = vcmp.eq.s32.totalorder %v1341, 1
        %vm1358 = vcmp.eq.s32.totalorder %v1342, 1
        %vm1359 = vcmp.eq.s32.totalorder %v1343, 1
        %vm1360 = vcmp.eq.s32.totalorder %v1344, 1
        %vm1361 = vcmp.eq.s32.totalorder %v1345, 1
        %vm1362 = vcmp.eq.s32.totalorder %v1346, 1
        %vm1363 = vcmp.eq.s32.totalorder %v1347, 1
        %vm1364 = vcmp.eq.s32.totalorder %v1348, 1
        %vm1365 = vcmp.eq.s32.totalorder %v1349, 1
        %vm1366 = vcmp.eq.s32.totalorder %v1350, 1
        %vm1367 = vcmp.eq.s32.totalorder %v1351, 1
        %vm1368 = vcmp.eq.s32.totalorder %v1352, 1
        %v1369 = vsel %vm1353, %v1336, 0.0
        %v1370 = vsel %vm1354, %v1335, 0.0
        %v1371 = vsel %vm1355, %v1334, 0.0
        %v1372 = vsel %vm1356, %v1333, 0.0
        %v1373 = vsel %vm1357, %v1332, 0.0
        %v1374 = vsel %vm1358, %v1331, 0.0
        %v1375 = vsel %vm1359, %v1330, 0.0
        %v1376 = vsel %vm1360, %v1329, 0.0
        %v1377 = vsel %vm1361, %v1328, 0.0
        %v1378 = vsel %vm1362, %v1327, 0.0
        %v1379 = vsel %vm1363, %v1326, 0.0
        %v1380 = vsel %vm1364, %v1325, 0.0
        %v1381 = vsel %vm1365, %v1324, 0.0
        %v1382 = vsel %vm1366, %v1323, 0.0
        %v1383 = vsel %vm1367, %v1322, 0.0
        %v1384 = vsel %vm1368, %v1321, 0.0
        %v1385 = vrot.slane %v1289, 1
        %v1386 = vrot.slane %v1290, 1
        %v1387 = vrot.slane %v1291, 1
        %v1388 = vrot.slane %v1292, 1
        %v1389 = vrot.slane %v1293, 1
        %v1390 = vrot.slane %v1294, 1
        %v1391 = vrot.slane %v1295, 1
        %v1392 = vrot.slane %v1296, 1
        %v1393 = vrot.slane %v1297, 1
        %v1394 = vrot.slane %v1298, 1
        %v1395 = vrot.slane %v1299, 1
        %v1396 = vrot.slane %v1300, 1
        %v1397 = vrot.slane %v1301, 1
        %v1398 = vrot.slane %v1302, 1
        %v1399 = vrot.slane %v1303, 1
        %v1400 = vrot.slane %v1304, 1
        %v1401 = vsel %vm912, %v1399, %v1400
        %v1402 = vsel %vm912, %v1398, %v1399
        %v1403 = vsel %vm912, %v1397, %v1398
        %v1404 = vsel %vm912, %v1396, %v1397
        %v1405 = vsel %vm912, %v1395, %v1396
        %v1406 = vsel %vm912, %v1394, %v1395
        %v1407 = vsel %vm912, %v1393, %v1394
        %v1408 = vsel %vm912, %v1392, %v1393
        %v1409 = vsel %vm912, %v1391, %v1392
        %v1410 = vsel %vm912, %v1390, %v1391
        %v1411 = vsel %vm912, %v1389, %v1390
        %v1412 = vsel %vm912, %v1388, %v1389
        %v1413 = vsel %vm912, %v1387, %v1388
        %v1414 = vsel %vm912, %v1386, %v1387
        %v1415 = vsel %vm912, %v1385, %v1386
        %v1416 = vsel %vm912, %v1400, %v1385
        %v1417 = vsel %vm815, 1, 0
        %v1418 = vsel %vm816, 1, 0
        %v1419 = vsel %vm817, 1, 0
        %v1420 = vsel %vm818, 1, 0
        %v1421 = vsel %vm819, 1, 0
        %v1422 = vsel %vm820, 1, 0
        %v1423 = vsel %vm821, 1, 0
        %v1424 = vsel %vm822, 1, 0
        %v1425 = vsel %vm823, 1, 0
        %v1426 = vsel %vm824, 1, 0
        %v1427 = vsel %vm825, 1, 0
        %v1428 = vsel %vm826, 1, 0
        %v1429 = vsel %vm827, 1, 0
        %v1430 = vsel %vm828, 1, 0
        %v1431 = vsel %vm829, 1, 0
        %v1432 = vsel %vm830, 1, 0
        %vm1433 = vcmp.eq.s32.totalorder %v1417, 1
        %vm1434 = vcmp.eq.s32.totalorder %v1418, 1
        %vm1435 = vcmp.eq.s32.totalorder %v1419, 1
        %vm1436 = vcmp.eq.s32.totalorder %v1420, 1
        %vm1437 = vcmp.eq.s32.totalorder %v1421, 1
        %vm1438 = vcmp.eq.s32.totalorder %v1422, 1
        %vm1439 = vcmp.eq.s32.totalorder %v1423, 1
        %vm1440 = vcmp.eq.s32.totalorder %v1424, 1
        %vm1441 = vcmp.eq.s32.totalorder %v1425, 1
        %vm1442 = vcmp.eq.s32.totalorder %v1426, 1
        %vm1443 = vcmp.eq.s32.totalorder %v1427, 1
        %vm1444 = vcmp.eq.s32.totalorder %v1428, 1
        %vm1445 = vcmp.eq.s32.totalorder %v1429, 1
        %vm1446 = vcmp.eq.s32.totalorder %v1430, 1
        %vm1447 = vcmp.eq.s32.totalorder %v1431, 1
        %vm1448 = vcmp.eq.s32.totalorder %v1432, 1
        %v1449 = vsel %vm1433, %v1415, 0.0
        %v1450 = vsel %vm1434, %v1414, 0.0
        %v1451 = vsel %vm1435, %v1413, 0.0
        %v1452 = vsel %vm1436, %v1412, 0.0
        %v1453 = vsel %vm1437, %v1411, 0.0
        %v1454 = vsel %vm1438, %v1410, 0.0
        %v1455 = vsel %vm1439, %v1409, 0.0
        %v1456 = vsel %vm1440, %v1408, 0.0
        %v1457 = vsel %vm1441, %v1407, 0.0
        %v1458 = vsel %vm1442, %v1406, 0.0
        %v1459 = vsel %vm1443, %v1405, 0.0
        %v1460 = vsel %vm1444, %v1404, 0.0
        %v1461 = vsel %vm1445, %v1403, 0.0
        %v1462 = vsel %vm1446, %v1402, 0.0
        %v1463 = vsel %vm1447, %v1401, 0.0
        %v1464 = vsel %vm1448, %v1416, 0.0
        %v1465 = vpack.c.bf16 %v1370, %v1369
        %v1466 = vpack.c.bf16 %v1372, %v1371
        %v1467 = vpack.c.bf16 %v1374, %v1373
        %v1468 = vpack.c.bf16 %v1376, %v1375
        %v1469 = vpack.c.bf16 %v1378, %v1377
        %v1470 = vpack.c.bf16 %v1380, %v1379
        %v1471 = vpack.c.bf16 %v1382, %v1381
        %v1472 = vpack.c.bf16 %v1384, %v1383
        %v1473 = vld [vmem:[%s3] sm:$0xf]
        %v1474 = vld [vmem:[%s3 + $0x4] sm:$0xf]
        %v1475 = vld [vmem:[%s3 + $0x8] sm:$0xf]
        %v1476 = vld [vmem:[%s3 + $0xc] sm:$0xf]
        %v1477 = vld [vmem:[%s3 + $0x10] sm:$0xf]
        %v1478 = vld [vmem:[%s3 + $0x14] sm:$0xf]
        %v1479 = vld [vmem:[%s3 + $0x18] sm:$0xf]
        %v1480 = vld [vmem:[%s3 + $0x1c] sm:$0xf]
        %v1481 = vpack.c.bf16 %v1290, %v1289
        %v1482 = vpack.c.bf16 %v1292, %v1291
        %v1483 = vpack.c.bf16 %v1294, %v1293
        %v1484 = vpack.c.bf16 %v1296, %v1295
        %v1485 = vpack.c.bf16 %v1298, %v1297
        %v1486 = vpack.c.bf16 %v1300, %v1299
        %v1487 = vpack.c.bf16 %v1302, %v1301
        %v1488 = vpack.c.bf16 %v1304, %v1303
        %s1489 = scalar_lea.vmem %s3, 32
        %v1490 = vld [vmem:[%s1489] sm:$0xf]
        %v1491 = vld [vmem:[%s1489 + $0x4] sm:$0xf]
        %v1492 = vld [vmem:[%s1489 + $0x8] sm:$0xf]
        %v1493 = vld [vmem:[%s1489 + $0xc] sm:$0xf]
        %v1494 = vld [vmem:[%s1489 + $0x10] sm:$0xf]
        %v1495 = vld [vmem:[%s1489 + $0x14] sm:$0xf]
        %v1496 = vld [vmem:[%s1489 + $0x18] sm:$0xf]
        %v1497 = vld [vmem:[%s1489 + $0x1c] sm:$0xf]
        %v1506 = vunpack.c.l.b16 %v1490
        %v1507 = vunpack.c.l.b16 %v1491
        %v1508 = vunpack.c.l.b16 %v1492
        %v1509 = vunpack.c.l.b16 %v1493
        %v1510 = vunpack.c.l.b16 %v1494
        %v1511 = vunpack.c.l.b16 %v1495
        %v1512 = vunpack.c.l.b16 %v1496
        %v1513 = vunpack.c.l.b16 %v1497
        %v1514 = vpack.c.b16 %v1507, %v1506
        %v1515 = vpack.c.b16 %v1509, %v1508
        %v1516 = vpack.c.b16 %v1511, %v1510
        %v1517 = vpack.c.b16 %v1513, %v1512
        %vm1522 = vcmask 523264
        %v1524 = vsel %vm1522, %v1481, 0
        %v1527 = vsel %vm1522, %v1482, 0
        %v1530 = vsel %vm1522, %v1483, 0
        %v1533 = vsel %vm1522, %v1484, 0
        %v1536 = vsel %vm1522, %v1485, 0
        %v1539 = vsel %vm1522, %v1486, 0
        %v1542 = vsel %vm1522, %v1487, 0
        %v1545 = vsel %vm1522, %v1488, 0
        %1547 = vmatpush.bf16.msra.mxu0 0
        %1548 = vmatpush.bf16.msra.mxu0 0
        %1549 = vmatpush.bf16.msra.mxu0 0
        %1550 = vmatpush.bf16.msra.mxu0 0
        %1551 = vmatpush.bf16.msra.mxu0 %v1517
        %1552 = vmatpush.bf16.msra.mxu0 %v1516
        %1553 = vmatpush.bf16.msra.mxu0 %v1515
        %1554 = vmatpush.bf16.msra.mxu0 %v1514
        %1555 = vmatmul.bf16.gmra.mxu0 %v1524
        %v1556 = vpop.f32.mrf.mxu0
        %v1557 = vadd.f32 0.0, %v1556
        %v1558 = vpop.f32.mrf.mxu0
        %v1559 = vadd.f32 0.0, %v1558
        %1560 = vmatmul.bf16.gmra.mxu0 %v1527
        %v1561 = vpop.f32.mrf.mxu0
        %v1562 = vadd.f32 0.0, %v1561
        %v1563 = vpop.f32.mrf.mxu0
        %v1564 = vadd.f32 0.0, %v1563
        %1565 = vmatmul.bf16.gmra.mxu0 %v1530
        %v1566 = vpop.f32.mrf.mxu0
        %v1567 = vadd.f32 0.0, %v1566
        %v1568 = vpop.f32.mrf.mxu0
        %v1569 = vadd.f32 0.0, %v1568
        %1570 = vmatmul.bf16.gmra.mxu0 %v1533
        %v1571 = vpop.f32.mrf.mxu0
        %v1572 = vadd.f32 0.0, %v1571
        %v1573 = vpop.f32.mrf.mxu0
        %v1574 = vadd.f32 0.0, %v1573
        %1575 = vmatmul.bf16.gmra.mxu0 %v1536
        %v1576 = vpop.f32.mrf.mxu0
        %v1577 = vadd.f32 0.0, %v1576
        %v1578 = vpop.f32.mrf.mxu0
        %v1579 = vadd.f32 0.0, %v1578
        %1580 = vmatmul.bf16.gmra.mxu0 %v1539
        %v1581 = vpop.f32.mrf.mxu0
        %v1582 = vadd.f32 0.0, %v1581
        %v1583 = vpop.f32.mrf.mxu0
        %v1584 = vadd.f32 0.0, %v1583
        %1585 = vmatmul.bf16.gmra.mxu0 %v1542
        %v1586 = vpop.f32.mrf.mxu0
        %v1587 = vadd.f32 0.0, %v1586
        %v1588 = vpop.f32.mrf.mxu0
        %v1589 = vadd.f32 0.0, %v1588
        %1590 = vmatmul.bf16.gmra.mxu0 %v1545
        %v1591 = vpop.f32.mrf.mxu0
        %v1592 = vadd.f32 0.0, %v1591
        %v1593 = vpop.f32.mrf.mxu0
        %v1594 = vadd.f32 0.0, %v1593
        %1595 = vdwg.mxu0
        %v1604 = vunpack.c.l.b16 %v1473
        %v1605 = vunpack.c.l.b16 %v1474
        %v1606 = vunpack.c.l.b16 %v1475
        %v1607 = vunpack.c.l.b16 %v1476
        %v1608 = vunpack.c.l.b16 %v1477
        %v1609 = vunpack.c.l.b16 %v1478
        %v1610 = vunpack.c.l.b16 %v1479
        %v1611 = vunpack.c.l.b16 %v1480
        %v1612 = vpack.c.b16 %v1605, %v1604
        %v1613 = vpack.c.b16 %v1607, %v1606
        %v1614 = vpack.c.b16 %v1609, %v1608
        %v1615 = vpack.c.b16 %v1611, %v1610
        %v1621 = vsel %vm1522, %v1465, 0
        %v1624 = vsel %vm1522, %v1466, 0
        %v1627 = vsel %vm1522, %v1467, 0
        %v1630 = vsel %vm1522, %v1468, 0
        %v1633 = vsel %vm1522, %v1469, 0
        %v1636 = vsel %vm1522, %v1470, 0
        %v1639 = vsel %vm1522, %v1471, 0
        %v1642 = vsel %vm1522, %v1472, 0
        %1644 = vmatpush.bf16.msra.mxu0 0
        %1645 = vmatpush.bf16.msra.mxu0 0
        %1646 = vmatpush.bf16.msra.mxu0 0
        %1647 = vmatpush.bf16.msra.mxu0 0
        %1648 = vmatpush.bf16.msra.mxu0 %v1615
        %1649 = vmatpush.bf16.msra.mxu0 %v1614
        %1650 = vmatpush.bf16.msra.mxu0 %v1613
        %1651 = vmatpush.bf16.msra.mxu0 %v1612
        %1652 = vmatmul.bf16.gmra.mxu0 %v1621
        %v1653 = vpop.f32.mrf.mxu0
        %v1654 = vadd.f32 %v1557, %v1653
        %v1655 = vpop.f32.mrf.mxu0
        %v1656 = vadd.f32 %v1559, %v1655
        %1657 = vmatmul.bf16.gmra.mxu0 %v1624
        %v1658 = vpop.f32.mrf.mxu0
        %v1659 = vadd.f32 %v1562, %v1658
        %v1660 = vpop.f32.mrf.mxu0
        %v1661 = vadd.f32 %v1564, %v1660
        %1662 = vmatmul.bf16.gmra.mxu0 %v1627
        %v1663 = vpop.f32.mrf.mxu0
        %v1664 = vadd.f32 %v1567, %v1663
        %v1665 = vpop.f32.mrf.mxu0
        %v1666 = vadd.f32 %v1569, %v1665
        %1667 = vmatmul.bf16.gmra.mxu0 %v1630
        %v1668 = vpop.f32.mrf.mxu0
        %v1669 = vadd.f32 %v1572, %v1668
        %v1670 = vpop.f32.mrf.mxu0
        %v1671 = vadd.f32 %v1574, %v1670
        %1672 = vmatmul.bf16.gmra.mxu0 %v1633
        %v1673 = vpop.f32.mrf.mxu0
        %v1674 = vadd.f32 %v1577, %v1673
        %v1675 = vpop.f32.mrf.mxu0
        %v1676 = vadd.f32 %v1579, %v1675
        %1677 = vmatmul.bf16.gmra.mxu0 %v1636
        %v1678 = vpop.f32.mrf.mxu0
        %v1679 = vadd.f32 %v1582, %v1678
        %v1680 = vpop.f32.mrf.mxu0
        %v1681 = vadd.f32 %v1584, %v1680
        %1682 = vmatmul.bf16.gmra.mxu0 %v1639
        %v1683 = vpop.f32.mrf.mxu0
        %v1684 = vadd.f32 %v1587, %v1683
        %v1685 = vpop.f32.mrf.mxu0
        %v1686 = vadd.f32 %v1589, %v1685
        %1687 = vmatmul.bf16.gmra.mxu0 %v1642
        %v1688 = vpop.f32.mrf.mxu0
        %v1689 = vadd.f32 %v1592, %v1688
        %v1690 = vpop.f32.mrf.mxu0
        %v1691 = vadd.f32 %v1594, %v1690
        %1692 = vdwg.mxu0
        %v1693 = vpack.c.bf16 %v1450, %v1449
        %v1694 = vpack.c.bf16 %v1452, %v1451
        %v1695 = vpack.c.bf16 %v1454, %v1453
        %v1696 = vpack.c.bf16 %v1456, %v1455
        %v1697 = vpack.c.bf16 %v1458, %v1457
        %v1698 = vpack.c.bf16 %v1460, %v1459
        %v1699 = vpack.c.bf16 %v1462, %v1461
        %v1700 = vpack.c.bf16 %v1464, %v1463
        %s1701 = scalar_lea.vmem %s3, 64
        %v1702 = vld [vmem:[%s1701] sm:$0xf]
        %v1703 = vld [vmem:[%s1701 + $0x4] sm:$0xf]
        %v1704 = vld [vmem:[%s1701 + $0x8] sm:$0xf]
        %v1705 = vld [vmem:[%s1701 + $0xc] sm:$0xf]
        %v1706 = vld [vmem:[%s1701 + $0x10] sm:$0xf]
        %v1707 = vld [vmem:[%s1701 + $0x14] sm:$0xf]
        %v1708 = vld [vmem:[%s1701 + $0x18] sm:$0xf]
        %v1709 = vld [vmem:[%s1701 + $0x1c] sm:$0xf]
        %v1718 = vunpack.c.l.b16 %v1702
        %v1719 = vunpack.c.l.b16 %v1703
        %v1720 = vunpack.c.l.b16 %v1704
        %v1721 = vunpack.c.l.b16 %v1705
        %v1722 = vunpack.c.l.b16 %v1706
        %v1723 = vunpack.c.l.b16 %v1707
        %v1724 = vunpack.c.l.b16 %v1708
        %v1725 = vunpack.c.l.b16 %v1709
        %v1726 = vpack.c.b16 %v1719, %v1718
        %v1727 = vpack.c.b16 %v1721, %v1720
        %v1728 = vpack.c.b16 %v1723, %v1722
        %v1729 = vpack.c.b16 %v1725, %v1724
        %v1735 = vsel %vm1522, %v1693, 0
        %v1738 = vsel %vm1522, %v1694, 0
        %v1741 = vsel %vm1522, %v1695, 0
        %v1744 = vsel %vm1522, %v1696, 0
        %v1747 = vsel %vm1522, %v1697, 0
        %v1750 = vsel %vm1522, %v1698, 0
        %v1753 = vsel %vm1522, %v1699, 0
        %v1756 = vsel %vm1522, %v1700, 0
        %1758 = vmatpush.bf16.msra.mxu0 0
        %1759 = vmatpush.bf16.msra.mxu0 0
        %1760 = vmatpush.bf16.msra.mxu0 0
        %1761 = vmatpush.bf16.msra.mxu0 0
        %1762 = vmatpush.bf16.msra.mxu0 %v1729
        %1763 = vmatpush.bf16.msra.mxu0 %v1728
        %1764 = vmatpush.bf16.msra.mxu0 %v1727
        %1765 = vmatpush.bf16.msra.mxu0 %v1726
        %1766 = vmatmul.bf16.gmra.mxu0 %v1735
        %v1767 = vpop.f32.mrf.mxu0
        %v1768 = vadd.f32 0.0, %v1767
        %v1769 = vpop.f32.mrf.mxu0
        %v1770 = vadd.f32 0.0, %v1769
        %1771 = vmatmul.bf16.gmra.mxu0 %v1738
        %v1772 = vpop.f32.mrf.mxu0
        %v1773 = vadd.f32 0.0, %v1772
        %v1774 = vpop.f32.mrf.mxu0
        %v1775 = vadd.f32 0.0, %v1774
        %1776 = vmatmul.bf16.gmra.mxu0 %v1741
        %v1777 = vpop.f32.mrf.mxu0
        %v1778 = vadd.f32 0.0, %v1777
        %v1779 = vpop.f32.mrf.mxu0
        %v1780 = vadd.f32 0.0, %v1779
        %1781 = vmatmul.bf16.gmra.mxu0 %v1744
        %v1782 = vpop.f32.mrf.mxu0
        %v1783 = vadd.f32 0.0, %v1782
        %v1784 = vpop.f32.mrf.mxu0
        %v1785 = vadd.f32 0.0, %v1784
        %1786 = vmatmul.bf16.gmra.mxu0 %v1747
        %v1787 = vpop.f32.mrf.mxu0
        %v1788 = vadd.f32 0.0, %v1787
        %v1789 = vpop.f32.mrf.mxu0
        %v1790 = vadd.f32 0.0, %v1789
        %1791 = vmatmul.bf16.gmra.mxu0 %v1750
        %v1792 = vpop.f32.mrf.mxu0
        %v1793 = vadd.f32 0.0, %v1792
        %v1794 = vpop.f32.mrf.mxu0
        %v1795 = vadd.f32 0.0, %v1794
        %1796 = vmatmul.bf16.gmra.mxu0 %v1753
        %v1797 = vpop.f32.mrf.mxu0
        %v1798 = vadd.f32 0.0, %v1797
        %v1799 = vpop.f32.mrf.mxu0
        %v1800 = vadd.f32 0.0, %v1799
        %1801 = vmatmul.bf16.gmra.mxu0 %v1756
        %v1802 = vpop.f32.mrf.mxu0
        %v1803 = vadd.f32 0.0, %v1802
        %v1804 = vpop.f32.mrf.mxu0
        %v1805 = vadd.f32 0.0, %v1804
        %1806 = vdwg.mxu0
        %v1807 = vadd.f32 %v1654, %v1768
        %v1808 = vadd.f32 %v1656, %v1770
        %v1809 = vadd.f32 %v1659, %v1773
        %v1810 = vadd.f32 %v1661, %v1775
        %v1811 = vadd.f32 %v1664, %v1778
        %v1812 = vadd.f32 %v1666, %v1780
        %v1813 = vadd.f32 %v1669, %v1783
        %v1814 = vadd.f32 %v1671, %v1785
        %v1815 = vadd.f32 %v1674, %v1788
        %v1816 = vadd.f32 %v1676, %v1790
        %v1817 = vadd.f32 %v1679, %v1793
        %v1818 = vadd.f32 %v1681, %v1795
        %v1819 = vadd.f32 %v1684, %v1798
        %v1820 = vadd.f32 %v1686, %v1800
        %v1821 = vadd.f32 %v1689, %v1803
        %v1822 = vadd.f32 %v1691, %v1805
        %v1823 = vld [vmem:[%s4] sm:$0x1]
        %v1825 = vperm.slane %v1823, 0
        %v1827 = vadd.f32 %v1807, %v1825
        %v1828 = vadd.f32 %v1808, %v1825
        %v1829 = vadd.f32 %v1809, %v1825
        %v1830 = vadd.f32 %v1810, %v1825
        %v1831 = vadd.f32 %v1811, %v1825
        %v1832 = vadd.f32 %v1812, %v1825
        %v1833 = vadd.f32 %v1813, %v1825
        %v1834 = vadd.f32 %v1814, %v1825
        %v1835 = vadd.f32 %v1815, %v1825
        %v1836 = vadd.f32 %v1816, %v1825
        %v1837 = vadd.f32 %v1817, %v1825
        %v1838 = vadd.f32 %v1818, %v1825
        %v1839 = vadd.f32 %v1819, %v1825
        %v1840 = vadd.f32 %v1820, %v1825
        %v1841 = vadd.f32 %v1821, %v1825
        %v1842 = vadd.f32 %v1822, %v1825
        %v1843 = vmax.f32 %v1827, 0.0
        %v1844 = vmax.f32 %v1828, 0.0
        %v1845 = vmax.f32 %v1829, 0.0
        %v1846 = vmax.f32 %v1830, 0.0
        %v1847 = vmax.f32 %v1831, 0.0
        %v1848 = vmax.f32 %v1832, 0.0
        %v1849 = vmax.f32 %v1833, 0.0
        %v1850 = vmax.f32 %v1834, 0.0
        %v1851 = vmax.f32 %v1835, 0.0
        %v1852 = vmax.f32 %v1836, 0.0
        %v1853 = vmax.f32 %v1837, 0.0
        %v1854 = vmax.f32 %v1838, 0.0
        %v1855 = vmax.f32 %v1839, 0.0
        %v1856 = vmax.f32 %v1840, 0.0
        %v1857 = vmax.f32 %v1841, 0.0
        %v1858 = vmax.f32 %v1842, 0.0
        %v1859 = vrot.slane %v1843, 7
        %v1860 = vrot.slane %v1844, 7
        %v1861 = vrot.slane %v1845, 7
        %v1862 = vrot.slane %v1846, 7
        %v1863 = vrot.slane %v1847, 7
        %v1864 = vrot.slane %v1848, 7
        %v1865 = vrot.slane %v1849, 7
        %v1866 = vrot.slane %v1850, 7
        %v1867 = vrot.slane %v1851, 7
        %v1868 = vrot.slane %v1852, 7
        %v1869 = vrot.slane %v1853, 7
        %v1870 = vrot.slane %v1854, 7
        %v1871 = vrot.slane %v1855, 7
        %v1872 = vrot.slane %v1856, 7
        %v1873 = vrot.slane %v1857, 7
        %v1874 = vrot.slane %v1858, 7
        %v1875 = vsel %vm863, %v1873, %v1874
        %v1876 = vsel %vm863, %v1872, %v1873
        %v1877 = vsel %vm863, %v1871, %v1872
        %v1878 = vsel %vm863, %v1870, %v1871
        %v1879 = vsel %vm863, %v1869, %v1870
        %v1880 = vsel %vm863, %v1868, %v1869
        %v1881 = vsel %vm863, %v1867, %v1868
        %v1882 = vsel %vm863, %v1866, %v1867
        %v1883 = vsel %vm863, %v1865, %v1866
        %v1884 = vsel %vm863, %v1864, %v1865
        %v1885 = vsel %vm863, %v1863, %v1864
        %v1886 = vsel %vm863, %v1862, %v1863
        %v1887 = vsel %vm863, %v1861, %v1862
        %v1888 = vsel %vm863, %v1860, %v1861
        %v1889 = vsel %vm863, %v1859, %v1860
        %v1890 = vsel %vm863, %v1874, %v1859
        %v1891 = vsel %vm1353, %v1890, 0.0
        %v1892 = vsel %vm1354, %v1889, 0.0
        %v1893 = vsel %vm1355, %v1888, 0.0
        %v1894 = vsel %vm1356, %v1887, 0.0
        %v1895 = vsel %vm1357, %v1886, 0.0
        %v1896 = vsel %vm1358, %v1885, 0.0
        %v1897 = vsel %vm1359, %v1884, 0.0
        %v1898 = vsel %vm1360, %v1883, 0.0
        %v1899 = vsel %vm1361, %v1882, 0.0
        %v1900 = vsel %vm1362, %v1881, 0.0
        %v1901 = vsel %vm1363, %v1880, 0.0
        %v1902 = vsel %vm1364, %v1879, 0.0
        %v1903 = vsel %vm1365, %v1878, 0.0
        %v1904 = vsel %vm1366, %v1877, 0.0
        %v1905 = vsel %vm1367, %v1876, 0.0
        %v1906 = vsel %vm1368, %v1875, 0.0
        %v1907 = vrot.slane %v1843, 1
        %v1908 = vrot.slane %v1844, 1
        %v1909 = vrot.slane %v1845, 1
        %v1910 = vrot.slane %v1846, 1
        %v1911 = vrot.slane %v1847, 1
        %v1912 = vrot.slane %v1848, 1
        %v1913 = vrot.slane %v1849, 1
        %v1914 = vrot.slane %v1850, 1
        %v1915 = vrot.slane %v1851, 1
        %v1916 = vrot.slane %v1852, 1
        %v1917 = vrot.slane %v1853, 1
        %v1918 = vrot.slane %v1854, 1
        %v1919 = vrot.slane %v1855, 1
        %v1920 = vrot.slane %v1856, 1
        %v1921 = vrot.slane %v1857, 1
        %v1922 = vrot.slane %v1858, 1
        %v1923 = vsel %vm912, %v1921, %v1922
        %v1924 = vsel %vm912, %v1920, %v1921
        %v1925 = vsel %vm912, %v1919, %v1920
        %v1926 = vsel %vm912, %v1918, %v1919
        %v1927 = vsel %vm912, %v1917, %v1918
        %v1928 = vsel %vm912, %v1916, %v1917
        %v1929 = vsel %vm912, %v1915, %v1916
        %v1930 = vsel %vm912, %v1914, %v1915
        %v1931 = vsel %vm912, %v1913, %v1914
        %v1932 = vsel %vm912, %v1912, %v1913
        %v1933 = vsel %vm912, %v1911, %v1912
        %v1934 = vsel %vm912, %v1910, %v1911
        %v1935 = vsel %vm912, %v1909, %v1910
        %v1936 = vsel %vm912, %v1908, %v1909
        %v1937 = vsel %vm912, %v1907, %v1908
        %v1938 = vsel %vm912, %v1922, %v1907
        %v1939 = vsel %vm1433, %v1937, 0.0
        %v1940 = vsel %vm1434, %v1936, 0.0
        %v1941 = vsel %vm1435, %v1935, 0.0
        %v1942 = vsel %vm1436, %v1934, 0.0
        %v1943 = vsel %vm1437, %v1933, 0.0
        %v1944 = vsel %vm1438, %v1932, 0.0
        %v1945 = vsel %vm1439, %v1931, 0.0
        %v1946 = vsel %vm1440, %v1930, 0.0
        %v1947 = vsel %vm1441, %v1929, 0.0
        %v1948 = vsel %vm1442, %v1928, 0.0
        %v1949 = vsel %vm1443, %v1927, 0.0
        %v1950 = vsel %vm1444, %v1926, 0.0
        %v1951 = vsel %vm1445, %v1925, 0.0
        %v1952 = vsel %vm1446, %v1924, 0.0
        %v1953 = vsel %vm1447, %v1923, 0.0
        %v1954 = vsel %vm1448, %v1938, 0.0
        %v1955 = vpack.c.bf16 %v1892, %v1891
        %v1956 = vpack.c.bf16 %v1894, %v1893
        %v1957 = vpack.c.bf16 %v1896, %v1895
        %v1958 = vpack.c.bf16 %v1898, %v1897
        %v1959 = vpack.c.bf16 %v1900, %v1899
        %v1960 = vpack.c.bf16 %v1902, %v1901
        %v1961 = vpack.c.bf16 %v1904, %v1903
        %v1962 = vpack.c.bf16 %v1906, %v1905
        %v1963 = vld [vmem:[%s5] sm:$0xf]
        %v1964 = vld [vmem:[%s5 + $0x4] sm:$0xf]
        %v1965 = vld [vmem:[%s5 + $0x8] sm:$0xf]
        %v1966 = vld [vmem:[%s5 + $0xc] sm:$0xf]
        %v1967 = vld [vmem:[%s5 + $0x10] sm:$0xf]
        %v1968 = vld [vmem:[%s5 + $0x14] sm:$0xf]
        %v1969 = vld [vmem:[%s5 + $0x18] sm:$0xf]
        %v1970 = vld [vmem:[%s5 + $0x1c] sm:$0xf]
        %v1971 = vpack.c.bf16 %v1844, %v1843
        %v1972 = vpack.c.bf16 %v1846, %v1845
        %v1973 = vpack.c.bf16 %v1848, %v1847
        %v1974 = vpack.c.bf16 %v1850, %v1849
        %v1975 = vpack.c.bf16 %v1852, %v1851
        %v1976 = vpack.c.bf16 %v1854, %v1853
        %v1977 = vpack.c.bf16 %v1856, %v1855
        %v1978 = vpack.c.bf16 %v1858, %v1857
        %s1979 = scalar_lea.vmem %s5, 32
        %v1980 = vld [vmem:[%s1979] sm:$0xf]
        %v1981 = vld [vmem:[%s1979 + $0x4] sm:$0xf]
        %v1982 = vld [vmem:[%s1979 + $0x8] sm:$0xf]
        %v1983 = vld [vmem:[%s1979 + $0xc] sm:$0xf]
        %v1984 = vld [vmem:[%s1979 + $0x10] sm:$0xf]
        %v1985 = vld [vmem:[%s1979 + $0x14] sm:$0xf]
        %v1986 = vld [vmem:[%s1979 + $0x18] sm:$0xf]
        %v1987 = vld [vmem:[%s1979 + $0x1c] sm:$0xf]
        %v1996 = vunpack.c.l.b16 %v1980
        %v1997 = vunpack.c.l.b16 %v1981
        %v1998 = vunpack.c.l.b16 %v1982
        %v1999 = vunpack.c.l.b16 %v1983
        %v2000 = vunpack.c.l.b16 %v1984
        %v2001 = vunpack.c.l.b16 %v1985
        %v2002 = vunpack.c.l.b16 %v1986
        %v2003 = vunpack.c.l.b16 %v1987
        %v2004 = vpack.c.b16 %v1997, %v1996
        %v2005 = vpack.c.b16 %v1999, %v1998
        %v2006 = vpack.c.b16 %v2001, %v2000
        %v2007 = vpack.c.b16 %v2003, %v2002
        %v2013 = vsel %vm1522, %v1971, 0
        %v2016 = vsel %vm1522, %v1972, 0
        %v2019 = vsel %vm1522, %v1973, 0
        %v2022 = vsel %vm1522, %v1974, 0
        %v2025 = vsel %vm1522, %v1975, 0
        %v2028 = vsel %vm1522, %v1976, 0
        %v2031 = vsel %vm1522, %v1977, 0
        %v2034 = vsel %vm1522, %v1978, 0
        %2036 = vmatpush.bf16.msra.mxu0 0
        %2037 = vmatpush.bf16.msra.mxu0 0
        %2038 = vmatpush.bf16.msra.mxu0 0
        %2039 = vmatpush.bf16.msra.mxu0 0
        %2040 = vmatpush.bf16.msra.mxu0 %v2007
        %2041 = vmatpush.bf16.msra.mxu0 %v2006
        %2042 = vmatpush.bf16.msra.mxu0 %v2005
        %2043 = vmatpush.bf16.msra.mxu0 %v2004
        %2044 = vmatmul.bf16.gmra.mxu0 %v2013
        %v2045 = vpop.f32.mrf.mxu0
        %v2046 = vadd.f32 0.0, %v2045
        %v2047 = vpop.f32.mrf.mxu0
        %v2048 = vadd.f32 0.0, %v2047
        %2049 = vmatmul.bf16.gmra.mxu0 %v2016
        %v2050 = vpop.f32.mrf.mxu0
        %v2051 = vadd.f32 0.0, %v2050
        %v2052 = vpop.f32.mrf.mxu0
        %v2053 = vadd.f32 0.0, %v2052
        %2054 = vmatmul.bf16.gmra.mxu0 %v2019
        %v2055 = vpop.f32.mrf.mxu0
        %v2056 = vadd.f32 0.0, %v2055
        %v2057 = vpop.f32.mrf.mxu0
        %v2058 = vadd.f32 0.0, %v2057
        %2059 = vmatmul.bf16.gmra.mxu0 %v2022
        %v2060 = vpop.f32.mrf.mxu0
        %v2061 = vadd.f32 0.0, %v2060
        %v2062 = vpop.f32.mrf.mxu0
        %v2063 = vadd.f32 0.0, %v2062
        %2064 = vmatmul.bf16.gmra.mxu0 %v2025
        %v2065 = vpop.f32.mrf.mxu0
        %v2066 = vadd.f32 0.0, %v2065
        %v2067 = vpop.f32.mrf.mxu0
        %v2068 = vadd.f32 0.0, %v2067
        %2069 = vmatmul.bf16.gmra.mxu0 %v2028
        %v2070 = vpop.f32.mrf.mxu0
        %v2071 = vadd.f32 0.0, %v2070
        %v2072 = vpop.f32.mrf.mxu0
        %v2073 = vadd.f32 0.0, %v2072
        %2074 = vmatmul.bf16.gmra.mxu0 %v2031
        %v2075 = vpop.f32.mrf.mxu0
        %v2076 = vadd.f32 0.0, %v2075
        %v2077 = vpop.f32.mrf.mxu0
        %v2078 = vadd.f32 0.0, %v2077
        %2079 = vmatmul.bf16.gmra.mxu0 %v2034
        %v2080 = vpop.f32.mrf.mxu0
        %v2081 = vadd.f32 0.0, %v2080
        %v2082 = vpop.f32.mrf.mxu0
        %v2083 = vadd.f32 0.0, %v2082
        %2084 = vdwg.mxu0
        %v2093 = vunpack.c.l.b16 %v1963
        %v2094 = vunpack.c.l.b16 %v1964
        %v2095 = vunpack.c.l.b16 %v1965
        %v2096 = vunpack.c.l.b16 %v1966
        %v2097 = vunpack.c.l.b16 %v1967
        %v2098 = vunpack.c.l.b16 %v1968
        %v2099 = vunpack.c.l.b16 %v1969
        %v2100 = vunpack.c.l.b16 %v1970
        %v2101 = vpack.c.b16 %v2094, %v2093
        %v2102 = vpack.c.b16 %v2096, %v2095
        %v2103 = vpack.c.b16 %v2098, %v2097
        %v2104 = vpack.c.b16 %v2100, %v2099
        %v2110 = vsel %vm1522, %v1955, 0
        %v2113 = vsel %vm1522, %v1956, 0
        %v2116 = vsel %vm1522, %v1957, 0
        %v2119 = vsel %vm1522, %v1958, 0
        %v2122 = vsel %vm1522, %v1959, 0
        %v2125 = vsel %vm1522, %v1960, 0
        %v2128 = vsel %vm1522, %v1961, 0
        %v2131 = vsel %vm1522, %v1962, 0
        %2133 = vmatpush.bf16.msra.mxu0 0
        %2134 = vmatpush.bf16.msra.mxu0 0
        %2135 = vmatpush.bf16.msra.mxu0 0
        %2136 = vmatpush.bf16.msra.mxu0 0
        %2137 = vmatpush.bf16.msra.mxu0 %v2104
        %2138 = vmatpush.bf16.msra.mxu0 %v2103
        %2139 = vmatpush.bf16.msra.mxu0 %v2102
        %2140 = vmatpush.bf16.msra.mxu0 %v2101
        %2141 = vmatmul.bf16.gmra.mxu0 %v2110
        %v2142 = vpop.f32.mrf.mxu0
        %v2143 = vadd.f32 %v2046, %v2142
        %v2144 = vpop.f32.mrf.mxu0
        %v2145 = vadd.f32 %v2048, %v2144
        %2146 = vmatmul.bf16.gmra.mxu0 %v2113
        %v2147 = vpop.f32.mrf.mxu0
        %v2148 = vadd.f32 %v2051, %v2147
        %v2149 = vpop.f32.mrf.mxu0
        %v2150 = vadd.f32 %v2053, %v2149
        %2151 = vmatmul.bf16.gmra.mxu0 %v2116
        %v2152 = vpop.f32.mrf.mxu0
        %v2153 = vadd.f32 %v2056, %v2152
        %v2154 = vpop.f32.mrf.mxu0
        %v2155 = vadd.f32 %v2058, %v2154
        %2156 = vmatmul.bf16.gmra.mxu0 %v2119
        %v2157 = vpop.f32.mrf.mxu0
        %v2158 = vadd.f32 %v2061, %v2157
        %v2159 = vpop.f32.mrf.mxu0
        %v2160 = vadd.f32 %v2063, %v2159
        %2161 = vmatmul.bf16.gmra.mxu0 %v2122
        %v2162 = vpop.f32.mrf.mxu0
        %v2163 = vadd.f32 %v2066, %v2162
        %v2164 = vpop.f32.mrf.mxu0
        %v2165 = vadd.f32 %v2068, %v2164
        %2166 = vmatmul.bf16.gmra.mxu0 %v2125
        %v2167 = vpop.f32.mrf.mxu0
        %v2168 = vadd.f32 %v2071, %v2167
        %v2169 = vpop.f32.mrf.mxu0
        %v2170 = vadd.f32 %v2073, %v2169
        %2171 = vmatmul.bf16.gmra.mxu0 %v2128
        %v2172 = vpop.f32.mrf.mxu0
        %v2173 = vadd.f32 %v2076, %v2172
        %v2174 = vpop.f32.mrf.mxu0
        %v2175 = vadd.f32 %v2078, %v2174
        %2176 = vmatmul.bf16.gmra.mxu0 %v2131
        %v2177 = vpop.f32.mrf.mxu0
        %v2178 = vadd.f32 %v2081, %v2177
        %v2179 = vpop.f32.mrf.mxu0
        %v2180 = vadd.f32 %v2083, %v2179
        %2181 = vdwg.mxu0
        %v2182 = vpack.c.bf16 %v1940, %v1939
        %v2183 = vpack.c.bf16 %v1942, %v1941
        %v2184 = vpack.c.bf16 %v1944, %v1943
        %v2185 = vpack.c.bf16 %v1946, %v1945
        %v2186 = vpack.c.bf16 %v1948, %v1947
        %v2187 = vpack.c.bf16 %v1950, %v1949
        %v2188 = vpack.c.bf16 %v1952, %v1951
        %v2189 = vpack.c.bf16 %v1954, %v1953
        %s2190 = scalar_lea.vmem %s5, 64
        %v2191 = vld [vmem:[%s2190] sm:$0xf]
        %v2192 = vld [vmem:[%s2190 + $0x4] sm:$0xf]
        %v2193 = vld [vmem:[%s2190 + $0x8] sm:$0xf]
        %v2194 = vld [vmem:[%s2190 + $0xc] sm:$0xf]
        %v2195 = vld [vmem:[%s2190 + $0x10] sm:$0xf]
        %v2196 = vld [vmem:[%s2190 + $0x14] sm:$0xf]
        %v2197 = vld [vmem:[%s2190 + $0x18] sm:$0xf]
        %v2198 = vld [vmem:[%s2190 + $0x1c] sm:$0xf]
        %v2207 = vunpack.c.l.b16 %v2191
        %v2208 = vunpack.c.l.b16 %v2192
        %v2209 = vunpack.c.l.b16 %v2193
        %v2210 = vunpack.c.l.b16 %v2194
        %v2211 = vunpack.c.l.b16 %v2195
        %v2212 = vunpack.c.l.b16 %v2196
        %v2213 = vunpack.c.l.b16 %v2197
        %v2214 = vunpack.c.l.b16 %v2198
        %v2215 = vpack.c.b16 %v2208, %v2207
        %v2216 = vpack.c.b16 %v2210, %v2209
        %v2217 = vpack.c.b16 %v2212, %v2211
        %v2218 = vpack.c.b16 %v2214, %v2213
        %v2224 = vsel %vm1522, %v2182, 0
        %v2227 = vsel %vm1522, %v2183, 0
        %v2230 = vsel %vm1522, %v2184, 0
        %v2233 = vsel %vm1522, %v2185, 0
        %v2236 = vsel %vm1522, %v2186, 0
        %v2239 = vsel %vm1522, %v2187, 0
        %v2242 = vsel %vm1522, %v2188, 0
        %v2245 = vsel %vm1522, %v2189, 0
        %2247 = vmatpush.bf16.msra.mxu0 0
        %2248 = vmatpush.bf16.msra.mxu0 0
        %2249 = vmatpush.bf16.msra.mxu0 0
        %2250 = vmatpush.bf16.msra.mxu0 0
        %2251 = vmatpush.bf16.msra.mxu0 %v2218
        %2252 = vmatpush.bf16.msra.mxu0 %v2217
        %2253 = vmatpush.bf16.msra.mxu0 %v2216
        %2254 = vmatpush.bf16.msra.mxu0 %v2215
        %2255 = vmatmul.bf16.gmra.mxu0 %v2224
        %v2256 = vpop.f32.mrf.mxu0
        %v2257 = vadd.f32 0.0, %v2256
        %v2258 = vpop.f32.mrf.mxu0
        %v2259 = vadd.f32 0.0, %v2258
        %2260 = vmatmul.bf16.gmra.mxu0 %v2227
        %v2261 = vpop.f32.mrf.mxu0
        %v2262 = vadd.f32 0.0, %v2261
        %v2263 = vpop.f32.mrf.mxu0
        %v2264 = vadd.f32 0.0, %v2263
        %2265 = vmatmul.bf16.gmra.mxu0 %v2230
        %v2266 = vpop.f32.mrf.mxu0
        %v2267 = vadd.f32 0.0, %v2266
        %v2268 = vpop.f32.mrf.mxu0
        %v2269 = vadd.f32 0.0, %v2268
        %2270 = vmatmul.bf16.gmra.mxu0 %v2233
        %v2271 = vpop.f32.mrf.mxu0
        %v2272 = vadd.f32 0.0, %v2271
        %v2273 = vpop.f32.mrf.mxu0
        %v2274 = vadd.f32 0.0, %v2273
        %2275 = vmatmul.bf16.gmra.mxu0 %v2236
        %v2276 = vpop.f32.mrf.mxu0
        %v2277 = vadd.f32 0.0, %v2276
        %v2278 = vpop.f32.mrf.mxu0
        %v2279 = vadd.f32 0.0, %v2278
        %2280 = vmatmul.bf16.gmra.mxu0 %v2239
        %v2281 = vpop.f32.mrf.mxu0
        %v2282 = vadd.f32 0.0, %v2281
        %v2283 = vpop.f32.mrf.mxu0
        %v2284 = vadd.f32 0.0, %v2283
        %2285 = vmatmul.bf16.gmra.mxu0 %v2242
        %v2286 = vpop.f32.mrf.mxu0
        %v2287 = vadd.f32 0.0, %v2286
        %v2288 = vpop.f32.mrf.mxu0
        %v2289 = vadd.f32 0.0, %v2288
        %2290 = vmatmul.bf16.gmra.mxu0 %v2245
        %v2291 = vpop.f32.mrf.mxu0
        %v2292 = vadd.f32 0.0, %v2291
        %v2293 = vpop.f32.mrf.mxu0
        %v2294 = vadd.f32 0.0, %v2293
        %2295 = vdwg.mxu0
        %v2296 = vadd.f32 %v2143, %v2257
        %v2297 = vadd.f32 %v2145, %v2259
        %v2298 = vadd.f32 %v2148, %v2262
        %v2299 = vadd.f32 %v2150, %v2264
        %v2300 = vadd.f32 %v2153, %v2267
        %v2301 = vadd.f32 %v2155, %v2269
        %v2302 = vadd.f32 %v2158, %v2272
        %v2303 = vadd.f32 %v2160, %v2274
        %v2304 = vadd.f32 %v2163, %v2277
        %v2305 = vadd.f32 %v2165, %v2279
        %v2306 = vadd.f32 %v2168, %v2282
        %v2307 = vadd.f32 %v2170, %v2284
        %v2308 = vadd.f32 %v2173, %v2287
        %v2309 = vadd.f32 %v2175, %v2289
        %v2310 = vadd.f32 %v2178, %v2292
        %v2311 = vadd.f32 %v2180, %v2294
        %v2312 = vld [vmem:[%s6] sm:$0x1]
        %v2314 = vperm.slane %v2312, 0
        %v2316 = vadd.f32 %v2296, %v2314
        %v2317 = vadd.f32 %v2297, %v2314
        %v2318 = vadd.f32 %v2298, %v2314
        %v2319 = vadd.f32 %v2299, %v2314
        %v2320 = vadd.f32 %v2300, %v2314
        %v2321 = vadd.f32 %v2301, %v2314
        %v2322 = vadd.f32 %v2302, %v2314
        %v2323 = vadd.f32 %v2303, %v2314
        %v2324 = vadd.f32 %v2304, %v2314
        %v2325 = vadd.f32 %v2305, %v2314
        %v2326 = vadd.f32 %v2306, %v2314
        %v2327 = vadd.f32 %v2307, %v2314
        %v2328 = vadd.f32 %v2308, %v2314
        %v2329 = vadd.f32 %v2309, %v2314
        %v2330 = vadd.f32 %v2310, %v2314
        %v2331 = vadd.f32 %v2311, %v2314
        %v2332 = vadd.f32 %v2316, %v1289
        %v2333 = vadd.f32 %v2317, %v1290
        %v2334 = vadd.f32 %v2318, %v1291
        %v2335 = vadd.f32 %v2319, %v1292
        %v2336 = vadd.f32 %v2320, %v1293
        %v2337 = vadd.f32 %v2321, %v1294
        %v2338 = vadd.f32 %v2322, %v1295
        %v2339 = vadd.f32 %v2323, %v1296
        %v2340 = vadd.f32 %v2324, %v1297
        %v2341 = vadd.f32 %v2325, %v1298
        %v2342 = vadd.f32 %v2326, %v1299
        %v2343 = vadd.f32 %v2327, %v1300
        %v2344 = vadd.f32 %v2328, %v1301
        %v2345 = vadd.f32 %v2329, %v1302
        %v2346 = vadd.f32 %v2330, %v1303
        %v2347 = vadd.f32 %v2331, %v1304
        %v2348 = vmax.f32 %v2332, 0.0
        %v2349 = vmax.f32 %v2333, 0.0
        %v2350 = vmax.f32 %v2334, 0.0
        %v2351 = vmax.f32 %v2335, 0.0
        %v2352 = vmax.f32 %v2336, 0.0
        %v2353 = vmax.f32 %v2337, 0.0
        %v2354 = vmax.f32 %v2338, 0.0
        %v2355 = vmax.f32 %v2339, 0.0
        %v2356 = vmax.f32 %v2340, 0.0
        %v2357 = vmax.f32 %v2341, 0.0
        %v2358 = vmax.f32 %v2342, 0.0
        %v2359 = vmax.f32 %v2343, 0.0
        %v2360 = vmax.f32 %v2344, 0.0
        %v2361 = vmax.f32 %v2345, 0.0
        %v2362 = vmax.f32 %v2346, 0.0
        %v2363 = vmax.f32 %v2347, 0.0
        %v2364 = vrot.slane %v2348, 7
        %v2365 = vrot.slane %v2349, 7
        %v2366 = vrot.slane %v2350, 7
        %v2367 = vrot.slane %v2351, 7
        %v2368 = vrot.slane %v2352, 7
        %v2369 = vrot.slane %v2353, 7
        %v2370 = vrot.slane %v2354, 7
        %v2371 = vrot.slane %v2355, 7
        %v2372 = vrot.slane %v2356, 7
        %v2373 = vrot.slane %v2357, 7
        %v2374 = vrot.slane %v2358, 7
        %v2375 = vrot.slane %v2359, 7
        %v2376 = vrot.slane %v2360, 7
        %v2377 = vrot.slane %v2361, 7
        %v2378 = vrot.slane %v2362, 7
        %v2379 = vrot.slane %v2363, 7
        %v2380 = vsel %vm863, %v2378, %v2379
        %v2381 = vsel %vm863, %v2377, %v2378
        %v2382 = vsel %vm863, %v2376, %v2377
        %v2383 = vsel %vm863, %v2375, %v2376
        %v2384 = vsel %vm863, %v2374, %v2375
        %v2385 = vsel %vm863, %v2373, %v2374
        %v2386 = vsel %vm863, %v2372, %v2373
        %v2387 = vsel %vm863, %v2371, %v2372
        %v2388 = vsel %vm863, %v2370, %v2371
        %v2389 = vsel %vm863, %v2369, %v2370
        %v2390 = vsel %vm863, %v2368, %v2369
        %v2391 = vsel %vm863, %v2367, %v2368
        %v2392 = vsel %vm863, %v2366, %v2367
        %v2393 = vsel %vm863, %v2365, %v2366
        %v2394 = vsel %vm863, %v2364, %v2365
        %v2395 = vsel %vm863, %v2379, %v2364
        %v2396 = vsel %vm1353, %v2395, 0.0
        %v2397 = vsel %vm1354, %v2394, 0.0
        %v2398 = vsel %vm1355, %v2393, 0.0
        %v2399 = vsel %vm1356, %v2392, 0.0
        %v2400 = vsel %vm1357, %v2391, 0.0
        %v2401 = vsel %vm1358, %v2390, 0.0
        %v2402 = vsel %vm1359, %v2389, 0.0
        %v2403 = vsel %vm1360, %v2388, 0.0
        %v2404 = vsel %vm1361, %v2387, 0.0
        %v2405 = vsel %vm1362, %v2386, 0.0
        %v2406 = vsel %vm1363, %v2385, 0.0
        %v2407 = vsel %vm1364, %v2384, 0.0
        %v2408 = vsel %vm1365, %v2383, 0.0
        %v2409 = vsel %vm1366, %v2382, 0.0
        %v2410 = vsel %vm1367, %v2381, 0.0
        %v2411 = vsel %vm1368, %v2380, 0.0
        %v2412 = vrot.slane %v2348, 1
        %v2413 = vrot.slane %v2349, 1
        %v2414 = vrot.slane %v2350, 1
        %v2415 = vrot.slane %v2351, 1
        %v2416 = vrot.slane %v2352, 1
        %v2417 = vrot.slane %v2353, 1
        %v2418 = vrot.slane %v2354, 1
        %v2419 = vrot.slane %v2355, 1
        %v2420 = vrot.slane %v2356, 1
        %v2421 = vrot.slane %v2357, 1
        %v2422 = vrot.slane %v2358, 1
        %v2423 = vrot.slane %v2359, 1
        %v2424 = vrot.slane %v2360, 1
        %v2425 = vrot.slane %v2361, 1
        %v2426 = vrot.slane %v2362, 1
        %v2427 = vrot.slane %v2363, 1
        %v2428 = vsel %vm912, %v2426, %v2427
        %v2429 = vsel %vm912, %v2425, %v2426
        %v2430 = vsel %vm912, %v2424, %v2425
        %v2431 = vsel %vm912, %v2423, %v2424
        %v2432 = vsel %vm912, %v2422, %v2423
        %v2433 = vsel %vm912, %v2421, %v2422
        %v2434 = vsel %vm912, %v2420, %v2421
        %v2435 = vsel %vm912, %v2419, %v2420
        %v2436 = vsel %vm912, %v2418, %v2419
        %v2437 = vsel %vm912, %v2417, %v2418
        %v2438 = vsel %vm912, %v2416, %v2417
        %v2439 = vsel %vm912, %v2415, %v2416
        %v2440 = vsel %vm912, %v2414, %v2415
        %v2441 = vsel %vm912, %v2413, %v2414
        %v2442 = vsel %vm912, %v2412, %v2413
        %v2443 = vsel %vm912, %v2427, %v2412
        %v2444 = vsel %vm1433, %v2442, 0.0
        %v2445 = vsel %vm1434, %v2441, 0.0
        %v2446 = vsel %vm1435, %v2440, 0.0
        %v2447 = vsel %vm1436, %v2439, 0.0
        %v2448 = vsel %vm1437, %v2438, 0.0
        %v2449 = vsel %vm1438, %v2437, 0.0
        %v2450 = vsel %vm1439, %v2436, 0.0
        %v2451 = vsel %vm1440, %v2435, 0.0
        %v2452 = vsel %vm1441, %v2434, 0.0
        %v2453 = vsel %vm1442, %v2433, 0.0
        %v2454 = vsel %vm1443, %v2432, 0.0
        %v2455 = vsel %vm1444, %v2431, 0.0
        %v2456 = vsel %vm1445, %v2430, 0.0
        %v2457 = vsel %vm1446, %v2429, 0.0
        %v2458 = vsel %vm1447, %v2428, 0.0
        %v2459 = vsel %vm1448, %v2443, 0.0
        %v2460 = vpack.c.bf16 %v2397, %v2396
        %v2461 = vpack.c.bf16 %v2399, %v2398
        %v2462 = vpack.c.bf16 %v2401, %v2400
        %v2463 = vpack.c.bf16 %v2403, %v2402
        %v2464 = vpack.c.bf16 %v2405, %v2404
        %v2465 = vpack.c.bf16 %v2407, %v2406
        %v2466 = vpack.c.bf16 %v2409, %v2408
        %v2467 = vpack.c.bf16 %v2411, %v2410
        %v2468 = vld [vmem:[#allocation2] sm:$0xf]
        %v2469 = vld [vmem:[#allocation2 + $0x4] sm:$0xf]
        %v2470 = vld [vmem:[#allocation2 + $0x8] sm:$0xf]
        %v2471 = vld [vmem:[#allocation2 + $0xc] sm:$0xf]
        %v2472 = vld [vmem:[#allocation2 + $0x10] sm:$0xf]
        %v2473 = vld [vmem:[#allocation2 + $0x14] sm:$0xf]
        %v2474 = vld [vmem:[#allocation2 + $0x18] sm:$0xf]
        %v2475 = vld [vmem:[#allocation2 + $0x1c] sm:$0xf]
        %v2476 = vpack.c.bf16 %v2349, %v2348
        %v2477 = vpack.c.bf16 %v2351, %v2350
        %v2478 = vpack.c.bf16 %v2353, %v2352
        %v2479 = vpack.c.bf16 %v2355, %v2354
        %v2480 = vpack.c.bf16 %v2357, %v2356
        %v2481 = vpack.c.bf16 %v2359, %v2358
        %v2482 = vpack.c.bf16 %v2361, %v2360
        %v2483 = vpack.c.bf16 %v2363, %v2362
        %s2484 = scalar_lea.vmem [#allocation2], 32
        %v2485 = vld [vmem:[%s2484] sm:$0xf]
        %v2486 = vld [vmem:[%s2484 + $0x4] sm:$0xf]
        %v2487 = vld [vmem:[%s2484 + $0x8] sm:$0xf]
        %v2488 = vld [vmem:[%s2484 + $0xc] sm:$0xf]
        %v2489 = vld [vmem:[%s2484 + $0x10] sm:$0xf]
        %v2490 = vld [vmem:[%s2484 + $0x14] sm:$0xf]
        %v2491 = vld [vmem:[%s2484 + $0x18] sm:$0xf]
        %v2492 = vld [vmem:[%s2484 + $0x1c] sm:$0xf]
        %v2501 = vunpack.c.l.b16 %v2485
        %v2502 = vunpack.c.l.b16 %v2486
        %v2503 = vunpack.c.l.b16 %v2487
        %v2504 = vunpack.c.l.b16 %v2488
        %v2505 = vunpack.c.l.b16 %v2489
        %v2506 = vunpack.c.l.b16 %v2490
        %v2507 = vunpack.c.l.b16 %v2491
        %v2508 = vunpack.c.l.b16 %v2492
        %v2509 = vpack.c.b16 %v2502, %v2501
        %v2510 = vpack.c.b16 %v2504, %v2503
        %v2511 = vpack.c.b16 %v2506, %v2505
        %v2512 = vpack.c.b16 %v2508, %v2507
        %v2518 = vsel %vm1522, %v2476, 0
        %v2521 = vsel %vm1522, %v2477, 0
        %v2524 = vsel %vm1522, %v2478, 0
        %v2527 = vsel %vm1522, %v2479, 0
        %v2530 = vsel %vm1522, %v2480, 0
        %v2533 = vsel %vm1522, %v2481, 0
        %v2536 = vsel %vm1522, %v2482, 0
        %v2539 = vsel %vm1522, %v2483, 0
        %2541 = vmatpush.bf16.msra.mxu0 0
        %2542 = vmatpush.bf16.msra.mxu0 0
        %2543 = vmatpush.bf16.msra.mxu0 0
        %2544 = vmatpush.bf16.msra.mxu0 0
        %2545 = vmatpush.bf16.msra.mxu0 %v2512
        %2546 = vmatpush.bf16.msra.mxu0 %v2511
        %2547 = vmatpush.bf16.msra.mxu0 %v2510
        %2548 = vmatpush.bf16.msra.mxu0 %v2509
        %2549 = vmatmul.bf16.gmra.mxu0 %v2518
        %v2550 = vpop.f32.mrf.mxu0
        %v2551 = vadd.f32 0.0, %v2550
        %v2552 = vpop.f32.mrf.mxu0
        %v2553 = vadd.f32 0.0, %v2552
        %2554 = vmatmul.bf16.gmra.mxu0 %v2521
        %v2555 = vpop.f32.mrf.mxu0
        %v2556 = vadd.f32 0.0, %v2555
        %v2557 = vpop.f32.mrf.mxu0
        %v2558 = vadd.f32 0.0, %v2557
        %2559 = vmatmul.bf16.gmra.mxu0 %v2524
        %v2560 = vpop.f32.mrf.mxu0
        %v2561 = vadd.f32 0.0, %v2560
        %v2562 = vpop.f32.mrf.mxu0
        %v2563 = vadd.f32 0.0, %v2562
        %2564 = vmatmul.bf16.gmra.mxu0 %v2527
        %v2565 = vpop.f32.mrf.mxu0
        %v2566 = vadd.f32 0.0, %v2565
        %v2567 = vpop.f32.mrf.mxu0
        %v2568 = vadd.f32 0.0, %v2567
        %2569 = vmatmul.bf16.gmra.mxu0 %v2530
        %v2570 = vpop.f32.mrf.mxu0
        %v2571 = vadd.f32 0.0, %v2570
        %v2572 = vpop.f32.mrf.mxu0
        %v2573 = vadd.f32 0.0, %v2572
        %2574 = vmatmul.bf16.gmra.mxu0 %v2533
        %v2575 = vpop.f32.mrf.mxu0
        %v2576 = vadd.f32 0.0, %v2575
        %v2577 = vpop.f32.mrf.mxu0
        %v2578 = vadd.f32 0.0, %v2577
        %2579 = vmatmul.bf16.gmra.mxu0 %v2536
        %v2580 = vpop.f32.mrf.mxu0
        %v2581 = vadd.f32 0.0, %v2580
        %v2582 = vpop.f32.mrf.mxu0
        %v2583 = vadd.f32 0.0, %v2582
        %2584 = vmatmul.bf16.gmra.mxu0 %v2539
        %v2585 = vpop.f32.mrf.mxu0
        %v2586 = vadd.f32 0.0, %v2585
        %v2587 = vpop.f32.mrf.mxu0
        %v2588 = vadd.f32 0.0, %v2587
        %2589 = vdwg.mxu0
        %v2598 = vunpack.c.l.b16 %v2468
        %v2599 = vunpack.c.l.b16 %v2469
        %v2600 = vunpack.c.l.b16 %v2470
        %v2601 = vunpack.c.l.b16 %v2471
        %v2602 = vunpack.c.l.b16 %v2472
        %v2603 = vunpack.c.l.b16 %v2473
        %v2604 = vunpack.c.l.b16 %v2474
        %v2605 = vunpack.c.l.b16 %v2475
        %v2606 = vpack.c.b16 %v2599, %v2598
        %v2607 = vpack.c.b16 %v2601, %v2600
        %v2608 = vpack.c.b16 %v2603, %v2602
        %v2609 = vpack.c.b16 %v2605, %v2604
        %v2615 = vsel %vm1522, %v2460, 0
        %v2618 = vsel %vm1522, %v2461, 0
        %v2621 = vsel %vm1522, %v2462, 0
        %v2624 = vsel %vm1522, %v2463, 0
        %v2627 = vsel %vm1522, %v2464, 0
        %v2630 = vsel %vm1522, %v2465, 0
        %v2633 = vsel %vm1522, %v2466, 0
        %v2636 = vsel %vm1522, %v2467, 0
        %2638 = vmatpush.bf16.msra.mxu0 0
        %2639 = vmatpush.bf16.msra.mxu0 0
        %2640 = vmatpush.bf16.msra.mxu0 0
        %2641 = vmatpush.bf16.msra.mxu0 0
        %2642 = vmatpush.bf16.msra.mxu0 %v2609
        %2643 = vmatpush.bf16.msra.mxu0 %v2608
        %2644 = vmatpush.bf16.msra.mxu0 %v2607
        %2645 = vmatpush.bf16.msra.mxu0 %v2606
        %2646 = vmatmul.bf16.gmra.mxu0 %v2615
        %v2647 = vpop.f32.mrf.mxu0
        %v2648 = vadd.f32 %v2551, %v2647
        %v2649 = vpop.f32.mrf.mxu0
        %v2650 = vadd.f32 %v2553, %v2649
        %2651 = vmatmul.bf16.gmra.mxu0 %v2618
        %v2652 = vpop.f32.mrf.mxu0
        %v2653 = vadd.f32 %v2556, %v2652
        %v2654 = vpop.f32.mrf.mxu0
        %v2655 = vadd.f32 %v2558, %v2654
        %2656 = vmatmul.bf16.gmra.mxu0 %v2621
        %v2657 = vpop.f32.mrf.mxu0
        %v2658 = vadd.f32 %v2561, %v2657
        %v2659 = vpop.f32.mrf.mxu0
        %v2660 = vadd.f32 %v2563, %v2659
        %2661 = vmatmul.bf16.gmra.mxu0 %v2624
        %v2662 = vpop.f32.mrf.mxu0
        %v2663 = vadd.f32 %v2566, %v2662
        %v2664 = vpop.f32.mrf.mxu0
        %v2665 = vadd.f32 %v2568, %v2664
        %2666 = vmatmul.bf16.gmra.mxu0 %v2627
        %v2667 = vpop.f32.mrf.mxu0
        %v2668 = vadd.f32 %v2571, %v2667
        %v2669 = vpop.f32.mrf.mxu0
        %v2670 = vadd.f32 %v2573, %v2669
        %2671 = vmatmul.bf16.gmra.mxu0 %v2630
        %v2672 = vpop.f32.mrf.mxu0
        %v2673 = vadd.f32 %v2576, %v2672
        %v2674 = vpop.f32.mrf.mxu0
        %v2675 = vadd.f32 %v2578, %v2674
        %2676 = vmatmul.bf16.gmra.mxu0 %v2633
        %v2677 = vpop.f32.mrf.mxu0
        %v2678 = vadd.f32 %v2581, %v2677
        %v2679 = vpop.f32.mrf.mxu0
        %v2680 = vadd.f32 %v2583, %v2679
        %2681 = vmatmul.bf16.gmra.mxu0 %v2636
        %v2682 = vpop.f32.mrf.mxu0
        %v2683 = vadd.f32 %v2586, %v2682
        %v2684 = vpop.f32.mrf.mxu0
        %v2685 = vadd.f32 %v2588, %v2684
        %2686 = vdwg.mxu0
        %v2687 = vpack.c.bf16 %v2445, %v2444
        %v2688 = vpack.c.bf16 %v2447, %v2446
        %v2689 = vpack.c.bf16 %v2449, %v2448
        %v2690 = vpack.c.bf16 %v2451, %v2450
        %v2691 = vpack.c.bf16 %v2453, %v2452
        %v2692 = vpack.c.bf16 %v2455, %v2454
        %v2693 = vpack.c.bf16 %v2457, %v2456
        %v2694 = vpack.c.bf16 %v2459, %v2458
        %s2695 = scalar_lea.vmem [#allocation2], 64
        %v2696 = vld [vmem:[%s2695] sm:$0xf]
        %v2697 = vld [vmem:[%s2695 + $0x4] sm:$0xf]
        %v2698 = vld [vmem:[%s2695 + $0x8] sm:$0xf]
        %v2699 = vld [vmem:[%s2695 + $0xc] sm:$0xf]
        %v2700 = vld [vmem:[%s2695 + $0x10] sm:$0xf]
        %v2701 = vld [vmem:[%s2695 + $0x14] sm:$0xf]
        %v2702 = vld [vmem:[%s2695 + $0x18] sm:$0xf]
        %v2703 = vld [vmem:[%s2695 + $0x1c] sm:$0xf]
        %v2712 = vunpack.c.l.b16 %v2696
        %v2713 = vunpack.c.l.b16 %v2697
        %v2714 = vunpack.c.l.b16 %v2698
        %v2715 = vunpack.c.l.b16 %v2699
        %v2716 = vunpack.c.l.b16 %v2700
        %v2717 = vunpack.c.l.b16 %v2701
        %v2718 = vunpack.c.l.b16 %v2702
        %v2719 = vunpack.c.l.b16 %v2703
        %v2720 = vpack.c.b16 %v2713, %v2712
        %v2721 = vpack.c.b16 %v2715, %v2714
        %v2722 = vpack.c.b16 %v2717, %v2716
        %v2723 = vpack.c.b16 %v2719, %v2718
        %v2729 = vsel %vm1522, %v2687, 0
        %v2732 = vsel %vm1522, %v2688, 0
        %v2735 = vsel %vm1522, %v2689, 0
        %v2738 = vsel %vm1522, %v2690, 0
        %v2741 = vsel %vm1522, %v2691, 0
        %v2744 = vsel %vm1522, %v2692, 0
        %v2747 = vsel %vm1522, %v2693, 0
        %v2750 = vsel %vm1522, %v2694, 0
        %2752 = vmatpush.bf16.msra.mxu0 0
        %2753 = vmatpush.bf16.msra.mxu0 0
        %2754 = vmatpush.bf16.msra.mxu0 0
        %2755 = vmatpush.bf16.msra.mxu0 0
        %2756 = vmatpush.bf16.msra.mxu0 %v2723
        %2757 = vmatpush.bf16.msra.mxu0 %v2722
        %2758 = vmatpush.bf16.msra.mxu0 %v2721
        %2759 = vmatpush.bf16.msra.mxu0 %v2720
        %2760 = vmatmul.bf16.gmra.mxu0 %v2729
        %v2761 = vpop.f32.mrf.mxu0
        %v2762 = vadd.f32 0.0, %v2761
        %v2763 = vpop.f32.mrf.mxu0
        %v2764 = vadd.f32 0.0, %v2763
        %2765 = vmatmul.bf16.gmra.mxu0 %v2732
        %v2766 = vpop.f32.mrf.mxu0
        %v2767 = vadd.f32 0.0, %v2766
        %v2768 = vpop.f32.mrf.mxu0
        %v2769 = vadd.f32 0.0, %v2768
        %2770 = vmatmul.bf16.gmra.mxu0 %v2735
        %v2771 = vpop.f32.mrf.mxu0
        %v2772 = vadd.f32 0.0, %v2771
        %v2773 = vpop.f32.mrf.mxu0
        %v2774 = vadd.f32 0.0, %v2773
        %2775 = vmatmul.bf16.gmra.mxu0 %v2738
        %v2776 = vpop.f32.mrf.mxu0
        %v2777 = vadd.f32 0.0, %v2776
        %v2778 = vpop.f32.mrf.mxu0
        %v2779 = vadd.f32 0.0, %v2778
        %2780 = vmatmul.bf16.gmra.mxu0 %v2741
        %v2781 = vpop.f32.mrf.mxu0
        %v2782 = vadd.f32 0.0, %v2781
        %v2783 = vpop.f32.mrf.mxu0
        %v2784 = vadd.f32 0.0, %v2783
        %2785 = vmatmul.bf16.gmra.mxu0 %v2744
        %v2786 = vpop.f32.mrf.mxu0
        %v2787 = vadd.f32 0.0, %v2786
        %v2788 = vpop.f32.mrf.mxu0
        %v2789 = vadd.f32 0.0, %v2788
        %2790 = vmatmul.bf16.gmra.mxu0 %v2747
        %v2791 = vpop.f32.mrf.mxu0
        %v2792 = vadd.f32 0.0, %v2791
        %v2793 = vpop.f32.mrf.mxu0
        %v2794 = vadd.f32 0.0, %v2793
        %2795 = vmatmul.bf16.gmra.mxu0 %v2750
        %v2796 = vpop.f32.mrf.mxu0
        %v2797 = vadd.f32 0.0, %v2796
        %v2798 = vpop.f32.mrf.mxu0
        %v2799 = vadd.f32 0.0, %v2798
        %2800 = vdwg.mxu0
        %v2801 = vadd.f32 %v2648, %v2762
        %v2802 = vadd.f32 %v2650, %v2764
        %v2803 = vadd.f32 %v2653, %v2767
        %v2804 = vadd.f32 %v2655, %v2769
        %v2805 = vadd.f32 %v2658, %v2772
        %v2806 = vadd.f32 %v2660, %v2774
        %v2807 = vadd.f32 %v2663, %v2777
        %v2808 = vadd.f32 %v2665, %v2779
        %v2809 = vadd.f32 %v2668, %v2782
        %v2810 = vadd.f32 %v2670, %v2784
        %v2811 = vadd.f32 %v2673, %v2787
        %v2812 = vadd.f32 %v2675, %v2789
        %v2813 = vadd.f32 %v2678, %v2792
        %v2814 = vadd.f32 %v2680, %v2794
        %v2815 = vadd.f32 %v2683, %v2797
        %v2816 = vadd.f32 %v2685, %v2799
        %v2817 = vld [vmem:[%s8] sm:$0x1]
        %v2819 = vperm.slane %v2817, 0
        %v2821 = vadd.f32 %v2801, %v2819
        %v2822 = vadd.f32 %v2802, %v2819
        %v2823 = vadd.f32 %v2803, %v2819
        %v2824 = vadd.f32 %v2804, %v2819
        %v2825 = vadd.f32 %v2805, %v2819
        %v2826 = vadd.f32 %v2806, %v2819
        %v2827 = vadd.f32 %v2807, %v2819
        %v2828 = vadd.f32 %v2808, %v2819
        %v2829 = vadd.f32 %v2809, %v2819
        %v2830 = vadd.f32 %v2810, %v2819
        %v2831 = vadd.f32 %v2811, %v2819
        %v2832 = vadd.f32 %v2812, %v2819
        %v2833 = vadd.f32 %v2813, %v2819
        %v2834 = vadd.f32 %v2814, %v2819
        %v2835 = vadd.f32 %v2815, %v2819
        %v2836 = vadd.f32 %v2816, %v2819
        %v2837 = vmax.f32 %v2821, 0.0
        %v2838 = vmax.f32 %v2822, 0.0
        %v2839 = vmax.f32 %v2823, 0.0
        %v2840 = vmax.f32 %v2824, 0.0
        %v2841 = vmax.f32 %v2825, 0.0
        %v2842 = vmax.f32 %v2826, 0.0
        %v2843 = vmax.f32 %v2827, 0.0
        %v2844 = vmax.f32 %v2828, 0.0
        %v2845 = vmax.f32 %v2829, 0.0
        %v2846 = vmax.f32 %v2830, 0.0
        %v2847 = vmax.f32 %v2831, 0.0
        %v2848 = vmax.f32 %v2832, 0.0
        %v2849 = vmax.f32 %v2833, 0.0
        %v2850 = vmax.f32 %v2834, 0.0
        %v2851 = vmax.f32 %v2835, 0.0
        %v2852 = vmax.f32 %v2836, 0.0
        %v2853 = vrot.slane %v2837, 7
        %v2854 = vrot.slane %v2838, 7
        %v2855 = vrot.slane %v2839, 7
        %v2856 = vrot.slane %v2840, 7
        %v2857 = vrot.slane %v2841, 7
        %v2858 = vrot.slane %v2842, 7
        %v2859 = vrot.slane %v2843, 7
        %v2860 = vrot.slane %v2844, 7
        %v2861 = vrot.slane %v2845, 7
        %v2862 = vrot.slane %v2846, 7
        %v2863 = vrot.slane %v2847, 7
        %v2864 = vrot.slane %v2848, 7
        %v2865 = vrot.slane %v2849, 7
        %v2866 = vrot.slane %v2850, 7
        %v2867 = vrot.slane %v2851, 7
        %v2868 = vrot.slane %v2852, 7
        %v2869 = vsel %vm863, %v2867, %v2868
        %v2870 = vsel %vm863, %v2866, %v2867
        %v2871 = vsel %vm863, %v2865, %v2866
        %v2872 = vsel %vm863, %v2864, %v2865
        %v2873 = vsel %vm863, %v2863, %v2864
        %v2874 = vsel %vm863, %v2862, %v2863
        %v2875 = vsel %vm863, %v2861, %v2862
        %v2876 = vsel %vm863, %v2860, %v2861
        %v2877 = vsel %vm863, %v2859, %v2860
        %v2878 = vsel %vm863, %v2858, %v2859
        %v2879 = vsel %vm863, %v2857, %v2858
        %v2880 = vsel %vm863, %v2856, %v2857
        %v2881 = vsel %vm863, %v2855, %v2856
        %v2882 = vsel %vm863, %v2854, %v2855
        %v2883 = vsel %vm863, %v2853, %v2854
        %v2884 = vsel %vm863, %v2868, %v2853
        %v2885 = vsel %vm1353, %v2884, 0.0
        %v2886 = vsel %vm1354, %v2883, 0.0
        %v2887 = vsel %vm1355, %v2882, 0.0
        %v2888 = vsel %vm1356, %v2881, 0.0
        %v2889 = vsel %vm1357, %v2880, 0.0
        %v2890 = vsel %vm1358, %v2879, 0.0
        %v2891 = vsel %vm1359, %v2878, 0.0
        %v2892 = vsel %vm1360, %v2877, 0.0
        %v2893 = vsel %vm1361, %v2876, 0.0
        %v2894 = vsel %vm1362, %v2875, 0.0
        %v2895 = vsel %vm1363, %v2874, 0.0
        %v2896 = vsel %vm1364, %v2873, 0.0
        %v2897 = vsel %vm1365, %v2872, 0.0
        %v2898 = vsel %vm1366, %v2871, 0.0
        %v2899 = vsel %vm1367, %v2870, 0.0
        %v2900 = vsel %vm1368, %v2869, 0.0
        %v2901 = vrot.slane %v2837, 1
        %v2902 = vrot.slane %v2838, 1
        %v2903 = vrot.slane %v2839, 1
        %v2904 = vrot.slane %v2840, 1
        %v2905 = vrot.slane %v2841, 1
        %v2906 = vrot.slane %v2842, 1
        %v2907 = vrot.slane %v2843, 1
        %v2908 = vrot.slane %v2844, 1
        %v2909 = vrot.slane %v2845, 1
        %v2910 = vrot.slane %v2846, 1
        %v2911 = vrot.slane %v2847, 1
        %v2912 = vrot.slane %v2848, 1
        %v2913 = vrot.slane %v2849, 1
        %v2914 = vrot.slane %v2850, 1
        %v2915 = vrot.slane %v2851, 1
        %v2916 = vrot.slane %v2852, 1
        %v2917 = vsel %vm912, %v2915, %v2916
        %v2918 = vsel %vm912, %v2914, %v2915
        %v2919 = vsel %vm912, %v2913, %v2914
        %v2920 = vsel %vm912, %v2912, %v2913
        %v2921 = vsel %vm912, %v2911, %v2912
        %v2922 = vsel %vm912, %v2910, %v2911
        %v2923 = vsel %vm912, %v2909, %v2910
        %v2924 = vsel %vm912, %v2908, %v2909
        %v2925 = vsel %vm912, %v2907, %v2908
        %v2926 = vsel %vm912, %v2906, %v2907
        %v2927 = vsel %vm912, %v2905, %v2906
        %v2928 = vsel %vm912, %v2904, %v2905
        %v2929 = vsel %vm912, %v2903, %v2904
        %v2930 = vsel %vm912, %v2902, %v2903
        %v2931 = vsel %vm912, %v2901, %v2902
        %v2932 = vsel %vm912, %v2916, %v2901
        %v2933 = vsel %vm1433, %v2931, 0.0
        %v2934 = vsel %vm1434, %v2930, 0.0
        %v2935 = vsel %vm1435, %v2929, 0.0
        %v2936 = vsel %vm1436, %v2928, 0.0
        %v2937 = vsel %vm1437, %v2927, 0.0
        %v2938 = vsel %vm1438, %v2926, 0.0
        %v2939 = vsel %vm1439, %v2925, 0.0
        %v2940 = vsel %vm1440, %v2924, 0.0
        %v2941 = vsel %vm1441, %v2923, 0.0
        %v2942 = vsel %vm1442, %v2922, 0.0
        %v2943 = vsel %vm1443, %v2921, 0.0
        %v2944 = vsel %vm1444, %v2920, 0.0
        %v2945 = vsel %vm1445, %v2919, 0.0
        %v2946 = vsel %vm1446, %v2918, 0.0
        %v2947 = vsel %vm1447, %v2917, 0.0
        %v2948 = vsel %vm1448, %v2932, 0.0
        %v2949 = vpack.c.bf16 %v2886, %v2885
        %v2950 = vpack.c.bf16 %v2888, %v2887
        %v2951 = vpack.c.bf16 %v2890, %v2889
        %v2952 = vpack.c.bf16 %v2892, %v2891
        %v2953 = vpack.c.bf16 %v2894, %v2893
        %v2954 = vpack.c.bf16 %v2896, %v2895
        %v2955 = vpack.c.bf16 %v2898, %v2897
        %v2956 = vpack.c.bf16 %v2900, %v2899
        %v2957 = vld [vmem:[#allocation5] sm:$0xf]
        %v2958 = vld [vmem:[#allocation5 + $0x4] sm:$0xf]
        %v2959 = vld [vmem:[#allocation5 + $0x8] sm:$0xf]
        %v2960 = vld [vmem:[#allocation5 + $0xc] sm:$0xf]
        %v2961 = vld [vmem:[#allocation5 + $0x10] sm:$0xf]
        %v2962 = vld [vmem:[#allocation5 + $0x14] sm:$0xf]
        %v2963 = vld [vmem:[#allocation5 + $0x18] sm:$0xf]
        %v2964 = vld [vmem:[#allocation5 + $0x1c] sm:$0xf]
        %v2965 = vpack.c.bf16 %v2838, %v2837
        %v2966 = vpack.c.bf16 %v2840, %v2839
        %v2967 = vpack.c.bf16 %v2842, %v2841
        %v2968 = vpack.c.bf16 %v2844, %v2843
        %v2969 = vpack.c.bf16 %v2846, %v2845
        %v2970 = vpack.c.bf16 %v2848, %v2847
        %v2971 = vpack.c.bf16 %v2850, %v2849
        %v2972 = vpack.c.bf16 %v2852, %v2851
        %s2973 = scalar_lea.vmem [#allocation5], 32
        %v2974 = vld [vmem:[%s2973] sm:$0xf]
        %v2975 = vld [vmem:[%s2973 + $0x4] sm:$0xf]
        %v2976 = vld [vmem:[%s2973 + $0x8] sm:$0xf]
        %v2977 = vld [vmem:[%s2973 + $0xc] sm:$0xf]
        %v2978 = vld [vmem:[%s2973 + $0x10] sm:$0xf]
        %v2979 = vld [vmem:[%s2973 + $0x14] sm:$0xf]
        %v2980 = vld [vmem:[%s2973 + $0x18] sm:$0xf]
        %v2981 = vld [vmem:[%s2973 + $0x1c] sm:$0xf]
        %v2990 = vunpack.c.l.b16 %v2974
        %v2991 = vunpack.c.l.b16 %v2975
        %v2992 = vunpack.c.l.b16 %v2976
        %v2993 = vunpack.c.l.b16 %v2977
        %v2994 = vunpack.c.l.b16 %v2978
        %v2995 = vunpack.c.l.b16 %v2979
        %v2996 = vunpack.c.l.b16 %v2980
        %v2997 = vunpack.c.l.b16 %v2981
        %v2998 = vpack.c.b16 %v2991, %v2990
        %v2999 = vpack.c.b16 %v2993, %v2992
        %v3000 = vpack.c.b16 %v2995, %v2994
        %v3001 = vpack.c.b16 %v2997, %v2996
        %v3007 = vsel %vm1522, %v2965, 0
        %v3010 = vsel %vm1522, %v2966, 0
        %v3013 = vsel %vm1522, %v2967, 0
        %v3016 = vsel %vm1522, %v2968, 0
        %v3019 = vsel %vm1522, %v2969, 0
        %v3022 = vsel %vm1522, %v2970, 0
        %v3025 = vsel %vm1522, %v2971, 0
        %v3028 = vsel %vm1522, %v2972, 0
        %3030 = vmatpush.bf16.msra.mxu0 0
        %3031 = vmatpush.bf16.msra.mxu0 0
        %3032 = vmatpush.bf16.msra.mxu0 0
        %3033 = vmatpush.bf16.msra.mxu0 0
        %3034 = vmatpush.bf16.msra.mxu0 %v3001
        %3035 = vmatpush.bf16.msra.mxu0 %v3000
        %3036 = vmatpush.bf16.msra.mxu0 %v2999
        %3037 = vmatpush.bf16.msra.mxu0 %v2998
        %3038 = vmatmul.bf16.gmra.mxu0 %v3007
        %v3039 = vpop.f32.mrf.mxu0
        %v3040 = vadd.f32 0.0, %v3039
        %v3041 = vpop.f32.mrf.mxu0
        %v3042 = vadd.f32 0.0, %v3041
        %3043 = vmatmul.bf16.gmra.mxu0 %v3010
        %v3044 = vpop.f32.mrf.mxu0
        %v3045 = vadd.f32 0.0, %v3044
        %v3046 = vpop.f32.mrf.mxu0
        %v3047 = vadd.f32 0.0, %v3046
        %3048 = vmatmul.bf16.gmra.mxu0 %v3013
        %v3049 = vpop.f32.mrf.mxu0
        %v3050 = vadd.f32 0.0, %v3049
        %v3051 = vpop.f32.mrf.mxu0
        %v3052 = vadd.f32 0.0, %v3051
        %3053 = vmatmul.bf16.gmra.mxu0 %v3016
        %v3054 = vpop.f32.mrf.mxu0
        %v3055 = vadd.f32 0.0, %v3054
        %v3056 = vpop.f32.mrf.mxu0
        %v3057 = vadd.f32 0.0, %v3056
        %3058 = vmatmul.bf16.gmra.mxu0 %v3019
        %v3059 = vpop.f32.mrf.mxu0
        %v3060 = vadd.f32 0.0, %v3059
        %v3061 = vpop.f32.mrf.mxu0
        %v3062 = vadd.f32 0.0, %v3061
        %3063 = vmatmul.bf16.gmra.mxu0 %v3022
        %v3064 = vpop.f32.mrf.mxu0
        %v3065 = vadd.f32 0.0, %v3064
        %v3066 = vpop.f32.mrf.mxu0
        %v3067 = vadd.f32 0.0, %v3066
        %3068 = vmatmul.bf16.gmra.mxu0 %v3025
        %v3069 = vpop.f32.mrf.mxu0
        %v3070 = vadd.f32 0.0, %v3069
        %v3071 = vpop.f32.mrf.mxu0
        %v3072 = vadd.f32 0.0, %v3071
        %3073 = vmatmul.bf16.gmra.mxu0 %v3028
        %v3074 = vpop.f32.mrf.mxu0
        %v3075 = vadd.f32 0.0, %v3074
        %v3076 = vpop.f32.mrf.mxu0
        %v3077 = vadd.f32 0.0, %v3076
        %3078 = vdwg.mxu0
        %v3087 = vunpack.c.l.b16 %v2957
        %v3088 = vunpack.c.l.b16 %v2958
        %v3089 = vunpack.c.l.b16 %v2959
        %v3090 = vunpack.c.l.b16 %v2960
        %v3091 = vunpack.c.l.b16 %v2961
        %v3092 = vunpack.c.l.b16 %v2962
        %v3093 = vunpack.c.l.b16 %v2963
        %v3094 = vunpack.c.l.b16 %v2964
        %v3095 = vpack.c.b16 %v3088, %v3087
        %v3096 = vpack.c.b16 %v3090, %v3089
        %v3097 = vpack.c.b16 %v3092, %v3091
        %v3098 = vpack.c.b16 %v3094, %v3093
        %v3104 = vsel %vm1522, %v2949, 0
        %v3107 = vsel %vm1522, %v2950, 0
        %v3110 = vsel %vm1522, %v2951, 0
        %v3113 = vsel %vm1522, %v2952, 0
        %v3116 = vsel %vm1522, %v2953, 0
        %v3119 = vsel %vm1522, %v2954, 0
        %v3122 = vsel %vm1522, %v2955, 0
        %v3125 = vsel %vm1522, %v2956, 0
        %3127 = vmatpush.bf16.msra.mxu0 0
        %3128 = vmatpush.bf16.msra.mxu0 0
        %3129 = vmatpush.bf16.msra.mxu0 0
        %3130 = vmatpush.bf16.msra.mxu0 0
        %3131 = vmatpush.bf16.msra.mxu0 %v3098
        %3132 = vmatpush.bf16.msra.mxu0 %v3097
        %3133 = vmatpush.bf16.msra.mxu0 %v3096
        %3134 = vmatpush.bf16.msra.mxu0 %v3095
        %3135 = vmatmul.bf16.gmra.mxu0 %v3104
        %v3136 = vpop.f32.mrf.mxu0
        %v3137 = vadd.f32 %v3040, %v3136
        %v3138 = vpop.f32.mrf.mxu0
        %v3139 = vadd.f32 %v3042, %v3138
        %3140 = vmatmul.bf16.gmra.mxu0 %v3107
        %v3141 = vpop.f32.mrf.mxu0
        %v3142 = vadd.f32 %v3045, %v3141
        %v3143 = vpop.f32.mrf.mxu0
        %v3144 = vadd.f32 %v3047, %v3143
        %3145 = vmatmul.bf16.gmra.mxu0 %v3110
        %v3146 = vpop.f32.mrf.mxu0
        %v3147 = vadd.f32 %v3050, %v3146
        %v3148 = vpop.f32.mrf.mxu0
        %v3149 = vadd.f32 %v3052, %v3148
        %3150 = vmatmul.bf16.gmra.mxu0 %v3113
        %v3151 = vpop.f32.mrf.mxu0
        %v3152 = vadd.f32 %v3055, %v3151
        %v3153 = vpop.f32.mrf.mxu0
        %v3154 = vadd.f32 %v3057, %v3153
        %3155 = vmatmul.bf16.gmra.mxu0 %v3116
        %v3156 = vpop.f32.mrf.mxu0
        %v3157 = vadd.f32 %v3060, %v3156
        %v3158 = vpop.f32.mrf.mxu0
        %v3159 = vadd.f32 %v3062, %v3158
        %3160 = vmatmul.bf16.gmra.mxu0 %v3119
        %v3161 = vpop.f32.mrf.mxu0
        %v3162 = vadd.f32 %v3065, %v3161
        %v3163 = vpop.f32.mrf.mxu0
        %v3164 = vadd.f32 %v3067, %v3163
        %3165 = vmatmul.bf16.gmra.mxu0 %v3122
        %v3166 = vpop.f32.mrf.mxu0
        %v3167 = vadd.f32 %v3070, %v3166
        %v3168 = vpop.f32.mrf.mxu0
        %v3169 = vadd.f32 %v3072, %v3168
        %3170 = vmatmul.bf16.gmra.mxu0 %v3125
        %v3171 = vpop.f32.mrf.mxu0
        %v3172 = vadd.f32 %v3075, %v3171
        %v3173 = vpop.f32.mrf.mxu0
        %v3174 = vadd.f32 %v3077, %v3173
        %3175 = vdwg.mxu0
        %v3176 = vpack.c.bf16 %v2934, %v2933
        %v3177 = vpack.c.bf16 %v2936, %v2935
        %v3178 = vpack.c.bf16 %v2938, %v2937
        %v3179 = vpack.c.bf16 %v2940, %v2939
        %v3180 = vpack.c.bf16 %v2942, %v2941
        %v3181 = vpack.c.bf16 %v2944, %v2943
        %v3182 = vpack.c.bf16 %v2946, %v2945
        %v3183 = vpack.c.bf16 %v2948, %v2947
        %s3184 = scalar_lea.vmem [#allocation5], 64
        %v3185 = vld [vmem:[%s3184] sm:$0xf]
        %v3186 = vld [vmem:[%s3184 + $0x4] sm:$0xf]
        %v3187 = vld [vmem:[%s3184 + $0x8] sm:$0xf]
        %v3188 = vld [vmem:[%s3184 + $0xc] sm:$0xf]
        %v3189 = vld [vmem:[%s3184 + $0x10] sm:$0xf]
        %v3190 = vld [vmem:[%s3184 + $0x14] sm:$0xf]
        %v3191 = vld [vmem:[%s3184 + $0x18] sm:$0xf]
        %v3192 = vld [vmem:[%s3184 + $0x1c] sm:$0xf]
        %v3201 = vunpack.c.l.b16 %v3185
        %v3202 = vunpack.c.l.b16 %v3186
        %v3203 = vunpack.c.l.b16 %v3187
        %v3204 = vunpack.c.l.b16 %v3188
        %v3205 = vunpack.c.l.b16 %v3189
        %v3206 = vunpack.c.l.b16 %v3190
        %v3207 = vunpack.c.l.b16 %v3191
        %v3208 = vunpack.c.l.b16 %v3192
        %v3209 = vpack.c.b16 %v3202, %v3201
        %v3210 = vpack.c.b16 %v3204, %v3203
        %v3211 = vpack.c.b16 %v3206, %v3205
        %v3212 = vpack.c.b16 %v3208, %v3207
        %v3218 = vsel %vm1522, %v3176, 0
        %v3221 = vsel %vm1522, %v3177, 0
        %v3224 = vsel %vm1522, %v3178, 0
        %v3227 = vsel %vm1522, %v3179, 0
        %v3230 = vsel %vm1522, %v3180, 0
        %v3233 = vsel %vm1522, %v3181, 0
        %v3236 = vsel %vm1522, %v3182, 0
        %v3239 = vsel %vm1522, %v3183, 0
        %3241 = vmatpush.bf16.msra.mxu0 0
        %3242 = vmatpush.bf16.msra.mxu0 0
        %3243 = vmatpush.bf16.msra.mxu0 0
        %3244 = vmatpush.bf16.msra.mxu0 0
        %3245 = vmatpush.bf16.msra.mxu0 %v3212
        %3246 = vmatpush.bf16.msra.mxu0 %v3211
        %3247 = vmatpush.bf16.msra.mxu0 %v3210
        %3248 = vmatpush.bf16.msra.mxu0 %v3209
        %3249 = vmatmul.bf16.gmra.mxu0 %v3218
        %v3250 = vpop.f32.mrf.mxu0
        %v3251 = vadd.f32 0.0, %v3250
        %v3252 = vpop.f32.mrf.mxu0
        %v3253 = vadd.f32 0.0, %v3252
        %3254 = vmatmul.bf16.gmra.mxu0 %v3221
        %v3255 = vpop.f32.mrf.mxu0
        %v3256 = vadd.f32 0.0, %v3255
        %v3257 = vpop.f32.mrf.mxu0
        %v3258 = vadd.f32 0.0, %v3257
        %3259 = vmatmul.bf16.gmra.mxu0 %v3224
        %v3260 = vpop.f32.mrf.mxu0
        %v3261 = vadd.f32 0.0, %v3260
        %v3262 = vpop.f32.mrf.mxu0
        %v3263 = vadd.f32 0.0, %v3262
        %3264 = vmatmul.bf16.gmra.mxu0 %v3227
        %v3265 = vpop.f32.mrf.mxu0
        %v3266 = vadd.f32 0.0, %v3265
        %v3267 = vpop.f32.mrf.mxu0
        %v3268 = vadd.f32 0.0, %v3267
        %3269 = vmatmul.bf16.gmra.mxu0 %v3230
        %v3270 = vpop.f32.mrf.mxu0
        %v3271 = vadd.f32 0.0, %v3270
        %v3272 = vpop.f32.mrf.mxu0
        %v3273 = vadd.f32 0.0, %v3272
        %3274 = vmatmul.bf16.gmra.mxu0 %v3233
        %v3275 = vpop.f32.mrf.mxu0
        %v3276 = vadd.f32 0.0, %v3275
        %v3277 = vpop.f32.mrf.mxu0
        %v3278 = vadd.f32 0.0, %v3277
        %3279 = vmatmul.bf16.gmra.mxu0 %v3236
        %v3280 = vpop.f32.mrf.mxu0
        %v3281 = vadd.f32 0.0, %v3280
        %v3282 = vpop.f32.mrf.mxu0
        %v3283 = vadd.f32 0.0, %v3282
        %3284 = vmatmul.bf16.gmra.mxu0 %v3239
        %v3285 = vpop.f32.mrf.mxu0
        %v3286 = vadd.f32 0.0, %v3285
        %v3287 = vpop.f32.mrf.mxu0
        %v3288 = vadd.f32 0.0, %v3287
        %3289 = vdwg.mxu0
        %v3290 = vadd.f32 %v3137, %v3251
        %v3291 = vadd.f32 %v3139, %v3253
        %v3292 = vadd.f32 %v3142, %v3256
        %v3293 = vadd.f32 %v3144, %v3258
        %v3294 = vadd.f32 %v3147, %v3261
        %v3295 = vadd.f32 %v3149, %v3263
        %v3296 = vadd.f32 %v3152, %v3266
        %v3297 = vadd.f32 %v3154, %v3268
        %v3298 = vadd.f32 %v3157, %v3271
        %v3299 = vadd.f32 %v3159, %v3273
        %v3300 = vadd.f32 %v3162, %v3276
        %v3301 = vadd.f32 %v3164, %v3278
        %v3302 = vadd.f32 %v3167, %v3281
        %v3303 = vadd.f32 %v3169, %v3283
        %v3304 = vadd.f32 %v3172, %v3286
        %v3305 = vadd.f32 %v3174, %v3288
        %v3306 = vld [vmem:[%s10] sm:$0x1]
        %v3308 = vperm.slane %v3306, 0
        %v3310 = vadd.f32 %v3290, %v3308
        %v3311 = vadd.f32 %v3291, %v3308
        %v3312 = vadd.f32 %v3292, %v3308
        %v3313 = vadd.f32 %v3293, %v3308
        %v3314 = vadd.f32 %v3294, %v3308
        %v3315 = vadd.f32 %v3295, %v3308
        %v3316 = vadd.f32 %v3296, %v3308
        %v3317 = vadd.f32 %v3297, %v3308
        %v3318 = vadd.f32 %v3298, %v3308
        %v3319 = vadd.f32 %v3299, %v3308
        %v3320 = vadd.f32 %v3300, %v3308
        %v3321 = vadd.f32 %v3301, %v3308
        %v3322 = vadd.f32 %v3302, %v3308
        %v3323 = vadd.f32 %v3303, %v3308
        %v3324 = vadd.f32 %v3304, %v3308
        %v3325 = vadd.f32 %v3305, %v3308
        %v3326 = vadd.f32 %v3310, %v2348
        %v3327 = vadd.f32 %v3311, %v2349
        %v3328 = vadd.f32 %v3312, %v2350
        %v3329 = vadd.f32 %v3313, %v2351
        %v3330 = vadd.f32 %v3314, %v2352
        %v3331 = vadd.f32 %v3315, %v2353
        %v3332 = vadd.f32 %v3316, %v2354
        %v3333 = vadd.f32 %v3317, %v2355
        %v3334 = vadd.f32 %v3318, %v2356
        %v3335 = vadd.f32 %v3319, %v2357
        %v3336 = vadd.f32 %v3320, %v2358
        %v3337 = vadd.f32 %v3321, %v2359
        %v3338 = vadd.f32 %v3322, %v2360
        %v3339 = vadd.f32 %v3323, %v2361
        %v3340 = vadd.f32 %v3324, %v2362
        %v3341 = vadd.f32 %v3325, %v2363
        %v3342 = vmax.f32 %v3326, 0.0
        %v3343 = vmax.f32 %v3327, 0.0
        %v3344 = vmax.f32 %v3328, 0.0
        %v3345 = vmax.f32 %v3329, 0.0
        %v3346 = vmax.f32 %v3330, 0.0
        %v3347 = vmax.f32 %v3331, 0.0
        %v3348 = vmax.f32 %v3332, 0.0
        %v3349 = vmax.f32 %v3333, 0.0
        %v3350 = vmax.f32 %v3334, 0.0
        %v3351 = vmax.f32 %v3335, 0.0
        %v3352 = vmax.f32 %v3336, 0.0
        %v3353 = vmax.f32 %v3337, 0.0
        %v3354 = vmax.f32 %v3338, 0.0
        %v3355 = vmax.f32 %v3339, 0.0
        %v3356 = vmax.f32 %v3340, 0.0
        %v3357 = vmax.f32 %v3341, 0.0
        %v3358 = vrot.slane %v3342, 7
        %v3359 = vrot.slane %v3343, 7
        %v3360 = vrot.slane %v3344, 7
        %v3361 = vrot.slane %v3345, 7
        %v3362 = vrot.slane %v3346, 7
        %v3363 = vrot.slane %v3347, 7
        %v3364 = vrot.slane %v3348, 7
        %v3365 = vrot.slane %v3349, 7
        %v3366 = vrot.slane %v3350, 7
        %v3367 = vrot.slane %v3351, 7
        %v3368 = vrot.slane %v3352, 7
        %v3369 = vrot.slane %v3353, 7
        %v3370 = vrot.slane %v3354, 7
        %v3371 = vrot.slane %v3355, 7
        %v3372 = vrot.slane %v3356, 7
        %v3373 = vrot.slane %v3357, 7
        %v3374 = vsel %vm863, %v3372, %v3373
        %v3375 = vsel %vm863, %v3371, %v3372
        %v3376 = vsel %vm863, %v3370, %v3371
        %v3377 = vsel %vm863, %v3369, %v3370
        %v3378 = vsel %vm863, %v3368, %v3369
        %v3379 = vsel %vm863, %v3367, %v3368
        %v3380 = vsel %vm863, %v3366, %v3367
        %v3381 = vsel %vm863, %v3365, %v3366
        %v3382 = vsel %vm863, %v3364, %v3365
        %v3383 = vsel %vm863, %v3363, %v3364
        %v3384 = vsel %vm863, %v3362, %v3363
        %v3385 = vsel %vm863, %v3361, %v3362
        %v3386 = vsel %vm863, %v3360, %v3361
        %v3387 = vsel %vm863, %v3359, %v3360
        %v3388 = vsel %vm863, %v3358, %v3359
        %v3389 = vsel %vm863, %v3373, %v3358
        %v3390 = vsel %vm1353, %v3389, 0.0
        %v3391 = vsel %vm1354, %v3388, 0.0
        %v3392 = vsel %vm1355, %v3387, 0.0
        %v3393 = vsel %vm1356, %v3386, 0.0
        %v3394 = vsel %vm1357, %v3385, 0.0
        %v3395 = vsel %vm1358, %v3384, 0.0
        %v3396 = vsel %vm1359, %v3383, 0.0
        %v3397 = vsel %vm1360, %v3382, 0.0
        %v3398 = vsel %vm1361, %v3381, 0.0
        %v3399 = vsel %vm1362, %v3380, 0.0
        %v3400 = vsel %vm1363, %v3379, 0.0
        %v3401 = vsel %vm1364, %v3378, 0.0
        %v3402 = vsel %vm1365, %v3377, 0.0
        %v3403 = vsel %vm1366, %v3376, 0.0
        %v3404 = vsel %vm1367, %v3375, 0.0
        %v3405 = vsel %vm1368, %v3374, 0.0
        %v3406 = vrot.slane %v3342, 1
        %v3407 = vrot.slane %v3343, 1
        %v3408 = vrot.slane %v3344, 1
        %v3409 = vrot.slane %v3345, 1
        %v3410 = vrot.slane %v3346, 1
        %v3411 = vrot.slane %v3347, 1
        %v3412 = vrot.slane %v3348, 1
        %v3413 = vrot.slane %v3349, 1
        %v3414 = vrot.slane %v3350, 1
        %v3415 = vrot.slane %v3351, 1
        %v3416 = vrot.slane %v3352, 1
        %v3417 = vrot.slane %v3353, 1
        %v3418 = vrot.slane %v3354, 1
        %v3419 = vrot.slane %v3355, 1
        %v3420 = vrot.slane %v3356, 1
        %v3421 = vrot.slane %v3357, 1
        %v3422 = vsel %vm912, %v3420, %v3421
        %v3423 = vsel %vm912, %v3419, %v3420
        %v3424 = vsel %vm912, %v3418, %v3419
        %v3425 = vsel %vm912, %v3417, %v3418
        %v3426 = vsel %vm912, %v3416, %v3417
        %v3427 = vsel %vm912, %v3415, %v3416
        %v3428 = vsel %vm912, %v3414, %v3415
        %v3429 = vsel %vm912, %v3413, %v3414
        %v3430 = vsel %vm912, %v3412, %v3413
        %v3431 = vsel %vm912, %v3411, %v3412
        %v3432 = vsel %vm912, %v3410, %v3411
        %v3433 = vsel %vm912, %v3409, %v3410
        %v3434 = vsel %vm912, %v3408, %v3409
        %v3435 = vsel %vm912, %v3407, %v3408
        %v3436 = vsel %vm912, %v3406, %v3407
        %v3437 = vsel %vm912, %v3421, %v3406
        %v3438 = vsel %vm1433, %v3436, 0.0
        %v3439 = vsel %vm1434, %v3435, 0.0
        %v3440 = vsel %vm1435, %v3434, 0.0
        %v3441 = vsel %vm1436, %v3433, 0.0
        %v3442 = vsel %vm1437, %v3432, 0.0
        %v3443 = vsel %vm1438, %v3431, 0.0
        %v3444 = vsel %vm1439, %v3430, 0.0
        %v3445 = vsel %vm1440, %v3429, 0.0
        %v3446 = vsel %vm1441, %v3428, 0.0
        %v3447 = vsel %vm1442, %v3427, 0.0
        %v3448 = vsel %vm1443, %v3426, 0.0
        %v3449 = vsel %vm1444, %v3425, 0.0
        %v3450 = vsel %vm1445, %v3424, 0.0
        %v3451 = vsel %vm1446, %v3423, 0.0
        %v3452 = vsel %vm1447, %v3422, 0.0
        %v3453 = vsel %vm1448, %v3437, 0.0
        %v3454 = vpack.c.bf16 %v3391, %v3390
        %v3455 = vpack.c.bf16 %v3393, %v3392
        %v3456 = vpack.c.bf16 %v3395, %v3394
        %v3457 = vpack.c.bf16 %v3397, %v3396
        %v3458 = vpack.c.bf16 %v3399, %v3398
        %v3459 = vpack.c.bf16 %v3401, %v3400
        %v3460 = vpack.c.bf16 %v3403, %v3402
        %v3461 = vpack.c.bf16 %v3405, %v3404
        %v3462 = vld [vmem:[#allocation7] sm:$0xf]
        %v3463 = vld [vmem:[#allocation7 + $0x4] sm:$0xf]
        %v3464 = vld [vmem:[#allocation7 + $0x8] sm:$0xf]
        %v3465 = vld [vmem:[#allocation7 + $0xc] sm:$0xf]
        %v3466 = vld [vmem:[#allocation7 + $0x10] sm:$0xf]
        %v3467 = vld [vmem:[#allocation7 + $0x14] sm:$0xf]
        %v3468 = vld [vmem:[#allocation7 + $0x18] sm:$0xf]
        %v3469 = vld [vmem:[#allocation7 + $0x1c] sm:$0xf]
        %v3470 = vpack.c.bf16 %v3343, %v3342
        %v3471 = vpack.c.bf16 %v3345, %v3344
        %v3472 = vpack.c.bf16 %v3347, %v3346
        %v3473 = vpack.c.bf16 %v3349, %v3348
        %v3474 = vpack.c.bf16 %v3351, %v3350
        %v3475 = vpack.c.bf16 %v3353, %v3352
        %v3476 = vpack.c.bf16 %v3355, %v3354
        %v3477 = vpack.c.bf16 %v3357, %v3356
        %s3478 = scalar_lea.vmem [#allocation7], 32
        %v3479 = vld [vmem:[%s3478] sm:$0xf]
        %v3480 = vld [vmem:[%s3478 + $0x4] sm:$0xf]
        %v3481 = vld [vmem:[%s3478 + $0x8] sm:$0xf]
        %v3482 = vld [vmem:[%s3478 + $0xc] sm:$0xf]
        %v3483 = vld [vmem:[%s3478 + $0x10] sm:$0xf]
        %v3484 = vld [vmem:[%s3478 + $0x14] sm:$0xf]
        %v3485 = vld [vmem:[%s3478 + $0x18] sm:$0xf]
        %v3486 = vld [vmem:[%s3478 + $0x1c] sm:$0xf]
        %v3495 = vunpack.c.l.b16 %v3479
        %v3496 = vunpack.c.l.b16 %v3480
        %v3497 = vunpack.c.l.b16 %v3481
        %v3498 = vunpack.c.l.b16 %v3482
        %v3499 = vunpack.c.l.b16 %v3483
        %v3500 = vunpack.c.l.b16 %v3484
        %v3501 = vunpack.c.l.b16 %v3485
        %v3502 = vunpack.c.l.b16 %v3486
        %v3503 = vpack.c.b16 %v3496, %v3495
        %v3504 = vpack.c.b16 %v3498, %v3497
        %v3505 = vpack.c.b16 %v3500, %v3499
        %v3506 = vpack.c.b16 %v3502, %v3501
        %v3512 = vsel %vm1522, %v3470, 0
        %v3515 = vsel %vm1522, %v3471, 0
        %v3518 = vsel %vm1522, %v3472, 0
        %v3521 = vsel %vm1522, %v3473, 0
        %v3524 = vsel %vm1522, %v3474, 0
        %v3527 = vsel %vm1522, %v3475, 0
        %v3530 = vsel %vm1522, %v3476, 0
        %v3533 = vsel %vm1522, %v3477, 0
        %3535 = vmatpush.bf16.msra.mxu0 0
        %3536 = vmatpush.bf16.msra.mxu0 0
        %3537 = vmatpush.bf16.msra.mxu0 0
        %3538 = vmatpush.bf16.msra.mxu0 0
        %3539 = vmatpush.bf16.msra.mxu0 %v3506
        %3540 = vmatpush.bf16.msra.mxu0 %v3505
        %3541 = vmatpush.bf16.msra.mxu0 %v3504
        %3542 = vmatpush.bf16.msra.mxu0 %v3503
        %3543 = vmatmul.bf16.gmra.mxu0 %v3512
        %v3544 = vpop.f32.mrf.mxu0
        %v3545 = vadd.f32 0.0, %v3544
        %v3546 = vpop.f32.mrf.mxu0
        %v3547 = vadd.f32 0.0, %v3546
        %3548 = vmatmul.bf16.gmra.mxu0 %v3515
        %v3549 = vpop.f32.mrf.mxu0
        %v3550 = vadd.f32 0.0, %v3549
        %v3551 = vpop.f32.mrf.mxu0
        %v3552 = vadd.f32 0.0, %v3551
        %3553 = vmatmul.bf16.gmra.mxu0 %v3518
        %v3554 = vpop.f32.mrf.mxu0
        %v3555 = vadd.f32 0.0, %v3554
        %v3556 = vpop.f32.mrf.mxu0
        %v3557 = vadd.f32 0.0, %v3556
        %3558 = vmatmul.bf16.gmra.mxu0 %v3521
        %v3559 = vpop.f32.mrf.mxu0
        %v3560 = vadd.f32 0.0, %v3559
        %v3561 = vpop.f32.mrf.mxu0
        %v3562 = vadd.f32 0.0, %v3561
        %3563 = vmatmul.bf16.gmra.mxu0 %v3524
        %v3564 = vpop.f32.mrf.mxu0
        %v3565 = vadd.f32 0.0, %v3564
        %v3566 = vpop.f32.mrf.mxu0
        %v3567 = vadd.f32 0.0, %v3566
        %3568 = vmatmul.bf16.gmra.mxu0 %v3527
        %v3569 = vpop.f32.mrf.mxu0
        %v3570 = vadd.f32 0.0, %v3569
        %v3571 = vpop.f32.mrf.mxu0
        %v3572 = vadd.f32 0.0, %v3571
        %3573 = vmatmul.bf16.gmra.mxu0 %v3530
        %v3574 = vpop.f32.mrf.mxu0
        %v3575 = vadd.f32 0.0, %v3574
        %v3576 = vpop.f32.mrf.mxu0
        %v3577 = vadd.f32 0.0, %v3576
        %3578 = vmatmul.bf16.gmra.mxu0 %v3533
        %v3579 = vpop.f32.mrf.mxu0
        %v3580 = vadd.f32 0.0, %v3579
        %v3581 = vpop.f32.mrf.mxu0
        %v3582 = vadd.f32 0.0, %v3581
        %3583 = vdwg.mxu0
        %v3592 = vunpack.c.l.b16 %v3462
        %v3593 = vunpack.c.l.b16 %v3463
        %v3594 = vunpack.c.l.b16 %v3464
        %v3595 = vunpack.c.l.b16 %v3465
        %v3596 = vunpack.c.l.b16 %v3466
        %v3597 = vunpack.c.l.b16 %v3467
        %v3598 = vunpack.c.l.b16 %v3468
        %v3599 = vunpack.c.l.b16 %v3469
        %v3600 = vpack.c.b16 %v3593, %v3592
        %v3601 = vpack.c.b16 %v3595, %v3594
        %v3602 = vpack.c.b16 %v3597, %v3596
        %v3603 = vpack.c.b16 %v3599, %v3598
        %v3609 = vsel %vm1522, %v3454, 0
        %v3612 = vsel %vm1522, %v3455, 0
        %v3615 = vsel %vm1522, %v3456, 0
        %v3618 = vsel %vm1522, %v3457, 0
        %v3621 = vsel %vm1522, %v3458, 0
        %v3624 = vsel %vm1522, %v3459, 0
        %v3627 = vsel %vm1522, %v3460, 0
        %v3630 = vsel %vm1522, %v3461, 0
        %3632 = vmatpush.bf16.msra.mxu0 0
        %3633 = vmatpush.bf16.msra.mxu0 0
        %3634 = vmatpush.bf16.msra.mxu0 0
        %3635 = vmatpush.bf16.msra.mxu0 0
        %3636 = vmatpush.bf16.msra.mxu0 %v3603
        %3637 = vmatpush.bf16.msra.mxu0 %v3602
        %3638 = vmatpush.bf16.msra.mxu0 %v3601
        %3639 = vmatpush.bf16.msra.mxu0 %v3600
        %3640 = vmatmul.bf16.gmra.mxu0 %v3609
        %v3641 = vpop.f32.mrf.mxu0
        %v3642 = vadd.f32 %v3545, %v3641
        %v3643 = vpop.f32.mrf.mxu0
        %v3644 = vadd.f32 %v3547, %v3643
        %3645 = vmatmul.bf16.gmra.mxu0 %v3612
        %v3646 = vpop.f32.mrf.mxu0
        %v3647 = vadd.f32 %v3550, %v3646
        %v3648 = vpop.f32.mrf.mxu0
        %v3649 = vadd.f32 %v3552, %v3648
        %3650 = vmatmul.bf16.gmra.mxu0 %v3615
        %v3651 = vpop.f32.mrf.mxu0
        %v3652 = vadd.f32 %v3555, %v3651
        %v3653 = vpop.f32.mrf.mxu0
        %v3654 = vadd.f32 %v3557, %v3653
        %3655 = vmatmul.bf16.gmra.mxu0 %v3618
        %v3656 = vpop.f32.mrf.mxu0
        %v3657 = vadd.f32 %v3560, %v3656
        %v3658 = vpop.f32.mrf.mxu0
        %v3659 = vadd.f32 %v3562, %v3658
        %3660 = vmatmul.bf16.gmra.mxu0 %v3621
        %v3661 = vpop.f32.mrf.mxu0
        %v3662 = vadd.f32 %v3565, %v3661
        %v3663 = vpop.f32.mrf.mxu0
        %v3664 = vadd.f32 %v3567, %v3663
        %3665 = vmatmul.bf16.gmra.mxu0 %v3624
        %v3666 = vpop.f32.mrf.mxu0
        %v3667 = vadd.f32 %v3570, %v3666
        %v3668 = vpop.f32.mrf.mxu0
        %v3669 = vadd.f32 %v3572, %v3668
        %3670 = vmatmul.bf16.gmra.mxu0 %v3627
        %v3671 = vpop.f32.mrf.mxu0
        %v3672 = vadd.f32 %v3575, %v3671
        %v3673 = vpop.f32.mrf.mxu0
        %v3674 = vadd.f32 %v3577, %v3673
        %3675 = vmatmul.bf16.gmra.mxu0 %v3630
        %v3676 = vpop.f32.mrf.mxu0
        %v3677 = vadd.f32 %v3580, %v3676
        %v3678 = vpop.f32.mrf.mxu0
        %v3679 = vadd.f32 %v3582, %v3678
        %3680 = vdwg.mxu0
        %v3681 = vpack.c.bf16 %v3439, %v3438
        %v3682 = vpack.c.bf16 %v3441, %v3440
        %v3683 = vpack.c.bf16 %v3443, %v3442
        %v3684 = vpack.c.bf16 %v3445, %v3444
        %v3685 = vpack.c.bf16 %v3447, %v3446
        %v3686 = vpack.c.bf16 %v3449, %v3448
        %v3687 = vpack.c.bf16 %v3451, %v3450
        %v3688 = vpack.c.bf16 %v3453, %v3452
        %s3689 = scalar_lea.vmem [#allocation7], 64
        %v3690 = vld [vmem:[%s3689] sm:$0xf]
        %v3691 = vld [vmem:[%s3689 + $0x4] sm:$0xf]
        %v3692 = vld [vmem:[%s3689 + $0x8] sm:$0xf]
        %v3693 = vld [vmem:[%s3689 + $0xc] sm:$0xf]
        %v3694 = vld [vmem:[%s3689 + $0x10] sm:$0xf]
        %v3695 = vld [vmem:[%s3689 + $0x14] sm:$0xf]
        %v3696 = vld [vmem:[%s3689 + $0x18] sm:$0xf]
        %v3697 = vld [vmem:[%s3689 + $0x1c] sm:$0xf]
        %v3706 = vunpack.c.l.b16 %v3690
        %v3707 = vunpack.c.l.b16 %v3691
        %v3708 = vunpack.c.l.b16 %v3692
        %v3709 = vunpack.c.l.b16 %v3693
        %v3710 = vunpack.c.l.b16 %v3694
        %v3711 = vunpack.c.l.b16 %v3695
        %v3712 = vunpack.c.l.b16 %v3696
        %v3713 = vunpack.c.l.b16 %v3697
        %v3714 = vpack.c.b16 %v3707, %v3706
        %v3715 = vpack.c.b16 %v3709, %v3708
        %v3716 = vpack.c.b16 %v3711, %v3710
        %v3717 = vpack.c.b16 %v3713, %v3712
        %v3723 = vsel %vm1522, %v3681, 0
        %v3726 = vsel %vm1522, %v3682, 0
        %v3729 = vsel %vm1522, %v3683, 0
        %v3732 = vsel %vm1522, %v3684, 0
        %v3735 = vsel %vm1522, %v3685, 0
        %v3738 = vsel %vm1522, %v3686, 0
        %v3741 = vsel %vm1522, %v3687, 0
        %v3744 = vsel %vm1522, %v3688, 0
        %3746 = vmatpush.bf16.msra.mxu0 0
        %3747 = vmatpush.bf16.msra.mxu0 0
        %3748 = vmatpush.bf16.msra.mxu0 0
        %3749 = vmatpush.bf16.msra.mxu0 0
        %3750 = vmatpush.bf16.msra.mxu0 %v3717
        %3751 = vmatpush.bf16.msra.mxu0 %v3716
        %3752 = vmatpush.bf16.msra.mxu0 %v3715
        %3753 = vmatpush.bf16.msra.mxu0 %v3714
        %3754 = vmatmul.bf16.gmra.mxu0 %v3723
        %v3755 = vpop.f32.mrf.mxu0
        %v3756 = vadd.f32 0.0, %v3755
        %v3757 = vpop.f32.mrf.mxu0
        %v3758 = vadd.f32 0.0, %v3757
        %3759 = vmatmul.bf16.gmra.mxu0 %v3726
        %v3760 = vpop.f32.mrf.mxu0
        %v3761 = vadd.f32 0.0, %v3760
        %v3762 = vpop.f32.mrf.mxu0
        %v3763 = vadd.f32 0.0, %v3762
        %3764 = vmatmul.bf16.gmra.mxu0 %v3729
        %v3765 = vpop.f32.mrf.mxu0
        %v3766 = vadd.f32 0.0, %v3765
        %v3767 = vpop.f32.mrf.mxu0
        %v3768 = vadd.f32 0.0, %v3767
        %3769 = vmatmul.bf16.gmra.mxu0 %v3732
        %v3770 = vpop.f32.mrf.mxu0
        %v3771 = vadd.f32 0.0, %v3770
        %v3772 = vpop.f32.mrf.mxu0
        %v3773 = vadd.f32 0.0, %v3772
        %3774 = vmatmul.bf16.gmra.mxu0 %v3735
        %v3775 = vpop.f32.mrf.mxu0
        %v3776 = vadd.f32 0.0, %v3775
        %v3777 = vpop.f32.mrf.mxu0
        %v3778 = vadd.f32 0.0, %v3777
        %3779 = vmatmul.bf16.gmra.mxu0 %v3738
        %v3780 = vpop.f32.mrf.mxu0
        %v3781 = vadd.f32 0.0, %v3780
        %v3782 = vpop.f32.mrf.mxu0
        %v3783 = vadd.f32 0.0, %v3782
        %3784 = vmatmul.bf16.gmra.mxu0 %v3741
        %v3785 = vpop.f32.mrf.mxu0
        %v3786 = vadd.f32 0.0, %v3785
        %v3787 = vpop.f32.mrf.mxu0
        %v3788 = vadd.f32 0.0, %v3787
        %3789 = vmatmul.bf16.gmra.mxu0 %v3744
        %v3790 = vpop.f32.mrf.mxu0
        %v3791 = vadd.f32 0.0, %v3790
        %v3792 = vpop.f32.mrf.mxu0
        %v3793 = vadd.f32 0.0, %v3792
        %3794 = vdwg.mxu0
        %v3795 = vadd.f32 %v3642, %v3756
        %v3796 = vadd.f32 %v3644, %v3758
        %v3797 = vadd.f32 %v3647, %v3761
        %v3798 = vadd.f32 %v3649, %v3763
        %v3799 = vadd.f32 %v3652, %v3766
        %v3800 = vadd.f32 %v3654, %v3768
        %v3801 = vadd.f32 %v3657, %v3771
        %v3802 = vadd.f32 %v3659, %v3773
        %v3803 = vadd.f32 %v3662, %v3776
        %v3804 = vadd.f32 %v3664, %v3778
        %v3805 = vadd.f32 %v3667, %v3781
        %v3806 = vadd.f32 %v3669, %v3783
        %v3807 = vadd.f32 %v3672, %v3786
        %v3808 = vadd.f32 %v3674, %v3788
        %v3809 = vadd.f32 %v3677, %v3791
        %v3810 = vadd.f32 %v3679, %v3793
        %v3811 = vld [vmem:[%s12] sm:$0x1]
        %v3813 = vperm.slane %v3811, 0
        %v3815 = vadd.f32 %v3795, %v3813
        %v3816 = vadd.f32 %v3796, %v3813
        %v3817 = vadd.f32 %v3797, %v3813
        %v3818 = vadd.f32 %v3798, %v3813
        %v3819 = vadd.f32 %v3799, %v3813
        %v3820 = vadd.f32 %v3800, %v3813
        %v3821 = vadd.f32 %v3801, %v3813
        %v3822 = vadd.f32 %v3802, %v3813
        %v3823 = vadd.f32 %v3803, %v3813
        %v3824 = vadd.f32 %v3804, %v3813
        %v3825 = vadd.f32 %v3805, %v3813
        %v3826 = vadd.f32 %v3806, %v3813
        %v3827 = vadd.f32 %v3807, %v3813
        %v3828 = vadd.f32 %v3808, %v3813
        %v3829 = vadd.f32 %v3809, %v3813
        %v3830 = vadd.f32 %v3810, %v3813
        %v3831 = vmax.f32 %v3815, 0.0
        %v3832 = vmax.f32 %v3816, 0.0
        %v3833 = vmax.f32 %v3817, 0.0
        %v3834 = vmax.f32 %v3818, 0.0
        %v3835 = vmax.f32 %v3819, 0.0
        %v3836 = vmax.f32 %v3820, 0.0
        %v3837 = vmax.f32 %v3821, 0.0
        %v3838 = vmax.f32 %v3822, 0.0
        %v3839 = vmax.f32 %v3823, 0.0
        %v3840 = vmax.f32 %v3824, 0.0
        %v3841 = vmax.f32 %v3825, 0.0
        %v3842 = vmax.f32 %v3826, 0.0
        %v3843 = vmax.f32 %v3827, 0.0
        %v3844 = vmax.f32 %v3828, 0.0
        %v3845 = vmax.f32 %v3829, 0.0
        %v3846 = vmax.f32 %v3830, 0.0
        %v3847 = vrot.slane %v3831, 7
        %v3848 = vrot.slane %v3832, 7
        %v3849 = vrot.slane %v3833, 7
        %v3850 = vrot.slane %v3834, 7
        %v3851 = vrot.slane %v3835, 7
        %v3852 = vrot.slane %v3836, 7
        %v3853 = vrot.slane %v3837, 7
        %v3854 = vrot.slane %v3838, 7
        %v3855 = vrot.slane %v3839, 7
        %v3856 = vrot.slane %v3840, 7
        %v3857 = vrot.slane %v3841, 7
        %v3858 = vrot.slane %v3842, 7
        %v3859 = vrot.slane %v3843, 7
        %v3860 = vrot.slane %v3844, 7
        %v3861 = vrot.slane %v3845, 7
        %v3862 = vrot.slane %v3846, 7
        %v3863 = vsel %vm863, %v3861, %v3862
        %v3864 = vsel %vm863, %v3860, %v3861
        %v3865 = vsel %vm863, %v3859, %v3860
        %v3866 = vsel %vm863, %v3858, %v3859
        %v3867 = vsel %vm863, %v3857, %v3858
        %v3868 = vsel %vm863, %v3856, %v3857
        %v3869 = vsel %vm863, %v3855, %v3856
        %v3870 = vsel %vm863, %v3854, %v3855
        %v3871 = vsel %vm863, %v3853, %v3854
        %v3872 = vsel %vm863, %v3852, %v3853
        %v3873 = vsel %vm863, %v3851, %v3852
        %v3874 = vsel %vm863, %v3850, %v3851
        %v3875 = vsel %vm863, %v3849, %v3850
        %v3876 = vsel %vm863, %v3848, %v3849
        %v3877 = vsel %vm863, %v3847, %v3848
        %v3878 = vsel %vm863, %v3862, %v3847
        %v3879 = vsel %vm1353, %v3878, 0.0
        %v3880 = vsel %vm1354, %v3877, 0.0
        %v3881 = vsel %vm1355, %v3876, 0.0
        %v3882 = vsel %vm1356, %v3875, 0.0
        %v3883 = vsel %vm1357, %v3874, 0.0
        %v3884 = vsel %vm1358, %v3873, 0.0
        %v3885 = vsel %vm1359, %v3872, 0.0
        %v3886 = vsel %vm1360, %v3871, 0.0
        %v3887 = vsel %vm1361, %v3870, 0.0
        %v3888 = vsel %vm1362, %v3869, 0.0
        %v3889 = vsel %vm1363, %v3868, 0.0
        %v3890 = vsel %vm1364, %v3867, 0.0
        %v3891 = vsel %vm1365, %v3866, 0.0
        %v3892 = vsel %vm1366, %v3865, 0.0
        %v3893 = vsel %vm1367, %v3864, 0.0
        %v3894 = vsel %vm1368, %v3863, 0.0
        %v3895 = vrot.slane %v3831, 1
        %v3896 = vrot.slane %v3832, 1
        %v3897 = vrot.slane %v3833, 1
        %v3898 = vrot.slane %v3834, 1
        %v3899 = vrot.slane %v3835, 1
        %v3900 = vrot.slane %v3836, 1
        %v3901 = vrot.slane %v3837, 1
        %v3902 = vrot.slane %v3838, 1
        %v3903 = vrot.slane %v3839, 1
        %v3904 = vrot.slane %v3840, 1
        %v3905 = vrot.slane %v3841, 1
        %v3906 = vrot.slane %v3842, 1
        %v3907 = vrot.slane %v3843, 1
        %v3908 = vrot.slane %v3844, 1
        %v3909 = vrot.slane %v3845, 1
        %v3910 = vrot.slane %v3846, 1
        %v3911 = vsel %vm912, %v3909, %v3910
        %v3912 = vsel %vm912, %v3908, %v3909
        %v3913 = vsel %vm912, %v3907, %v3908
        %v3914 = vsel %vm912, %v3906, %v3907
        %v3915 = vsel %vm912, %v3905, %v3906
        %v3916 = vsel %vm912, %v3904, %v3905
        %v3917 = vsel %vm912, %v3903, %v3904
        %v3918 = vsel %vm912, %v3902, %v3903
        %v3919 = vsel %vm912, %v3901, %v3902
        %v3920 = vsel %vm912, %v3900, %v3901
        %v3921 = vsel %vm912, %v3899, %v3900
        %v3922 = vsel %vm912, %v3898, %v3899
        %v3923 = vsel %vm912, %v3897, %v3898
        %v3924 = vsel %vm912, %v3896, %v3897
        %v3925 = vsel %vm912, %v3895, %v3896
        %v3926 = vsel %vm912, %v3910, %v3895
        %v3927 = vsel %vm1433, %v3925, 0.0
        %v3928 = vsel %vm1434, %v3924, 0.0
        %v3929 = vsel %vm1435, %v3923, 0.0
        %v3930 = vsel %vm1436, %v3922, 0.0
        %v3931 = vsel %vm1437, %v3921, 0.0
        %v3932 = vsel %vm1438, %v3920, 0.0
        %v3933 = vsel %vm1439, %v3919, 0.0
        %v3934 = vsel %vm1440, %v3918, 0.0
        %v3935 = vsel %vm1441, %v3917, 0.0
        %v3936 = vsel %vm1442, %v3916, 0.0
        %v3937 = vsel %vm1443, %v3915, 0.0
        %v3938 = vsel %vm1444, %v3914, 0.0
        %v3939 = vsel %vm1445, %v3913, 0.0
        %v3940 = vsel %vm1446, %v3912, 0.0
        %v3941 = vsel %vm1447, %v3911, 0.0
        %v3942 = vsel %vm1448, %v3926, 0.0
        %v3943 = vpack.c.bf16 %v3880, %v3879
        %v3944 = vpack.c.bf16 %v3882, %v3881
        %v3945 = vpack.c.bf16 %v3884, %v3883
        %v3946 = vpack.c.bf16 %v3886, %v3885
        %v3947 = vpack.c.bf16 %v3888, %v3887
        %v3948 = vpack.c.bf16 %v3890, %v3889
        %v3949 = vpack.c.bf16 %v3892, %v3891
        %v3950 = vpack.c.bf16 %v3894, %v3893
        %v3951 = vld [vmem:[#allocation8] sm:$0xff]
        %v3952 = vld [vmem:[#allocation8 + $0x8] sm:$0xff]
        %v3953 = vld [vmem:[#allocation8 + $0x10] sm:$0xff]
        %v3954 = vld [vmem:[#allocation8 + $0x18] sm:$0xff]
        %v3955 = vld [vmem:[#allocation8 + $0x20] sm:$0xff]
        %v3956 = vld [vmem:[#allocation8 + $0x28] sm:$0xff]
        %v3957 = vld [vmem:[#allocation8 + $0x30] sm:$0xff]
        %v3958 = vld [vmem:[#allocation8 + $0x38] sm:$0xff]
        %v3959 = vld [vmem:[#allocation8 + $0x40] sm:$0xff]
        %v3960 = vld [vmem:[#allocation8 + $0x48] sm:$0xff]
        %v3961 = vld [vmem:[#allocation8 + $0x50] sm:$0xff]
        %v3962 = vld [vmem:[#allocation8 + $0x58] sm:$0xff]
        %v3963 = vld [vmem:[#allocation8 + $0x60] sm:$0xff]
        %v3964 = vld [vmem:[#allocation8 + $0x68] sm:$0xff]
        %v3965 = vld [vmem:[#allocation8 + $0x70] sm:$0xff]
        %v3966 = vld [vmem:[#allocation8 + $0x78] sm:$0xff]
        %v3967 = vpack.c.bf16 %v3832, %v3831
        %v3968 = vpack.c.bf16 %v3834, %v3833
        %v3969 = vpack.c.bf16 %v3836, %v3835
        %v3970 = vpack.c.bf16 %v3838, %v3837
        %v3971 = vpack.c.bf16 %v3840, %v3839
        %v3972 = vpack.c.bf16 %v3842, %v3841
        %v3973 = vpack.c.bf16 %v3844, %v3843
        %v3974 = vpack.c.bf16 %v3846, %v3845
        %s3975 = scalar_lea.vmem [#allocation8], 128
        %v3976 = vld [vmem:[%s3975] sm:$0xff]
        %v3977 = vld [vmem:[%s3975 + $0x8] sm:$0xff]
        %v3978 = vld [vmem:[%s3975 + $0x10] sm:$0xff]
        %v3979 = vld [vmem:[%s3975 + $0x18] sm:$0xff]
        %v3980 = vld [vmem:[%s3975 + $0x20] sm:$0xff]
        %v3981 = vld [vmem:[%s3975 + $0x28] sm:$0xff]
        %v3982 = vld [vmem:[%s3975 + $0x30] sm:$0xff]
        %v3983 = vld [vmem:[%s3975 + $0x38] sm:$0xff]
        %v3984 = vld [vmem:[%s3975 + $0x40] sm:$0xff]
        %v3985 = vld [vmem:[%s3975 + $0x48] sm:$0xff]
        %v3986 = vld [vmem:[%s3975 + $0x50] sm:$0xff]
        %v3987 = vld [vmem:[%s3975 + $0x58] sm:$0xff]
        %v3988 = vld [vmem:[%s3975 + $0x60] sm:$0xff]
        %v3989 = vld [vmem:[%s3975 + $0x68] sm:$0xff]
        %v3990 = vld [vmem:[%s3975 + $0x70] sm:$0xff]
        %v3991 = vld [vmem:[%s3975 + $0x78] sm:$0xff]
        %v4008 = vunpack.c.l.b16 %v3976
        %v4009 = vunpack.c.h.b16 %v3976
        %v4010 = vunpack.c.l.b16 %v3977
        %v4011 = vunpack.c.h.b16 %v3977
        %v4012 = vunpack.c.l.b16 %v3978
        %v4013 = vunpack.c.h.b16 %v3978
        %v4014 = vunpack.c.l.b16 %v3979
        %v4015 = vunpack.c.h.b16 %v3979
        %v4016 = vunpack.c.l.b16 %v3980
        %v4017 = vunpack.c.h.b16 %v3980
        %v4018 = vunpack.c.l.b16 %v3981
        %v4019 = vunpack.c.h.b16 %v3981
        %v4020 = vunpack.c.l.b16 %v3982
        %v4021 = vunpack.c.h.b16 %v3982
        %v4022 = vunpack.c.l.b16 %v3983
        %v4023 = vunpack.c.h.b16 %v3983
        %v4024 = vunpack.c.l.b16 %v3984
        %v4025 = vunpack.c.h.b16 %v3984
        %v4026 = vunpack.c.l.b16 %v3985
        %v4027 = vunpack.c.h.b16 %v3985
        %v4028 = vunpack.c.l.b16 %v3986
        %v4029 = vunpack.c.h.b16 %v3986
        %v4030 = vunpack.c.l.b16 %v3987
        %v4031 = vunpack.c.h.b16 %v3987
        %v4032 = vunpack.c.l.b16 %v3988
        %v4033 = vunpack.c.h.b16 %v3988
        %v4034 = vunpack.c.l.b16 %v3989
        %v4035 = vunpack.c.h.b16 %v3989
        %v4036 = vunpack.c.l.b16 %v3990
        %v4037 = vunpack.c.h.b16 %v3990
        %v4038 = vunpack.c.l.b16 %v3991
        %v4039 = vunpack.c.h.b16 %v3991
        %v4040 = vpack.c.b16 %v4010, %v4008
        %v4041 = vpack.c.b16 %v4011, %v4009
        %v4042 = vpack.c.b16 %v4014, %v4012
        %v4043 = vpack.c.b16 %v4015, %v4013
        %v4044 = vpack.c.b16 %v4018, %v4016
        %v4045 = vpack.c.b16 %v4019, %v4017
        %v4046 = vpack.c.b16 %v4022, %v4020
        %v4047 = vpack.c.b16 %v4023, %v4021
        %v4048 = vpack.c.b16 %v4026, %v4024
        %v4049 = vpack.c.b16 %v4027, %v4025
        %v4050 = vpack.c.b16 %v4030, %v4028
        %v4051 = vpack.c.b16 %v4031, %v4029
        %v4052 = vpack.c.b16 %v4034, %v4032
        %v4053 = vpack.c.b16 %v4035, %v4033
        %v4054 = vpack.c.b16 %v4038, %v4036
        %v4055 = vpack.c.b16 %v4039, %v4037
        %4072 = vmatpush.bf16.msra.mxu0 %v4054
        %4073 = vmatpush.bf16.msra.mxu0 %v4052
        %4074 = vmatpush.bf16.msra.mxu0 %v4050
        %4075 = vmatpush.bf16.msra.mxu0 %v4048
        %4076 = vmatpush.bf16.msra.mxu0 %v4046
        %4077 = vmatpush.bf16.msra.mxu0 %v4044
        %4078 = vmatpush.bf16.msra.mxu0 %v4042
        %4079 = vmatpush.bf16.msra.mxu0 %v4040
        %4080 = vmatmul.bf16.gmra.mxu0 %v3967
        %v4081 = vpop.f32.mrf.mxu0
        %v4082 = vadd.f32 0.0, %v4081
        %v4083 = vpop.f32.mrf.mxu0
        %v4084 = vadd.f32 0.0, %v4083
        %4085 = vmatmul.bf16.gmra.mxu0 %v3968
        %v4086 = vpop.f32.mrf.mxu0
        %v4087 = vadd.f32 0.0, %v4086
        %v4088 = vpop.f32.mrf.mxu0
        %v4089 = vadd.f32 0.0, %v4088
        %4090 = vmatmul.bf16.gmra.mxu0 %v3969
        %v4091 = vpop.f32.mrf.mxu0
        %v4092 = vadd.f32 0.0, %v4091
        %v4093 = vpop.f32.mrf.mxu0
        %v4094 = vadd.f32 0.0, %v4093
        %4095 = vmatmul.bf16.gmra.mxu0 %v3970
        %v4096 = vpop.f32.mrf.mxu0
        %v4097 = vadd.f32 0.0, %v4096
        %v4098 = vpop.f32.mrf.mxu0
        %v4099 = vadd.f32 0.0, %v4098
        %4100 = vmatmul.bf16.gmra.mxu0 %v3971
        %v4101 = vpop.f32.mrf.mxu0
        %v4102 = vadd.f32 0.0, %v4101
        %v4103 = vpop.f32.mrf.mxu0
        %v4104 = vadd.f32 0.0, %v4103
        %4105 = vmatmul.bf16.gmra.mxu0 %v3972
        %v4106 = vpop.f32.mrf.mxu0
        %v4107 = vadd.f32 0.0, %v4106
        %v4108 = vpop.f32.mrf.mxu0
        %v4109 = vadd.f32 0.0, %v4108
        %4110 = vmatmul.bf16.gmra.mxu0 %v3973
        %v4111 = vpop.f32.mrf.mxu0
        %v4112 = vadd.f32 0.0, %v4111
        %v4113 = vpop.f32.mrf.mxu0
        %v4114 = vadd.f32 0.0, %v4113
        %4115 = vmatmul.bf16.gmra.mxu0 %v3974
        %v4116 = vpop.f32.mrf.mxu0
        %v4117 = vadd.f32 0.0, %v4116
        %v4118 = vpop.f32.mrf.mxu0
        %v4119 = vadd.f32 0.0, %v4118
        %4120 = vdwg.mxu0
        %4121 = vmatpush.bf16.msra.mxu0 %v4055
        %4122 = vmatpush.bf16.msra.mxu0 %v4053
        %4123 = vmatpush.bf16.msra.mxu0 %v4051
        %4124 = vmatpush.bf16.msra.mxu0 %v4049
        %4125 = vmatpush.bf16.msra.mxu0 %v4047
        %4126 = vmatpush.bf16.msra.mxu0 %v4045
        %4127 = vmatpush.bf16.msra.mxu0 %v4043
        %4128 = vmatpush.bf16.msra.mxu0 %v4041
        %4129 = vmatmul.bf16.gmra.mxu0 %v3967
        %v4130 = vpop.f32.mrf.mxu0
        %v4131 = vadd.f32 0.0, %v4130
        %v4132 = vpop.f32.mrf.mxu0
        %v4133 = vadd.f32 0.0, %v4132
        %4134 = vmatmul.bf16.gmra.mxu0 %v3968
        %v4135 = vpop.f32.mrf.mxu0
        %v4136 = vadd.f32 0.0, %v4135
        %v4137 = vpop.f32.mrf.mxu0
        %v4138 = vadd.f32 0.0, %v4137
        %4139 = vmatmul.bf16.gmra.mxu0 %v3969
        %v4140 = vpop.f32.mrf.mxu0
        %v4141 = vadd.f32 0.0, %v4140
        %v4142 = vpop.f32.mrf.mxu0
        %v4143 = vadd.f32 0.0, %v4142
        %4144 = vmatmul.bf16.gmra.mxu0 %v3970
        %v4145 = vpop.f32.mrf.mxu0
        %v4146 = vadd.f32 0.0, %v4145
        %v4147 = vpop.f32.mrf.mxu0
        %v4148 = vadd.f32 0.0, %v4147
        %4149 = vmatmul.bf16.gmra.mxu0 %v3971
        %v4150 = vpop.f32.mrf.mxu0
        %v4151 = vadd.f32 0.0, %v4150
        %v4152 = vpop.f32.mrf.mxu0
        %v4153 = vadd.f32 0.0, %v4152
        %4154 = vmatmul.bf16.gmra.mxu0 %v3972
        %v4155 = vpop.f32.mrf.mxu0
        %v4156 = vadd.f32 0.0, %v4155
        %v4157 = vpop.f32.mrf.mxu0
        %v4158 = vadd.f32 0.0, %v4157
        %4159 = vmatmul.bf16.gmra.mxu0 %v3973
        %v4160 = vpop.f32.mrf.mxu0
        %v4161 = vadd.f32 0.0, %v4160
        %v4162 = vpop.f32.mrf.mxu0
        %v4163 = vadd.f32 0.0, %v4162
        %4164 = vmatmul.bf16.gmra.mxu0 %v3974
        %v4165 = vpop.f32.mrf.mxu0
        %v4166 = vadd.f32 0.0, %v4165
        %v4167 = vpop.f32.mrf.mxu0
        %v4168 = vadd.f32 0.0, %v4167
        %4169 = vdwg.mxu0
        %v4186 = vunpack.c.l.b16 %v3951
        %v4187 = vunpack.c.h.b16 %v3951
        %v4188 = vunpack.c.l.b16 %v3952
        %v4189 = vunpack.c.h.b16 %v3952
        %v4190 = vunpack.c.l.b16 %v3953
        %v4191 = vunpack.c.h.b16 %v3953
        %v4192 = vunpack.c.l.b16 %v3954
        %v4193 = vunpack.c.h.b16 %v3954
        %v4194 = vunpack.c.l.b16 %v3955
        %v4195 = vunpack.c.h.b16 %v3955
        %v4196 = vunpack.c.l.b16 %v3956
        %v4197 = vunpack.c.h.b16 %v3956
        %v4198 = vunpack.c.l.b16 %v3957
        %v4199 = vunpack.c.h.b16 %v3957
        %v4200 = vunpack.c.l.b16 %v3958
        %v4201 = vunpack.c.h.b16 %v3958
        %v4202 = vunpack.c.l.b16 %v3959
        %v4203 = vunpack.c.h.b16 %v3959
        %v4204 = vunpack.c.l.b16 %v3960
        %v4205 = vunpack.c.h.b16 %v3960
        %v4206 = vunpack.c.l.b16 %v3961
        %v4207 = vunpack.c.h.b16 %v3961
        %v4208 = vunpack.c.l.b16 %v3962
        %v4209 = vunpack.c.h.b16 %v3962
        %v4210 = vunpack.c.l.b16 %v3963
        %v4211 = vunpack.c.h.b16 %v3963
        %v4212 = vunpack.c.l.b16 %v3964
        %v4213 = vunpack.c.h.b16 %v3964
        %v4214 = vunpack.c.l.b16 %v3965
        %v4215 = vunpack.c.h.b16 %v3965
        %v4216 = vunpack.c.l.b16 %v3966
        %v4217 = vunpack.c.h.b16 %v3966
        %v4218 = vpack.c.b16 %v4188, %v4186
        %v4219 = vpack.c.b16 %v4189, %v4187
        %v4220 = vpack.c.b16 %v4192, %v4190
        %v4221 = vpack.c.b16 %v4193, %v4191
        %v4222 = vpack.c.b16 %v4196, %v4194
        %v4223 = vpack.c.b16 %v4197, %v4195
        %v4224 = vpack.c.b16 %v4200, %v4198
        %v4225 = vpack.c.b16 %v4201, %v4199
        %v4226 = vpack.c.b16 %v4204, %v4202
        %v4227 = vpack.c.b16 %v4205, %v4203
        %v4228 = vpack.c.b16 %v4208, %v4206
        %v4229 = vpack.c.b16 %v4209, %v4207
        %v4230 = vpack.c.b16 %v4212, %v4210
        %v4231 = vpack.c.b16 %v4213, %v4211
        %v4232 = vpack.c.b16 %v4216, %v4214
        %v4233 = vpack.c.b16 %v4217, %v4215
        %4250 = vmatpush.bf16.msra.mxu0 %v4232
        %4251 = vmatpush.bf16.msra.mxu0 %v4230
        %4252 = vmatpush.bf16.msra.mxu0 %v4228
        %4253 = vmatpush.bf16.msra.mxu0 %v4226
        %4254 = vmatpush.bf16.msra.mxu0 %v4224
        %4255 = vmatpush.bf16.msra.mxu0 %v4222
        %4256 = vmatpush.bf16.msra.mxu0 %v4220
        %4257 = vmatpush.bf16.msra.mxu0 %v4218
        %4258 = vmatmul.bf16.gmra.mxu0 %v3943
        %v4259 = vpop.f32.mrf.mxu0
        %v4260 = vadd.f32 %v4082, %v4259
        %v4261 = vpop.f32.mrf.mxu0
        %v4262 = vadd.f32 %v4084, %v4261
        %4263 = vmatmul.bf16.gmra.mxu0 %v3944
        %v4264 = vpop.f32.mrf.mxu0
        %v4265 = vadd.f32 %v4087, %v4264
        %v4266 = vpop.f32.mrf.mxu0
        %v4267 = vadd.f32 %v4089, %v4266
        %4268 = vmatmul.bf16.gmra.mxu0 %v3945
        %v4269 = vpop.f32.mrf.mxu0
        %v4270 = vadd.f32 %v4092, %v4269
        %v4271 = vpop.f32.mrf.mxu0
        %v4272 = vadd.f32 %v4094, %v4271
        %4273 = vmatmul.bf16.gmra.mxu0 %v3946
        %v4274 = vpop.f32.mrf.mxu0
        %v4275 = vadd.f32 %v4097, %v4274
        %v4276 = vpop.f32.mrf.mxu0
        %v4277 = vadd.f32 %v4099, %v4276
        %4278 = vmatmul.bf16.gmra.mxu0 %v3947
        %v4279 = vpop.f32.mrf.mxu0
        %v4280 = vadd.f32 %v4102, %v4279
        %v4281 = vpop.f32.mrf.mxu0
        %v4282 = vadd.f32 %v4104, %v4281
        %4283 = vmatmul.bf16.gmra.mxu0 %v3948
        %v4284 = vpop.f32.mrf.mxu0
        %v4285 = vadd.f32 %v4107, %v4284
        %v4286 = vpop.f32.mrf.mxu0
        %v4287 = vadd.f32 %v4109, %v4286
        %4288 = vmatmul.bf16.gmra.mxu0 %v3949
        %v4289 = vpop.f32.mrf.mxu0
        %v4290 = vadd.f32 %v4112, %v4289
        %v4291 = vpop.f32.mrf.mxu0
        %v4292 = vadd.f32 %v4114, %v4291
        %4293 = vmatmul.bf16.gmra.mxu0 %v3950
        %v4294 = vpop.f32.mrf.mxu0
        %v4295 = vadd.f32 %v4117, %v4294
        %v4296 = vpop.f32.mrf.mxu0
        %v4297 = vadd.f32 %v4119, %v4296
        %4298 = vdwg.mxu0
        %4299 = vmatpush.bf16.msra.mxu0 %v4233
        %4300 = vmatpush.bf16.msra.mxu0 %v4231
        %4301 = vmatpush.bf16.msra.mxu0 %v4229
        %4302 = vmatpush.bf16.msra.mxu0 %v4227
        %4303 = vmatpush.bf16.msra.mxu0 %v4225
        %4304 = vmatpush.bf16.msra.mxu0 %v4223
        %4305 = vmatpush.bf16.msra.mxu0 %v4221
        %4306 = vmatpush.bf16.msra.mxu0 %v4219
        %4307 = vmatmul.bf16.gmra.mxu0 %v3943
        %v4308 = vpop.f32.mrf.mxu0
        %v4309 = vadd.f32 %v4131, %v4308
        %v4310 = vpop.f32.mrf.mxu0
        %v4311 = vadd.f32 %v4133, %v4310
        %4312 = vmatmul.bf16.gmra.mxu0 %v3944
        %v4313 = vpop.f32.mrf.mxu0
        %v4314 = vadd.f32 %v4136, %v4313
        %v4315 = vpop.f32.mrf.mxu0
        %v4316 = vadd.f32 %v4138, %v4315
        %4317 = vmatmul.bf16.gmra.mxu0 %v3945
        %v4318 = vpop.f32.mrf.mxu0
        %v4319 = vadd.f32 %v4141, %v4318
        %v4320 = vpop.f32.mrf.mxu0
        %v4321 = vadd.f32 %v4143, %v4320
        %4322 = vmatmul.bf16.gmra.mxu0 %v3946
        %v4323 = vpop.f32.mrf.mxu0
        %v4324 = vadd.f32 %v4146, %v4323
        %v4325 = vpop.f32.mrf.mxu0
        %v4326 = vadd.f32 %v4148, %v4325
        %4327 = vmatmul.bf16.gmra.mxu0 %v3947
        %v4328 = vpop.f32.mrf.mxu0
        %v4329 = vadd.f32 %v4151, %v4328
        %v4330 = vpop.f32.mrf.mxu0
        %v4331 = vadd.f32 %v4153, %v4330
        %4332 = vmatmul.bf16.gmra.mxu0 %v3948
        %v4333 = vpop.f32.mrf.mxu0
        %v4334 = vadd.f32 %v4156, %v4333
        %v4335 = vpop.f32.mrf.mxu0
        %v4336 = vadd.f32 %v4158, %v4335
        %4337 = vmatmul.bf16.gmra.mxu0 %v3949
        %v4338 = vpop.f32.mrf.mxu0
        %v4339 = vadd.f32 %v4161, %v4338
        %v4340 = vpop.f32.mrf.mxu0
        %v4341 = vadd.f32 %v4163, %v4340
        %4342 = vmatmul.bf16.gmra.mxu0 %v3950
        %v4343 = vpop.f32.mrf.mxu0
        %v4344 = vadd.f32 %v4166, %v4343
        %v4345 = vpop.f32.mrf.mxu0
        %v4346 = vadd.f32 %v4168, %v4345
        %4347 = vdwg.mxu0
        %v4348 = vpack.c.bf16 %v3928, %v3927
        %v4349 = vpack.c.bf16 %v3930, %v3929
        %v4350 = vpack.c.bf16 %v3932, %v3931
        %v4351 = vpack.c.bf16 %v3934, %v3933
        %v4352 = vpack.c.bf16 %v3936, %v3935
        %v4353 = vpack.c.bf16 %v3938, %v3937
        %v4354 = vpack.c.bf16 %v3940, %v3939
        %v4355 = vpack.c.bf16 %v3942, %v3941
        %s4356 = scalar_lea.vmem [#allocation8], 256
        %v4357 = vld [vmem:[%s4356] sm:$0xff]
        %v4358 = vld [vmem:[%s4356 + $0x8] sm:$0xff]
        %v4359 = vld [vmem:[%s4356 + $0x10] sm:$0xff]
        %v4360 = vld [vmem:[%s4356 + $0x18] sm:$0xff]
        %v4361 = vld [vmem:[%s4356 + $0x20] sm:$0xff]
        %v4362 = vld [vmem:[%s4356 + $0x28] sm:$0xff]
        %v4363 = vld [vmem:[%s4356 + $0x30] sm:$0xff]
        %v4364 = vld [vmem:[%s4356 + $0x38] sm:$0xff]
        %v4365 = vld [vmem:[%s4356 + $0x40] sm:$0xff]
        %v4366 = vld [vmem:[%s4356 + $0x48] sm:$0xff]
        %v4367 = vld [vmem:[%s4356 + $0x50] sm:$0xff]
        %v4368 = vld [vmem:[%s4356 + $0x58] sm:$0xff]
        %v4369 = vld [vmem:[%s4356 + $0x60] sm:$0xff]
        %v4370 = vld [vmem:[%s4356 + $0x68] sm:$0xff]
        %v4371 = vld [vmem:[%s4356 + $0x70] sm:$0xff]
        %v4372 = vld [vmem:[%s4356 + $0x78] sm:$0xff]
        %v4389 = vunpack.c.l.b16 %v4357
        %v4390 = vunpack.c.h.b16 %v4357
        %v4391 = vunpack.c.l.b16 %v4358
        %v4392 = vunpack.c.h.b16 %v4358
        %v4393 = vunpack.c.l.b16 %v4359
        %v4394 = vunpack.c.h.b16 %v4359
        %v4395 = vunpack.c.l.b16 %v4360
        %v4396 = vunpack.c.h.b16 %v4360
        %v4397 = vunpack.c.l.b16 %v4361
        %v4398 = vunpack.c.h.b16 %v4361
        %v4399 = vunpack.c.l.b16 %v4362
        %v4400 = vunpack.c.h.b16 %v4362
        %v4401 = vunpack.c.l.b16 %v4363
        %v4402 = vunpack.c.h.b16 %v4363
        %v4403 = vunpack.c.l.b16 %v4364
        %v4404 = vunpack.c.h.b16 %v4364
        %v4405 = vunpack.c.l.b16 %v4365
        %v4406 = vunpack.c.h.b16 %v4365
        %v4407 = vunpack.c.l.b16 %v4366
        %v4408 = vunpack.c.h.b16 %v4366
        %v4409 = vunpack.c.l.b16 %v4367
        %v4410 = vunpack.c.h.b16 %v4367
        %v4411 = vunpack.c.l.b16 %v4368
        %v4412 = vunpack.c.h.b16 %v4368
        %v4413 = vunpack.c.l.b16 %v4369
        %v4414 = vunpack.c.h.b16 %v4369
        %v4415 = vunpack.c.l.b16 %v4370
        %v4416 = vunpack.c.h.b16 %v4370
        %v4417 = vunpack.c.l.b16 %v4371
        %v4418 = vunpack.c.h.b16 %v4371
        %v4419 = vunpack.c.l.b16 %v4372
        %v4420 = vunpack.c.h.b16 %v4372
        %v4421 = vpack.c.b16 %v4391, %v4389
        %v4422 = vpack.c.b16 %v4392, %v4390
        %v4423 = vpack.c.b16 %v4395, %v4393
        %v4424 = vpack.c.b16 %v4396, %v4394
        %v4425 = vpack.c.b16 %v4399, %v4397
        %v4426 = vpack.c.b16 %v4400, %v4398
        %v4427 = vpack.c.b16 %v4403, %v4401
        %v4428 = vpack.c.b16 %v4404, %v4402
        %v4429 = vpack.c.b16 %v4407, %v4405
        %v4430 = vpack.c.b16 %v4408, %v4406
        %v4431 = vpack.c.b16 %v4411, %v4409
        %v4432 = vpack.c.b16 %v4412, %v4410
        %v4433 = vpack.c.b16 %v4415, %v4413
        %v4434 = vpack.c.b16 %v4416, %v4414
        %v4435 = vpack.c.b16 %v4419, %v4417
        %v4436 = vpack.c.b16 %v4420, %v4418
        %4453 = vmatpush.bf16.msra.mxu0 %v4435
        %4454 = vmatpush.bf16.msra.mxu0 %v4433
        %4455 = vmatpush.bf16.msra.mxu0 %v4431
        %4456 = vmatpush.bf16.msra.mxu0 %v4429
        %4457 = vmatpush.bf16.msra.mxu0 %v4427
        %4458 = vmatpush.bf16.msra.mxu0 %v4425
        %4459 = vmatpush.bf16.msra.mxu0 %v4423
        %4460 = vmatpush.bf16.msra.mxu0 %v4421
        %4461 = vmatmul.bf16.gmra.mxu0 %v4348
        %v4462 = vpop.f32.mrf.mxu0
        %v4463 = vadd.f32 0.0, %v4462
        %v4464 = vpop.f32.mrf.mxu0
        %v4465 = vadd.f32 0.0, %v4464
        %4466 = vmatmul.bf16.gmra.mxu0 %v4349
        %v4467 = vpop.f32.mrf.mxu0
        %v4468 = vadd.f32 0.0, %v4467
        %v4469 = vpop.f32.mrf.mxu0
        %v4470 = vadd.f32 0.0, %v4469
        %4471 = vmatmul.bf16.gmra.mxu0 %v4350
        %v4472 = vpop.f32.mrf.mxu0
        %v4473 = vadd.f32 0.0, %v4472
        %v4474 = vpop.f32.mrf.mxu0
        %v4475 = vadd.f32 0.0, %v4474
        %4476 = vmatmul.bf16.gmra.mxu0 %v4351
        %v4477 = vpop.f32.mrf.mxu0
        %v4478 = vadd.f32 0.0, %v4477
        %v4479 = vpop.f32.mrf.mxu0
        %v4480 = vadd.f32 0.0, %v4479
        %4481 = vmatmul.bf16.gmra.mxu0 %v4352
        %v4482 = vpop.f32.mrf.mxu0
        %v4483 = vadd.f32 0.0, %v4482
        %v4484 = vpop.f32.mrf.mxu0
        %v4485 = vadd.f32 0.0, %v4484
        %4486 = vmatmul.bf16.gmra.mxu0 %v4353
        %v4487 = vpop.f32.mrf.mxu0
        %v4488 = vadd.f32 0.0, %v4487
        %v4489 = vpop.f32.mrf.mxu0
        %v4490 = vadd.f32 0.0, %v4489
        %4491 = vmatmul.bf16.gmra.mxu0 %v4354
        %v4492 = vpop.f32.mrf.mxu0
        %v4493 = vadd.f32 0.0, %v4492
        %v4494 = vpop.f32.mrf.mxu0
        %v4495 = vadd.f32 0.0, %v4494
        %4496 = vmatmul.bf16.gmra.mxu0 %v4355
        %v4497 = vpop.f32.mrf.mxu0
        %v4498 = vadd.f32 0.0, %v4497
        %v4499 = vpop.f32.mrf.mxu0
        %v4500 = vadd.f32 0.0, %v4499
        %4501 = vdwg.mxu0
        %4502 = vmatpush.bf16.msra.mxu0 %v4436
        %4503 = vmatpush.bf16.msra.mxu0 %v4434
        %4504 = vmatpush.bf16.msra.mxu0 %v4432
        %4505 = vmatpush.bf16.msra.mxu0 %v4430
        %4506 = vmatpush.bf16.msra.mxu0 %v4428
        %4507 = vmatpush.bf16.msra.mxu0 %v4426
        %4508 = vmatpush.bf16.msra.mxu0 %v4424
        %4509 = vmatpush.bf16.msra.mxu0 %v4422
        %4510 = vmatmul.bf16.gmra.mxu0 %v4348
        %v4511 = vpop.f32.mrf.mxu0
        %v4512 = vadd.f32 0.0, %v4511
        %v4513 = vpop.f32.mrf.mxu0
        %v4514 = vadd.f32 0.0, %v4513
        %4515 = vmatmul.bf16.gmra.mxu0 %v4349
        %v4516 = vpop.f32.mrf.mxu0
        %v4517 = vadd.f32 0.0, %v4516
        %v4518 = vpop.f32.mrf.mxu0
        %v4519 = vadd.f32 0.0, %v4518
        %4520 = vmatmul.bf16.gmra.mxu0 %v4350
        %v4521 = vpop.f32.mrf.mxu0
        %v4522 = vadd.f32 0.0, %v4521
        %v4523 = vpop.f32.mrf.mxu0
        %v4524 = vadd.f32 0.0, %v4523
        %4525 = vmatmul.bf16.gmra.mxu0 %v4351
        %v4526 = vpop.f32.mrf.mxu0
        %v4527 = vadd.f32 0.0, %v4526
        %v4528 = vpop.f32.mrf.mxu0
        %v4529 = vadd.f32 0.0, %v4528
        %4530 = vmatmul.bf16.gmra.mxu0 %v4352
        %v4531 = vpop.f32.mrf.mxu0
        %v4532 = vadd.f32 0.0, %v4531
        %v4533 = vpop.f32.mrf.mxu0
        %v4534 = vadd.f32 0.0, %v4533
        %4535 = vmatmul.bf16.gmra.mxu0 %v4353
        %v4536 = vpop.f32.mrf.mxu0
        %v4537 = vadd.f32 0.0, %v4536
        %v4538 = vpop.f32.mrf.mxu0
        %v4539 = vadd.f32 0.0, %v4538
        %4540 = vmatmul.bf16.gmra.mxu0 %v4354
        %v4541 = vpop.f32.mrf.mxu0
        %v4542 = vadd.f32 0.0, %v4541
        %v4543 = vpop.f32.mrf.mxu0
        %v4544 = vadd.f32 0.0, %v4543
        %4545 = vmatmul.bf16.gmra.mxu0 %v4355
        %v4546 = vpop.f32.mrf.mxu0
        %v4547 = vadd.f32 0.0, %v4546
        %v4548 = vpop.f32.mrf.mxu0
        %v4549 = vadd.f32 0.0, %v4548
        %4550 = vdwg.mxu0
        %v4551 = vadd.f32 %v4260, %v4463
        %v4552 = vadd.f32 %v4309, %v4512
        %v4553 = vadd.f32 %v4262, %v4465
        %v4554 = vadd.f32 %v4311, %v4514
        %v4555 = vadd.f32 %v4265, %v4468
        %v4556 = vadd.f32 %v4314, %v4517
        %v4557 = vadd.f32 %v4267, %v4470
        %v4558 = vadd.f32 %v4316, %v4519
        %v4559 = vadd.f32 %v4270, %v4473
        %v4560 = vadd.f32 %v4319, %v4522
        %v4561 = vadd.f32 %v4272, %v4475
        %v4562 = vadd.f32 %v4321, %v4524
        %v4563 = vadd.f32 %v4275, %v4478
        %v4564 = vadd.f32 %v4324, %v4527
        %v4565 = vadd.f32 %v4277, %v4480
        %v4566 = vadd.f32 %v4326, %v4529
        %v4567 = vadd.f32 %v4280, %v4483
        %v4568 = vadd.f32 %v4329, %v4532
        %v4569 = vadd.f32 %v4282, %v4485
        %v4570 = vadd.f32 %v4331, %v4534
        %v4571 = vadd.f32 %v4285, %v4488
        %v4572 = vadd.f32 %v4334, %v4537
        %v4573 = vadd.f32 %v4287, %v4490
        %v4574 = vadd.f32 %v4336, %v4539
        %v4575 = vadd.f32 %v4290, %v4493
        %v4576 = vadd.f32 %v4339, %v4542
        %v4577 = vadd.f32 %v4292, %v4495
        %v4578 = vadd.f32 %v4341, %v4544
        %v4579 = vadd.f32 %v4295, %v4498
        %v4580 = vadd.f32 %v4344, %v4547
        %v4581 = vadd.f32 %v4297, %v4500
        %v4582 = vadd.f32 %v4346, %v4549
        %v4583 = vld [vmem:[%s14] sm:$0x3]
        %v4585 = vperm.slane %v4583, 0
        %v4586 = vperm.slane %v4583, 1
        %v4589 = vadd.f32 %v4551, %v4585
        %v4590 = vadd.f32 %v4552, %v4586
        %v4591 = vadd.f32 %v4553, %v4585
        %v4592 = vadd.f32 %v4554, %v4586
        %v4593 = vadd.f32 %v4555, %v4585
        %v4594 = vadd.f32 %v4556, %v4586
        %v4595 = vadd.f32 %v4557, %v4585
        %v4596 = vadd.f32 %v4558, %v4586
        %v4597 = vadd.f32 %v4559, %v4585
        %v4598 = vadd.f32 %v4560, %v4586
        %v4599 = vadd.f32 %v4561, %v4585
        %v4600 = vadd.f32 %v4562, %v4586
        %v4601 = vadd.f32 %v4563, %v4585
        %v4602 = vadd.f32 %v4564, %v4586
        %v4603 = vadd.f32 %v4565, %v4585
        %v4604 = vadd.f32 %v4566, %v4586
        %v4605 = vadd.f32 %v4567, %v4585
        %v4606 = vadd.f32 %v4568, %v4586
        %v4607 = vadd.f32 %v4569, %v4585
        %v4608 = vadd.f32 %v4570, %v4586
        %v4609 = vadd.f32 %v4571, %v4585
        %v4610 = vadd.f32 %v4572, %v4586
        %v4611 = vadd.f32 %v4573, %v4585
        %v4612 = vadd.f32 %v4574, %v4586
        %v4613 = vadd.f32 %v4575, %v4585
        %v4614 = vadd.f32 %v4576, %v4586
        %v4615 = vadd.f32 %v4577, %v4585
        %v4616 = vadd.f32 %v4578, %v4586
        %v4617 = vadd.f32 %v4579, %v4585
        %v4618 = vadd.f32 %v4580, %v4586
        %v4619 = vadd.f32 %v4581, %v4585
        %v4620 = vadd.f32 %v4582, %v4586
        %v4621 = vmax.f32 %v4589, 0.0
        %v4622 = vmax.f32 %v4590, 0.0
        %v4623 = vmax.f32 %v4591, 0.0
        %v4624 = vmax.f32 %v4592, 0.0
        %v4625 = vmax.f32 %v4593, 0.0
        %v4626 = vmax.f32 %v4594, 0.0
        %v4627 = vmax.f32 %v4595, 0.0
        %v4628 = vmax.f32 %v4596, 0.0
        %v4629 = vmax.f32 %v4597, 0.0
        %v4630 = vmax.f32 %v4598, 0.0
        %v4631 = vmax.f32 %v4599, 0.0
        %v4632 = vmax.f32 %v4600, 0.0
        %v4633 = vmax.f32 %v4601, 0.0
        %v4634 = vmax.f32 %v4602, 0.0
        %v4635 = vmax.f32 %v4603, 0.0
        %v4636 = vmax.f32 %v4604, 0.0
        %v4637 = vmax.f32 %v4605, 0.0
        %v4638 = vmax.f32 %v4606, 0.0
        %v4639 = vmax.f32 %v4607, 0.0
        %v4640 = vmax.f32 %v4608, 0.0
        %v4641 = vmax.f32 %v4609, 0.0
        %v4642 = vmax.f32 %v4610, 0.0
        %v4643 = vmax.f32 %v4611, 0.0
        %v4644 = vmax.f32 %v4612, 0.0
        %v4645 = vmax.f32 %v4613, 0.0
        %v4646 = vmax.f32 %v4614, 0.0
        %v4647 = vmax.f32 %v4615, 0.0
        %v4648 = vmax.f32 %v4616, 0.0
        %v4649 = vmax.f32 %v4617, 0.0
        %v4650 = vmax.f32 %v4618, 0.0
        %v4651 = vmax.f32 %v4619, 0.0
        %v4652 = vmax.f32 %v4620, 0.0
        %v4653 = vld [vmem:[%s15] sm:$0xf]
        %v4654 = vpack.c.bf16 %v4623, %v4621
        %v4655 = vpack.c.bf16 %v4624, %v4622
        %v4656 = vpack.c.bf16 %v4627, %v4625
        %v4657 = vpack.c.bf16 %v4628, %v4626
        %v4658 = vpack.c.bf16 %v4631, %v4629
        %v4659 = vpack.c.bf16 %v4632, %v4630
        %v4660 = vpack.c.bf16 %v4635, %v4633
        %v4661 = vpack.c.bf16 %v4636, %v4634
        %v4662 = vpack.c.bf16 %v4639, %v4637
        %v4663 = vpack.c.bf16 %v4640, %v4638
        %v4664 = vpack.c.bf16 %v4643, %v4641
        %v4665 = vpack.c.bf16 %v4644, %v4642
        %v4666 = vpack.c.bf16 %v4647, %v4645
        %v4667 = vpack.c.bf16 %v4648, %v4646
        %v4668 = vpack.c.bf16 %v4651, %v4649
        %v4669 = vpack.c.bf16 %v4652, %v4650
        %4670 = vmatpush.bf16.msra.mxu0 %v4668
        %4671 = vmatpush.bf16.msra.mxu0 %v4666
        %4672 = vmatpush.bf16.msra.mxu0 %v4664
        %4673 = vmatpush.bf16.msra.mxu0 %v4662
        %4674 = vmatpush.bf16.msra.mxu0 %v4660
        %4675 = vmatpush.bf16.msra.mxu0 %v4658
        %4676 = vmatpush.bf16.msra.mxu0 %v4656
        %4677 = vmatpush.bf16.msra.mxu0 %v4654
        %4678 = vmatmul.bf16.gmra.mxu0 %v4653
        %v4679 = vpop.f32.mrf.mxu0
        %v4680 = vadd.f32 0.0, %v4679
        %v4681 = vpop.f32.mrf.mxu0
        %4682 = vdwg.mxu0
        %4683 = vmatpush.bf16.msra.mxu0 %v4669
        %4684 = vmatpush.bf16.msra.mxu0 %v4667
        %4685 = vmatpush.bf16.msra.mxu0 %v4665
        %4686 = vmatpush.bf16.msra.mxu0 %v4663
        %4687 = vmatpush.bf16.msra.mxu0 %v4661
        %4688 = vmatpush.bf16.msra.mxu0 %v4659
        %4689 = vmatpush.bf16.msra.mxu0 %v4657
        %4690 = vmatpush.bf16.msra.mxu0 %v4655
        %4691 = vmatmul.bf16.gmra.mxu0 %v4653
        %v4692 = vpop.f32.mrf.mxu0
        %v4693 = vadd.f32 0.0, %v4692
        %v4694 = vpop.f32.mrf.mxu0
        %4695 = vdwg.mxu0
        %4696 = vst [vmem:[%s582] sm:$0xff] %v4680
        %4697 = vst [vmem:[%s582 + $0x8] sm:$0xff] %v4693
        %s4698 = sand.u32 %s382, 1
        %s4699 = scalar_lea.sflag [#allocation4], %s4698
        %s4700 = sand.u32 %s382, 1
        %s4701 = smul.addr %s4700, 16
        %s4702 = scalar_lea.vmem [#allocation10], %s4701
        // Predicated region
        $region101: #{tpu_custom_call.1} parent=83 // pred_check
          %p4703 = pneg %p392
        $region102: #{tpu_custom_call.1} parent=83 // pred_check_branch
          %4705 = sbr.rel (%p4703) target = $region104
        $region103: #{tpu_custom_call.1} parent=83 // pred_region
          %4707 = vsyncadd %s4699, 0
          %s4708 = smul.addr %s33, 2
          %s4709 = smul.addr %s4708, 8
          %s4710 = scalar_lea.hbm %s16, %s4709
          %s4712 = sshll.u32 %s4702, 4
          %s4713 = int_to_ptr.vmem [resolvable:$true] %s4712
          %s4714 = sshll.u32 %s4710, 4
          %s4715 = int_to_ptr.hbm [resolvable:$true] %s4714
          %4717 = dma.vmem_to_hbm [thread:$0]  %s4713, 256, %s4715, %s4699
        $region104: #{tpu_custom_call.1} parent=83 // pred_fallthru
          _
      $region84: #{tpu_custom_call.1} parent=5 // pred_fallthru
        _
      %p4718 = scmp.le.s32.totalorder 2, %s28
      // Predicated region
      $region105: #{tpu_custom_call.1} parent=5 // pred_check
        %p4719 = pneg %p4718
      $region106: #{tpu_custom_call.1} parent=5 // pred_check_branch
        %4721 = sbr.rel (%p4719) target = $region108
      $region107: #{tpu_custom_call.1} parent=5 // pred_region
        %s4722 = ssub.s32 %s28, 2
        // Predicated region
        $region109: #{tpu_custom_call.1} parent=107 // pred_check
          %p4723 = pneg %p398
        $region110: #{tpu_custom_call.1} parent=107 // pred_check_branch
          %4725 = sbr.rel (%p4723) target = $region112
        $region111: #{tpu_custom_call.1} parent=107 // pred_region
          %s4726 = sand.u32 %s383, 1
          %s4727 = scalar_lea.sflag [#allocation4], %s4726
          %s4728 = sand.u32 %s383, 1
          %s4729 = smul.addr %s4728, 16
          %s4730 = scalar_lea.vmem [#allocation10], %s4729
          %4732 = dma.done %s4727, 256
        $region112: #{tpu_custom_call.1} parent=107 // pred_fallthru
          _
      $region108: #{tpu_custom_call.1} parent=5 // pred_fallthru
        _
    $region6: #{tpu_custom_call.1} parent=1 // loop_footer
      %s32 = sadd.s32 1, %s28
    $region7: #{tpu_custom_call.1} parent=1 // loop_footer_branch
      %27 = sbr.rel target = $region3
    $region8: #{tpu_custom_call.1} parent=1 // loop_exit
      _
    %4733 = vsyncpa [#allocation3], 1
    %s4734 = scalar_lea.sflag [#allocation3], 1
    %4735 = vsyncpa %s4734, 1
    %4736 = vsyncpa [#allocation6], 1
    %4737 = vsyncpa [#allocation9], 1
    %4738 = vsyncpa [#allocation4], 1
    %s4739 = scalar_lea.sflag [#allocation4], 1
    %4740 = vsyncpa %s4739, 1

</llo_original>
